<compile_context>
chip_gen: v7x
topology: tpu7x:2x2x1
jax: 0.10.0
libtpu: 0.0.40
codegen_flags: <defaults>
</compile_context>

<pallas_src>
import functools

import jax
import jax.numpy as jnp
from jax import lax
from jax.experimental import pallas as pl
from jax.experimental.pallas import tpu as pltpu


def _dpe_kernel(f_rad_ref, f_histo_ref, flags_ref, w_ref, bias_ref, tok_ref,
                out_ref, *, topk_pos, topk_neg, sub_rows):
    bt, n, _ = f_rad_ref.shape
    n_sub = bt // sub_rows

    # Loop-invariant parameter loads (a few vregs each).  Static sublane
    # slices of w_ref are zero-cost views; N is a multiple of 8 here.
    # TODO(synk): for N not a multiple of 8 (e.g. the module's N=131) pad the
    # weight rows in the wrapper so these slices stay sublane-aligned.
    w_pos = w_ref[:n, :]            # [N, C]
    w_neg = w_ref[n:, :]            # [N, C]
    bias = bias_ref[...]            # [1, C]
    tok = tok_ref[...]              # [1, C]

    # Lane iota, broadcast on demand -- never materialize a [SC, N, N] iota.
    iota_m = lax.broadcasted_iota(jnp.int32, (1, 1, n), 2)

    eps2 = jnp.float32(1e-24)
    neg_inf = jnp.float32(-jnp.inf)
    pos_inf = jnp.float32(jnp.inf)

    def process(o):
        fr = f_rad_ref[pl.ds(o, sub_rows), :, :].astype(jnp.float32)    # [SC,N,D]
        fh = f_histo_ref[pl.ds(o, sub_rows), :, :].astype(jnp.float32)  # [SC,N,D]

        # L2 normalize along token_dim (F.normalize(p=2, dim=2)); rsqrt -> EUP.
        fr_n = fr * lax.rsqrt(jnp.sum(fr * fr, axis=-1, keepdims=True) + eps2)
        fh_n = fh * lax.rsqrt(jnp.sum(fh * fh, axis=-1, keepdims=True) + eps2)

        # sim[b, n, m] = <fr_n[b, n], fh_n[b, m]> : batched MXU matmul
        # contracting the last axes (no materialized transpose).
        sim = lax.dot_general(
            fr_n, fh_n,
            dimension_numbers=(((2,), (2,)), ((0,), (0,))),
            preferred_element_type=jnp.float32)          # [SC, N, N]

        # Fused iterative top-k: largest of sim (pos) and largest of -sim
        # (== smallest of sim, neg).  k is static and tiny -> unrolled.
        # Exactly ONE cross-lane reduction per branch per iteration; exactly
        # one (lowest-index) occurrence is masked per extraction, matching
        # torch.topk duplicate value-sum semantics.
        pos_acc = jnp.zeros(sim.shape[:2], jnp.float32)  # [SC, N]
        neg_acc = jnp.zeros(sim.shape[:2], jnp.float32)
        work_hi = sim
        work_lo = sim
        for i in range(max(topk_pos, topk_neg)):
            if i < topk_pos:
                cur = jnp.max(work_hi, axis=-1, keepdims=True)       # [SC,N,1]
                pos_acc = pos_acc + cur[..., 0]
                sel = jnp.min(jnp.where(work_hi == cur, iota_m, n),
                              axis=-1, keepdims=True)
                work_hi = jnp.where(iota_m == sel, neg_inf, work_hi)
            if i < topk_neg:
                cur = jnp.min(work_lo, axis=-1, keepdims=True)       # [SC,N,1]
                neg_acc = neg_acc - cur[..., 0]
                sel = jnp.min(jnp.where(work_lo == cur, iota_m, n),
                              axis=-1, keepdims=True)
                work_lo = jnp.where(iota_m == sel, pos_inf, work_lo)

        pos = pos_acc * jnp.float32(1.0 / topk_pos)      # [SC, N]
        neg = neg_acc * jnp.float32(1.0 / topk_neg)      # [SC, N]

        # Linear on static weight halves (no [SC, 2N] concat buffer).
        emb = (jnp.dot(pos, w_pos, preferred_element_type=jnp.float32)
               + jnp.dot(neg, w_neg, preferred_element_type=jnp.float32))

        flags = flags_ref[pl.ds(o, sub_rows), :]         # [SC, 1]
        out_ref[pl.ds(o, sub_rows), :] = (
            emb + bias + tok * flags).astype(out_ref.dtype)

    if n_sub == 1:
        process(0)                                       # fully static path
    else:
        @pl.loop(0, n_sub)
        def _(c):
            process(pl.multiple_of(c * sub_rows, sub_rows))


def dynamic_positional_embedding(f_rad, f_histo, rad_mask, histo_mask,
                                 w, bias, missing_token,
                                 topk_pos=4, topk_neg=4,
                                 batch_tile=256, sub_rows=8):
    """Pallas implementation of DynamicPositionalEmbedding.forward.

    f_rad, f_histo : [B, N, D] float32 (bf16 also accepted; upcast in-kernel)
    rad_mask, histo_mask : [B] int32 (0/1, "modality present")
    w : [2N, C] float32 (Linear weight pre-transposed to [in, out])
    bias, missing_token : [1, C]
    returns [B, C] float32
    """
    B, N, D = f_rad.shape
    C = w.shape[1]
    assert max(topk_pos, topk_neg) <= N

    # modality_flags = ~min(rad_mask, histo_mask), precomputed as [B, 1] f32.
    flags = (1 - jnp.minimum(rad_mask, histo_mask)).astype(jnp.float32)
    flags = flags.reshape(B, 1)

    # Lane-dense output: pad C to a multiple of 128 so stores are unmasked vst.
    C_pad = ((C + 127) // 128) * 128
    if C_pad != C:
        w = jnp.pad(w, ((0, 0), (0, C_pad - C)))
        bias = jnp.pad(bias, ((0, 0), (0, C_pad - C)))
        missing_token = jnp.pad(missing_token, ((0, 0), (0, C_pad - C)))

    # Batch tiling: sub-chunks of SC rows keep the top-k working set in vregs;
    # BT amortizes per-step overhead; prefer >= 2 grid steps when the batch
    # allows so the "parallel" axis shards across both v7x TensorCores.
    SC = max(8, (sub_rows // 8) * 8)
    B_sc = ((B + SC - 1) // SC) * SC
    BT = min(((batch_tile + SC - 1) // SC) * SC, B_sc)
    if B_sc // BT < 2 and B_sc >= 2 * SC:
        BT = (B_sc // (2 * SC)) * SC
    B_pad = ((B + BT - 1) // BT) * BT
    if B_pad != B:
        pad = B_pad - B
        f_rad = jnp.pad(f_rad, ((0, pad), (0, 0), (0, 0)))
        f_histo = jnp.pad(f_histo, ((0, pad), (0, 0), (0, 0)))
        flags = jnp.pad(flags, ((0, pad), (0, 0)))

    kmax = max(topk_pos, topk_neg)
    cost = pl.CostEstimate(
        flops=int(B_pad * (4 * N * D            # normalizations
                           + 2 * N * N * D      # similarity matmul
                           + 8 * kmax * N * N   # top-k compare/select passes
                           + 4 * N * C_pad)),   # linear (two halves)
        transcendentals=int(B_pad * 2 * N),     # rsqrt per token row
        bytes_accessed=int(4 * (B_pad * (2 * N * D + 1 + C_pad)
                                + 2 * N * C_pad + 2 * C_pad)),
    )

    kernel = functools.partial(_dpe_kernel, topk_pos=topk_pos,
                               topk_neg=topk_neg, sub_rows=SC)

    out = pl.pallas_call(
        kernel,
        out_shape=jax.ShapeDtypeStruct((B_pad, C_pad), jnp.float32),
        grid=(B_pad // BT,),
        in_specs=[
            pl.BlockSpec((BT, N, D), lambda i: (i, 0, 0)),    # f_rad tile
            pl.BlockSpec((BT, N, D), lambda i: (i, 0, 0)),    # f_histo tile
            pl.BlockSpec((BT, 1), lambda i: (i, 0)),          # modality flags
            pl.BlockSpec((2 * N, C_pad), lambda i: (0, 0)),   # Linear weight
            pl.BlockSpec((1, C_pad), lambda i: (0, 0)),       # Linear bias
            pl.BlockSpec((1, C_pad), lambda i: (0, 0)),       # missing-modality token
        ],
        out_specs=pl.BlockSpec((BT, C_pad), lambda i: (i, 0)),
        compiler_params=pltpu.CompilerParams(
            dimension_semantics=("parallel",)),
        cost_estimate=cost,
    )(f_rad, f_histo, flags, w, bias, missing_token)

    return out[:B, :C]


def _reference(f_rad, f_histo, rad_mask, histo_mask, w, bias, tok, k_pos, k_neg):
    hp = jax.lax.Precision.HIGHEST
    eps = 1e-12
    frn = f_rad / jnp.maximum(jnp.linalg.norm(f_rad, axis=-1, keepdims=True), eps)
    fhn = f_histo / jnp.maximum(jnp.linalg.norm(f_histo, axis=-1, keepdims=True), eps)
    sim = jnp.einsum('bnd,bmd->bnm', frn, fhn, precision=hp)
    pos = jnp.mean(jax.lax.top_k(sim, k_pos)[0], axis=-1)
    neg = jnp.mean(jax.lax.top_k(-sim, k_neg)[0], axis=-1)
    flat = jnp.concatenate([pos, neg], axis=1)
    emb = jnp.dot(flat, w, precision=hp) + bias
    flags = (1 - jnp.minimum(rad_mask, histo_mask)).astype(emb.dtype)[:, None]
    return emb + tok * flags


if __name__ == "__main__":
    # Small shapes consistent with the module: N tokens per modality,
    # Linear(N * 2, out_channels).  B=10 exercises batch padding and gives a
    # 2-step grid (v7x megacore); C=128 keeps output stores lane-dense.
    B, N, D, C = 10, 16, 32, 128
    TOPK_POS, TOPK_NEG = 4, 4

    key = jax.random.PRNGKey(0)
    k1, k2, k3, k4, k5 = jax.random.split(key, 5)

    f_rad = jax.random.normal(k1, (B, N, D), dtype=jnp.float32)
    f_histo = jax.random.normal(k2, (B, N, D), dtype=jnp.float32)
    rad_mask = jnp.array([1, 0, 1, 1, 0, 1, 1, 1, 0, 1], dtype=jnp.int32)
    histo_mask = jnp.ones((B,), dtype=jnp.int32)

    # Deterministic synthetic parameters (nn.Linear weight pre-transposed to
    # [in, out]; module inits the missing-modality token to zeros -- use small
    # nonzero values so that path is actually exercised).
    w = jax.random.normal(k3, (2 * N, C), dtype=jnp.float32) * 0.05
    bias = jax.random.normal(k4, (1, C), dtype=jnp.float32) * 0.01
    missing_token = jax.random.normal(k5, (1, C), dtype=jnp.float32) * 0.1

    out = dynamic_positional_embedding(
        f_rad, f_histo, rad_mask, histo_mask, w, bias, missing_token,
        topk_pos=TOPK_POS, topk_neg=TOPK_NEG)
    out = jax.block_until_ready(out)

    ref = _reference(f_rad, f_histo, rad_mask, histo_mask, w, bias,
                     missing_token, TOPK_POS, TOPK_NEG)

    assert out.shape == (B, C)
    assert jnp.allclose(out, ref, atol=1e-4, rtol=1e-4), (
        f"max abs err {jnp.max(jnp.abs(out - ref))}")

    print("KERNEL_OK")
</pallas_src>

<mosaic_0001>
module attributes {stable_mosaic.version = 11 : i64} {
  func.func @_dpe_kernel(%arg0: i32, %arg1: memref<8x16x32xf32, #tpu.memory_space<vmem>>, %arg2: memref<8x16x32xf32, #tpu.memory_space<vmem>>, %arg3: memref<8x1xf32, #tpu.memory_space<vmem>>, %arg4: memref<32x128xf32, #tpu.memory_space<vmem>>, %arg5: memref<1x128xf32, #tpu.memory_space<vmem>>, %arg6: memref<1x128xf32, #tpu.memory_space<vmem>>, %arg7: memref<8x128xf32, #tpu.memory_space<vmem>>) attributes {dimension_semantics = [#tpu.dimension_semantics<parallel>], iteration_bounds = array<i64: 2>, scalar_prefetch = 0 : i64, scratch_operands = 0 : i64, tpu.core_type = #tpu.core_type<tc>, window_params = [{transform_indices = @transform_0, window_bounds = array<i64: 8, 16, 32>}, {transform_indices = @transform_1, window_bounds = array<i64: 8, 16, 32>}, {transform_indices = @transform_2, window_bounds = array<i64: 8, 1>}, {pipeline_mode = #tpu.pipeline_mode<synchronous>, transform_indices = @transform_3, window_bounds = array<i64: 32, 128>}, {pipeline_mode = #tpu.pipeline_mode<synchronous>, transform_indices = @transform_4, window_bounds = array<i64: 1, 128>}, {pipeline_mode = #tpu.pipeline_mode<synchronous>, transform_indices = @transform_5, window_bounds = array<i64: 1, 128>}, {transform_indices = @transform_6, window_bounds = array<i64: 8, 128>}]} {
    %c0 = arith.constant 0 : index
    %c0_0 = arith.constant 0 : index
    %0 = vector.load %arg4[%c0, %c0_0] : memref<32x128xf32, #tpu.memory_space<vmem>>, vector<16x128xf32>
    %c16 = arith.constant 16 : index
    %c0_1 = arith.constant 0 : index
    %1 = vector.load %arg4[%c16, %c0_1] : memref<32x128xf32, #tpu.memory_space<vmem>>, vector<16x128xf32>
    %c0_2 = arith.constant 0 : index
    %c0_3 = arith.constant 0 : index
    %2 = vector.load %arg5[%c0_2, %c0_3] : memref<1x128xf32, #tpu.memory_space<vmem>>, vector<1x128xf32>
    %c0_4 = arith.constant 0 : index
    %c0_5 = arith.constant 0 : index
    %3 = vector.load %arg6[%c0_4, %c0_5] : memref<1x128xf32, #tpu.memory_space<vmem>>, vector<1x128xf32>
    %4 = tpu.iota {dimensions = array<i32: 2>} : vector<1x1x16xi32>
    %c0_6 = arith.constant 0 : index
    %c0_7 = arith.constant 0 : index
    %c0_8 = arith.constant 0 : index
    %5 = vector.load %arg1[%c0_6, %c0_7, %c0_8] : memref<8x16x32xf32, #tpu.memory_space<vmem>>, vector<8x16x32xf32>
    %c0_9 = arith.constant 0 : index
    %c0_10 = arith.constant 0 : index
    %c0_11 = arith.constant 0 : index
    %6 = vector.load %arg2[%c0_9, %c0_10, %c0_11] : memref<8x16x32xf32, #tpu.memory_space<vmem>>, vector<8x16x32xf32>
    %7 = arith.mulf %5, %5 : vector<8x16x32xf32>
    %cst = arith.constant dense<0.000000e+00> : vector<8x16xf32>
    %8 = vector.multi_reduction <add>, %7, %cst [2] : vector<8x16x32xf32> to vector<8x16xf32>
    %9 = vector.shape_cast %8 : vector<8x16xf32> to vector<8x16x1xf32>
    %cst_12 = arith.constant 1.000000e-24 : f32
    %10 = vector.broadcast %cst_12 : f32 to vector<8x16x1xf32>
    %11 = arith.addf %9, %10 : vector<8x16x1xf32>
    %12 = math.rsqrt %11 : vector<8x16x1xf32>
    %13 = vector.broadcast %12 : vector<8x16x1xf32> to vector<8x16x32xf32>
    %14 = arith.mulf %5, %13 : vector<8x16x32xf32>
    %15 = arith.mulf %6, %6 : vector<8x16x32xf32>
    %cst_13 = arith.constant dense<0.000000e+00> : vector<8x16xf32>
    %16 = vector.multi_reduction <add>, %15, %cst_13 [2] : vector<8x16x32xf32> to vector<8x16xf32>
    %17 = vector.shape_cast %16 : vector<8x16xf32> to vector<8x16x1xf32>
    %cst_14 = arith.constant 1.000000e-24 : f32
    %18 = vector.broadcast %cst_14 : f32 to vector<8x16x1xf32>
    %19 = arith.addf %17, %18 : vector<8x16x1xf32>
    %20 = math.rsqrt %19 : vector<8x16x1xf32>
    %21 = vector.broadcast %20 : vector<8x16x1xf32> to vector<8x16x32xf32>
    %22 = arith.mulf %6, %21 : vector<8x16x32xf32>
    %cst_15 = arith.constant dense<0.000000e+00> : vector<8x16x16xf32>
    %23 = tpu.matmul %14, %22, %cst_15 {dimension_numbers = #tpu.dot_dimension_numbers<[2], [2], [1], [1], [0, 0, 0, 1, 1, 1], [0], [0]>} : vector<8x16x32xf32>, vector<8x16x32xf32>, vector<8x16x16xf32> -> vector<8x16x16xf32>
    %cst_16 = arith.constant 0.000000e+00 : f32
    %24 = vector.broadcast %cst_16 : f32 to vector<8x16xf32>
    %cst_17 = arith.constant 0.000000e+00 : f32
    %25 = vector.broadcast %cst_17 : f32 to vector<8x16xf32>
    %cst_18 = arith.constant dense<0xFF800000> : vector<8x16xf32>
    %26 = vector.multi_reduction <maximumf>, %23, %cst_18 [2] : vector<8x16x16xf32> to vector<8x16xf32>
    %27 = vector.shape_cast %26 : vector<8x16xf32> to vector<8x16x1xf32>
    %28 = vector.shape_cast %27 : vector<8x16x1xf32> to vector<8x16xf32>
    %29 = arith.addf %24, %28 : vector<8x16xf32>
    %30 = vector.broadcast %27 : vector<8x16x1xf32> to vector<8x16x16xf32>
    %31 = arith.cmpf oeq, %23, %30 : vector<8x16x16xf32>
    %c16_i32 = arith.constant 16 : i32
    %32 = vector.shape_cast %4 : vector<1x1x16xi32> to vector<1x1x16xi32>
    %33 = vector.broadcast %32 : vector<1x1x16xi32> to vector<8x16x16xi32>
    %34 = vector.broadcast %c16_i32 : i32 to vector<8x16x16xi32>
    %35 = arith.select %31, %33, %34 : vector<8x16x16xi1>, vector<8x16x16xi32>
    %cst_19 = arith.constant dense<2147483647> : vector<8x16xi32>
    %36 = vector.multi_reduction <minsi>, %35, %cst_19 [2] : vector<8x16x16xi32> to vector<8x16xi32>
    %37 = vector.shape_cast %36 : vector<8x16xi32> to vector<8x16x1xi32>
    %38 = vector.broadcast %4 : vector<1x1x16xi32> to vector<8x16x16xi32>
    %39 = vector.broadcast %37 : vector<8x16x1xi32> to vector<8x16x16xi32>
    %40 = arith.cmpi eq, %38, %39 : vector<8x16x16xi32>
    %cst_20 = arith.constant 0xFF800000 : f32
    %41 = vector.broadcast %cst_20 : f32 to vector<8x16x16xf32>
    %42 = arith.select %40, %41, %23 : vector<8x16x16xi1>, vector<8x16x16xf32>
    %cst_21 = arith.constant dense<0x7F800000> : vector<8x16xf32>
    %43 = vector.multi_reduction <minimumf>, %23, %cst_21 [2] : vector<8x16x16xf32> to vector<8x16xf32>
    %44 = vector.shape_cast %43 : vector<8x16xf32> to vector<8x16x1xf32>
    %45 = vector.shape_cast %44 : vector<8x16x1xf32> to vector<8x16xf32>
    %46 = arith.subf %25, %45 : vector<8x16xf32>
    %47 = vector.broadcast %44 : vector<8x16x1xf32> to vector<8x16x16xf32>
    %48 = arith.cmpf oeq, %23, %47 : vector<8x16x16xf32>
    %c16_i32_22 = arith.constant 16 : i32
    %49 = vector.shape_cast %4 : vector<1x1x16xi32> to vector<1x1x16xi32>
    %50 = vector.broadcast %49 : vector<1x1x16xi32> to vector<8x16x16xi32>
    %51 = vector.broadcast %c16_i32_22 : i32 to vector<8x16x16xi32>
    %52 = arith.select %48, %50, %51 : vector<8x16x16xi1>, vector<8x16x16xi32>
    %cst_23 = arith.constant dense<2147483647> : vector<8x16xi32>
    %53 = vector.multi_reduction <minsi>, %52, %cst_23 [2] : vector<8x16x16xi32> to vector<8x16xi32>
    %54 = vector.shape_cast %53 : vector<8x16xi32> to vector<8x16x1xi32>
    %55 = vector.broadcast %4 : vector<1x1x16xi32> to vector<8x16x16xi32>
    %56 = vector.broadcast %54 : vector<8x16x1xi32> to vector<8x16x16xi32>
    %57 = arith.cmpi eq, %55, %56 : vector<8x16x16xi32>
    %cst_24 = arith.constant 0x7F800000 : f32
    %58 = vector.broadcast %cst_24 : f32 to vector<8x16x16xf32>
    %59 = arith.select %57, %58, %23 : vector<8x16x16xi1>, vector<8x16x16xf32>
    %cst_25 = arith.constant dense<0xFF800000> : vector<8x16xf32>
    %60 = vector.multi_reduction <maximumf>, %42, %cst_25 [2] : vector<8x16x16xf32> to vector<8x16xf32>
    %61 = vector.shape_cast %60 : vector<8x16xf32> to vector<8x16x1xf32>
    %62 = vector.shape_cast %61 : vector<8x16x1xf32> to vector<8x16xf32>
    %63 = arith.addf %29, %62 : vector<8x16xf32>
    %64 = vector.broadcast %61 : vector<8x16x1xf32> to vector<8x16x16xf32>
    %65 = arith.cmpf oeq, %42, %64 : vector<8x16x16xf32>
    %c16_i32_26 = arith.constant 16 : i32
    %66 = vector.shape_cast %4 : vector<1x1x16xi32> to vector<1x1x16xi32>
    %67 = vector.broadcast %66 : vector<1x1x16xi32> to vector<8x16x16xi32>
    %68 = vector.broadcast %c16_i32_26 : i32 to vector<8x16x16xi32>
    %69 = arith.select %65, %67, %68 : vector<8x16x16xi1>, vector<8x16x16xi32>
    %cst_27 = arith.constant dense<2147483647> : vector<8x16xi32>
    %70 = vector.multi_reduction <minsi>, %69, %cst_27 [2] : vector<8x16x16xi32> to vector<8x16xi32>
    %71 = vector.shape_cast %70 : vector<8x16xi32> to vector<8x16x1xi32>
    %72 = vector.broadcast %4 : vector<1x1x16xi32> to vector<8x16x16xi32>
    %73 = vector.broadcast %71 : vector<8x16x1xi32> to vector<8x16x16xi32>
    %74 = arith.cmpi eq, %72, %73 : vector<8x16x16xi32>
    %cst_28 = arith.constant 0xFF800000 : f32
    %75 = vector.broadcast %cst_28 : f32 to vector<8x16x16xf32>
    %76 = arith.select %74, %75, %42 : vector<8x16x16xi1>, vector<8x16x16xf32>
    %cst_29 = arith.constant dense<0x7F800000> : vector<8x16xf32>
    %77 = vector.multi_reduction <minimumf>, %59, %cst_29 [2] : vector<8x16x16xf32> to vector<8x16xf32>
    %78 = vector.shape_cast %77 : vector<8x16xf32> to vector<8x16x1xf32>
    %79 = vector.shape_cast %78 : vector<8x16x1xf32> to vector<8x16xf32>
    %80 = arith.subf %46, %79 : vector<8x16xf32>
    %81 = vector.broadcast %78 : vector<8x16x1xf32> to vector<8x16x16xf32>
    %82 = arith.cmpf oeq, %59, %81 : vector<8x16x16xf32>
    %c16_i32_30 = arith.constant 16 : i32
    %83 = vector.shape_cast %4 : vector<1x1x16xi32> to vector<1x1x16xi32>
    %84 = vector.broadcast %83 : vector<1x1x16xi32> to vector<8x16x16xi32>
    %85 = vector.broadcast %c16_i32_30 : i32 to vector<8x16x16xi32>
    %86 = arith.select %82, %84, %85 : vector<8x16x16xi1>, vector<8x16x16xi32>
    %cst_31 = arith.constant dense<2147483647> : vector<8x16xi32>
    %87 = vector.multi_reduction <minsi>, %86, %cst_31 [2] : vector<8x16x16xi32> to vector<8x16xi32>
    %88 = vector.shape_cast %87 : vector<8x16xi32> to vector<8x16x1xi32>
    %89 = vector.broadcast %4 : vector<1x1x16xi32> to vector<8x16x16xi32>
    %90 = vector.broadcast %88 : vector<8x16x1xi32> to vector<8x16x16xi32>
    %91 = arith.cmpi eq, %89, %90 : vector<8x16x16xi32>
    %cst_32 = arith.constant 0x7F800000 : f32
    %92 = vector.broadcast %cst_32 : f32 to vector<8x16x16xf32>
    %93 = arith.select %91, %92, %59 : vector<8x16x16xi1>, vector<8x16x16xf32>
    %cst_33 = arith.constant dense<0xFF800000> : vector<8x16xf32>
    %94 = vector.multi_reduction <maximumf>, %76, %cst_33 [2] : vector<8x16x16xf32> to vector<8x16xf32>
    %95 = vector.shape_cast %94 : vector<8x16xf32> to vector<8x16x1xf32>
    %96 = vector.shape_cast %95 : vector<8x16x1xf32> to vector<8x16xf32>
    %97 = arith.addf %63, %96 : vector<8x16xf32>
    %98 = vector.broadcast %95 : vector<8x16x1xf32> to vector<8x16x16xf32>
    %99 = arith.cmpf oeq, %76, %98 : vector<8x16x16xf32>
    %c16_i32_34 = arith.constant 16 : i32
    %100 = vector.shape_cast %4 : vector<1x1x16xi32> to vector<1x1x16xi32>
    %101 = vector.broadcast %100 : vector<1x1x16xi32> to vector<8x16x16xi32>
    %102 = vector.broadcast %c16_i32_34 : i32 to vector<8x16x16xi32>
    %103 = arith.select %99, %101, %102 : vector<8x16x16xi1>, vector<8x16x16xi32>
    %cst_35 = arith.constant dense<2147483647> : vector<8x16xi32>
    %104 = vector.multi_reduction <minsi>, %103, %cst_35 [2] : vector<8x16x16xi32> to vector<8x16xi32>
    %105 = vector.shape_cast %104 : vector<8x16xi32> to vector<8x16x1xi32>
    %106 = vector.broadcast %4 : vector<1x1x16xi32> to vector<8x16x16xi32>
    %107 = vector.broadcast %105 : vector<8x16x1xi32> to vector<8x16x16xi32>
    %108 = arith.cmpi eq, %106, %107 : vector<8x16x16xi32>
    %cst_36 = arith.constant 0xFF800000 : f32
    %109 = vector.broadcast %cst_36 : f32 to vector<8x16x16xf32>
    %110 = arith.select %108, %109, %76 : vector<8x16x16xi1>, vector<8x16x16xf32>
    %cst_37 = arith.constant dense<0x7F800000> : vector<8x16xf32>
    %111 = vector.multi_reduction <minimumf>, %93, %cst_37 [2] : vector<8x16x16xf32> to vector<8x16xf32>
    %112 = vector.shape_cast %111 : vector<8x16xf32> to vector<8x16x1xf32>
    %113 = vector.shape_cast %112 : vector<8x16x1xf32> to vector<8x16xf32>
    %114 = arith.subf %80, %113 : vector<8x16xf32>
    %115 = vector.broadcast %112 : vector<8x16x1xf32> to vector<8x16x16xf32>
    %116 = arith.cmpf oeq, %93, %115 : vector<8x16x16xf32>
    %c16_i32_38 = arith.constant 16 : i32
    %117 = vector.shape_cast %4 : vector<1x1x16xi32> to vector<1x1x16xi32>
    %118 = vector.broadcast %117 : vector<1x1x16xi32> to vector<8x16x16xi32>
    %119 = vector.broadcast %c16_i32_38 : i32 to vector<8x16x16xi32>
    %120 = arith.select %116, %118, %119 : vector<8x16x16xi1>, vector<8x16x16xi32>
    %cst_39 = arith.constant dense<2147483647> : vector<8x16xi32>
    %121 = vector.multi_reduction <minsi>, %120, %cst_39 [2] : vector<8x16x16xi32> to vector<8x16xi32>
    %122 = vector.shape_cast %121 : vector<8x16xi32> to vector<8x16x1xi32>
    %123 = vector.broadcast %4 : vector<1x1x16xi32> to vector<8x16x16xi32>
    %124 = vector.broadcast %122 : vector<8x16x1xi32> to vector<8x16x16xi32>
    %125 = arith.cmpi eq, %123, %124 : vector<8x16x16xi32>
    %cst_40 = arith.constant 0x7F800000 : f32
    %126 = vector.broadcast %cst_40 : f32 to vector<8x16x16xf32>
    %127 = arith.select %125, %126, %93 : vector<8x16x16xi1>, vector<8x16x16xf32>
    %cst_41 = arith.constant dense<0xFF800000> : vector<8x16xf32>
    %128 = vector.multi_reduction <maximumf>, %110, %cst_41 [2] : vector<8x16x16xf32> to vector<8x16xf32>
    %129 = vector.shape_cast %128 : vector<8x16xf32> to vector<8x16x1xf32>
    %130 = vector.shape_cast %129 : vector<8x16x1xf32> to vector<8x16xf32>
    %131 = arith.addf %97, %130 : vector<8x16xf32>
    %cst_42 = arith.constant dense<0x7F800000> : vector<8x16xf32>
    %132 = vector.multi_reduction <minimumf>, %127, %cst_42 [2] : vector<8x16x16xf32> to vector<8x16xf32>
    %133 = vector.shape_cast %132 : vector<8x16xf32> to vector<8x16x1xf32>
    %134 = vector.shape_cast %133 : vector<8x16x1xf32> to vector<8x16xf32>
    %135 = arith.subf %114, %134 : vector<8x16xf32>
    %cst_43 = arith.constant 2.500000e-01 : f32
    %136 = vector.broadcast %cst_43 : f32 to vector<8x16xf32>
    %137 = arith.mulf %131, %136 : vector<8x16xf32>
    %cst_44 = arith.constant 2.500000e-01 : f32
    %138 = vector.broadcast %cst_44 : f32 to vector<8x16xf32>
    %139 = arith.mulf %135, %138 : vector<8x16xf32>
    %cst_45 = arith.constant dense<0.000000e+00> : vector<8x128xf32>
    %140 = tpu.matmul %137, %0, %cst_45 {dimension_numbers = #tpu.dot_dimension_numbers<[1], [0], [0], [1], [0, 0, 1, 1], [], []>} : vector<8x16xf32>, vector<16x128xf32>, vector<8x128xf32> -> vector<8x128xf32>
    %cst_46 = arith.constant dense<0.000000e+00> : vector<8x128xf32>
    %141 = tpu.matmul %139, %1, %cst_46 {dimension_numbers = #tpu.dot_dimension_numbers<[1], [0], [0], [1], [0, 0, 1, 1], [], []>} : vector<8x16xf32>, vector<16x128xf32>, vector<8x128xf32> -> vector<8x128xf32>
    %142 = arith.addf %140, %141 : vector<8x128xf32>
    %c0_47 = arith.constant 0 : index
    %c0_48 = arith.constant 0 : index
    %143 = vector.load %arg3[%c0_47, %c0_48] : memref<8x1xf32, #tpu.memory_space<vmem>>, vector<8x1xf32>
    %144 = vector.broadcast %2 : vector<1x128xf32> to vector<8x128xf32>
    %145 = arith.addf %142, %144 : vector<8x128xf32>
    %146 = vector.broadcast %3 : vector<1x128xf32> to vector<8x128xf32>
    %147 = vector.broadcast %143 : vector<8x1xf32> to vector<8x128xf32>
    %148 = arith.mulf %146, %147 : vector<8x128xf32>
    %149 = arith.addf %145, %148 : vector<8x128xf32>
    %c0_49 = arith.constant 0 : index
    %c0_50 = arith.constant 0 : index
    %150 = vector.load %arg7[%c0_49, %c0_50] : memref<8x128xf32, #tpu.memory_space<vmem>>, vector<8x128xf32>
    tpu.vector_store %arg7[%c0_49, %c0_50], %149 {strides = array<i32>} : memref<8x128xf32, #tpu.memory_space<vmem>>, vector<8x128xf32>,
    return
  }
  func.func @transform_0(%arg0: i32) -> (i32, i32, i32) {
    %c0_i32 = arith.constant 0 : i32
    %c0_i32_0 = arith.constant 0 : i32
    %c0_i32_1 = arith.constant 0 : i32
    return %arg0, %c0_i32, %c0_i32_0 : i32, i32, i32
  }
  func.func @transform_1(%arg0: i32) -> (i32, i32, i32) {
    %c0_i32 = arith.constant 0 : i32
    %c0_i32_0 = arith.constant 0 : i32
    %c0_i32_1 = arith.constant 0 : i32
    return %arg0, %c0_i32, %c0_i32_0 : i32, i32, i32
  }
  func.func @transform_2(%arg0: i32) -> (i32, i32) {
    %c0_i32 = arith.constant 0 : i32
    %c0_i32_0 = arith.constant 0 : i32
    return %arg0, %c0_i32 : i32, i32
  }
  func.func @transform_3(%arg0: i32) -> (i32, i32) {
    %c0_i32 = arith.constant 0 : i32
    %c0_i32_0 = arith.constant 0 : i32
    %c0_i32_1 = arith.constant 0 : i32
    return %c0_i32, %c0_i32_0 : i32, i32
  }
  func.func @transform_4(%arg0: i32) -> (i32, i32) {
    %c0_i32 = arith.constant 0 : i32
    %c0_i32_0 = arith.constant 0 : i32
    %c0_i32_1 = arith.constant 0 : i32
    return %c0_i32, %c0_i32_0 : i32, i32
  }
  func.func @transform_5(%arg0: i32) -> (i32, i32) {
    %c0_i32 = arith.constant 0 : i32
    %c0_i32_0 = arith.constant 0 : i32
    %c0_i32_1 = arith.constant 0 : i32
    return %c0_i32, %c0_i32_0 : i32, i32
  }
  func.func @transform_6(%arg0: i32) -> (i32, i32) {
    %c0_i32 = arith.constant 0 : i32
    %c0_i32_0 = arith.constant 0 : i32
    return %arg0, %c0_i32 : i32, i32
  }
}

</mosaic_0001>

<llo_original>
// kernel: tpu_custom_call.1
$region0: #{tpu_custom_call.1}
  #allocation0 [shape = 'u32[]', space=smem, size = 0x4, offset = 0x4, fixed_abs, tag = 'smem constant byte address 0x4 - core index']
  #allocation1 [shape = 'u32[144,128]{1,0:T(1,128)}', space=vmem, size = 0x12000, scoped, tag = 'internal scratch']
  %s0 = inlined_call_operand.hbm [shape: f32[16,16,32], index: 0, kind: input, shape index: {}]
  %s1 = inlined_call_operand.hbm [shape: f32[16,16,32], index: 1, kind: input, shape index: {}]
  %s2 = inlined_call_operand.vmem [shape: f32[16,1], index: 2, kind: input, shape index: {}]
  %s3 = inlined_call_operand.hbm [shape: f32[32,128], index: 3, kind: input, shape index: {}]
  %s4 = inlined_call_operand.vmem [shape: f32[1,128], index: 4, kind: input, shape index: {}]
  %s5 = inlined_call_operand.vmem [shape: f32[1,128], index: 5, kind: input, shape index: {}]
  %s6 = inlined_call_operand.hbm [shape: f32[16,128], index: 6, kind: output, shape index: {}]
  %s7 = sld [smem:[#allocation0]]
  $region69: #{tpu_custom_call.1} parent=0
    _
  %s9 = ssub.s32 1, %s7
  %s10 = scalar_select 0, %s9, %s7
  $region1: #{tpu_custom_call.1} parent=0
    #allocation2 [shape = 'u8[131072]{0}', space=vmem, size = 0x20000, scoped, tag = 'input window, operand 0']
    #allocation3 [shape = 's32[2]{0}', space=sflag, size = 0x8, scoped, tag = 'scoped memory for tpu_custom_call.1']
    #allocation4 [shape = 's32[2]{0}', space=sflag, size = 0x8, scoped, tag = 'scoped memory for tpu_custom_call.1']
    #allocation5 [shape = 'u8[131072]{0}', space=vmem, size = 0x20000, scoped, tag = 'input window, operand 1']
    #allocation6 [shape = 's32[2]{0}', space=sflag, size = 0x8, scoped, tag = 'scoped memory for tpu_custom_call.1']
    #allocation7 [shape = 'u8[16384]{0}', space=vmem, size = 0x4000, scoped, tag = 'input window, operand 3, single buffered']
    #allocation8 [shape = 'u8[8192]{0}', space=vmem, size = 0x2000, scoped, tag = 'output window, operand 0']
    %11 = vsyncpa [#allocation3], 0
    %s12 = scalar_lea.sflag [#allocation3], 1
    %13 = vsyncpa %s12, 0
    %14 = vsyncpa [#allocation6], 0
    %s15 = scalar_lea.sflag [#allocation6], 1
    %16 = vsyncpa %s15, 0
    %17 = vsyncpa [#allocation4], 0
    %s18 = scalar_lea.sflag [#allocation4], 1
    %19 = vsyncpa %s18, 0
    loop: start=0, step=1, limit=4
    $region2: #{tpu_custom_call.1} parent=1 // loop_pre_header
      _
    $region3: #{tpu_custom_call.1} parent=1 // loop_header
      %s21 = sphi 0, %s25
      %p22 = scmp.ge.s32.totalorder %s21, 4
      %s31 = sphi 0, %s33
      %s34 = sphi 0, %s31
      %s35 = sphi 0, %s34
      %s51 = sphi 0, %s35
      %s57 = sphi 0, %s59
      %s60 = sphi 0, %s57
      %s61 = sphi 0, %s60
      %s77 = sphi 0, %s61
      %s83 = sphi 0, %s85
      %s86 = sphi 0, %s83
      %s87 = sphi 0, %s86
      %s103 = sphi 0, %s87
      %s107 = sphi 0, %s107
      %s109 = sphi 0, %s107
      %s110 = sphi 0, %s109
      %s124 = sphi 0, %s110
      %s128 = sphi 0, %s128
      %s130 = sphi 0, %s128
      %s131 = sphi 0, %s130
      %s145 = sphi 0, %s131
      %s149 = sphi 0, %s149
      %s151 = sphi 0, %s149
      %s152 = sphi 0, %s151
      %s166 = sphi 0, %s152
      %s172 = sphi 0, %s174
      %s175 = sphi 0, %s172
      %s176 = sphi 0, %s175
      %s192 = sphi 0, %s176
    $region4: #{tpu_custom_call.1} parent=1 // loop_header_branch
      %24 = sbr.rel (%p22) target = $region8
    $region5: #{tpu_custom_call.1} parent=1 // loop_body
      %s26 = ssub.s32 %s21, 1
      %s27 = ssub.s32 %s21, 2
      %s28 = sadd.s32 %s21, 1
      %s29 = ssub.s32 %s21, %s28
      %p30 = scmp.eq.s32.totalorder %s29, 0
      %s32 = sadd.s32 %s31, 1
      %s33 = scalar_select %p30, %s31, %s32
      %p36 = pneg %p30
      %p37 = scmp.eq.s32.totalorder %s21, 1
      %p38 = por %p36, %p37
      %p39 = scmp.ne.s32.totalorder %s31, %s34
      %p40 = scmp.eq.s32.totalorder %s21, 0
      %p41 = por %p39, %p40
      %p42 = scmp.ne.s32.totalorder %s31, %s34
      %p43 = scmp.eq.s32.totalorder %s26, 1
      %p44 = por %p42, %p43
      %p45 = scmp.ne.s32.totalorder %s34, %s35
      %p46 = scmp.eq.s32.totalorder %s26, 0
      %p47 = por %p45, %p46
      %p48 = scmp.ne.s32.totalorder %s34, %s35
      %p49 = scmp.eq.s32.totalorder %s27, 1
      %p50 = por %p48, %p49
      %p52 = scmp.ne.s32.totalorder %s35, %s51
      %p53 = scmp.eq.s32.totalorder %s27, 0
      %p54 = por %p52, %p53
      %s55 = ssub.s32 %s21, %s28
      %p56 = scmp.eq.s32.totalorder %s55, 0
      %s58 = sadd.s32 %s57, 1
      %s59 = scalar_select %p56, %s57, %s58
      %p62 = pneg %p56
      %p63 = scmp.eq.s32.totalorder %s21, 1
      %p64 = por %p62, %p63
      %p65 = scmp.ne.s32.totalorder %s57, %s60
      %p66 = scmp.eq.s32.totalorder %s21, 0
      %p67 = por %p65, %p66
      %p68 = scmp.ne.s32.totalorder %s57, %s60
      %p69 = scmp.eq.s32.totalorder %s26, 1
      %p70 = por %p68, %p69
      %p71 = scmp.ne.s32.totalorder %s60, %s61
      %p72 = scmp.eq.s32.totalorder %s26, 0
      %p73 = por %p71, %p72
      %p74 = scmp.ne.s32.totalorder %s60, %s61
      %p75 = scmp.eq.s32.totalorder %s27, 1
      %p76 = por %p74, %p75
      %p78 = scmp.ne.s32.totalorder %s61, %s77
      %p79 = scmp.eq.s32.totalorder %s27, 0
      %p80 = por %p78, %p79
      %s81 = ssub.s32 %s21, %s28
      %p82 = scmp.eq.s32.totalorder %s81, 0
      %s84 = sadd.s32 %s83, 1
      %s85 = scalar_select %p82, %s83, %s84
      %p88 = pneg %p82
      %p89 = scmp.eq.s32.totalorder %s21, 1
      %p90 = por %p88, %p89
      %p91 = scmp.ne.s32.totalorder %s83, %s86
      %p92 = scmp.eq.s32.totalorder %s21, 0
      %p93 = por %p91, %p92
      %p94 = scmp.ne.s32.totalorder %s83, %s86
      %p95 = scmp.eq.s32.totalorder %s26, 1
      %p96 = por %p94, %p95
      %p97 = scmp.ne.s32.totalorder %s86, %s87
      %p98 = scmp.eq.s32.totalorder %s26, 0
      %p99 = por %p97, %p98
      %p100 = scmp.ne.s32.totalorder %s86, %s87
      %p101 = scmp.eq.s32.totalorder %s27, 1
      %p102 = por %p100, %p101
      %p104 = scmp.ne.s32.totalorder %s87, %s103
      %p105 = scmp.eq.s32.totalorder %s27, 0
      %p106 = por %p104, %p105
      %s108 = sadd.s32 %s107, 1
      %p111 = scmp.eq.s32.totalorder %s21, 1
      %p112 = scmp.ne.s32.totalorder %s107, %s109
      %p113 = scmp.eq.s32.totalorder %s21, 0
      %p114 = por %p112, %p113
      %p115 = scmp.ne.s32.totalorder %s107, %s109
      %p116 = scmp.eq.s32.totalorder %s26, 1
      %p117 = por %p115, %p116
      %p118 = scmp.ne.s32.totalorder %s109, %s110
      %p119 = scmp.eq.s32.totalorder %s26, 0
      %p120 = por %p118, %p119
      %p121 = scmp.ne.s32.totalorder %s109, %s110
      %p122 = scmp.eq.s32.totalorder %s27, 1
      %p123 = por %p121, %p122
      %p125 = scmp.ne.s32.totalorder %s110, %s124
      %p126 = scmp.eq.s32.totalorder %s27, 0
      %p127 = por %p125, %p126
      %s129 = sadd.s32 %s128, 1
      %p132 = scmp.eq.s32.totalorder %s21, 1
      %p133 = scmp.ne.s32.totalorder %s128, %s130
      %p134 = scmp.eq.s32.totalorder %s21, 0
      %p135 = por %p133, %p134
      %p136 = scmp.ne.s32.totalorder %s128, %s130
      %p137 = scmp.eq.s32.totalorder %s26, 1
      %p138 = por %p136, %p137
      %p139 = scmp.ne.s32.totalorder %s130, %s131
      %p140 = scmp.eq.s32.totalorder %s26, 0
      %p141 = por %p139, %p140
      %p142 = scmp.ne.s32.totalorder %s130, %s131
      %p143 = scmp.eq.s32.totalorder %s27, 1
      %p144 = por %p142, %p143
      %p146 = scmp.ne.s32.totalorder %s131, %s145
      %p147 = scmp.eq.s32.totalorder %s27, 0
      %p148 = por %p146, %p147
      %s150 = sadd.s32 %s149, 1
      %p153 = scmp.eq.s32.totalorder %s21, 1
      %p154 = scmp.ne.s32.totalorder %s149, %s151
      %p155 = scmp.eq.s32.totalorder %s21, 0
      %p156 = por %p154, %p155
      %p157 = scmp.ne.s32.totalorder %s149, %s151
      %p158 = scmp.eq.s32.totalorder %s26, 1
      %p159 = por %p157, %p158
      %p160 = scmp.ne.s32.totalorder %s151, %s152
      %p161 = scmp.eq.s32.totalorder %s26, 0
      %p162 = por %p160, %p161
      %p163 = scmp.ne.s32.totalorder %s151, %s152
      %p164 = scmp.eq.s32.totalorder %s27, 1
      %p165 = por %p163, %p164
      %p167 = scmp.ne.s32.totalorder %s152, %s166
      %p168 = scmp.eq.s32.totalorder %s27, 0
      %p169 = por %p167, %p168
      %s170 = ssub.s32 %s21, %s28
      %p171 = scmp.eq.s32.totalorder %s170, 0
      %s173 = sadd.s32 %s172, 1
      %s174 = scalar_select %p171, %s172, %s173
      %p177 = pneg %p171
      %p178 = scmp.eq.s32.totalorder %s21, 1
      %p179 = por %p177, %p178
      %p180 = scmp.ne.s32.totalorder %s172, %s175
      %p181 = scmp.eq.s32.totalorder %s21, 0
      %p182 = por %p180, %p181
      %p183 = scmp.ne.s32.totalorder %s172, %s175
      %p184 = scmp.eq.s32.totalorder %s26, 1
      %p185 = por %p183, %p184
      %p186 = scmp.ne.s32.totalorder %s175, %s176
      %p187 = scmp.eq.s32.totalorder %s26, 0
      %p188 = por %p186, %p187
      %p189 = scmp.ne.s32.totalorder %s175, %s176
      %p190 = scmp.eq.s32.totalorder %s27, 1
      %p191 = por %p189, %p190
      %p193 = scmp.ne.s32.totalorder %s176, %s192
      %p194 = scmp.eq.s32.totalorder %s27, 0
      %p195 = por %p193, %p194
      %p196 = scmp.le.s32.totalorder 1, %s21
      %p197 = scmp.lt.s32.totalorder %s21, 3
      %p198 = pnand %p196, %p197
      %p199 = pneg %p198
      // Predicated region
      $region9: #{tpu_custom_call.1} parent=5 // pred_check
        _
      $region10: #{tpu_custom_call.1} parent=5 // pred_check_branch
        %201 = sbr.rel (%p198) target = $region12
      $region11: #{tpu_custom_call.1} parent=5 // pred_region
        %s202 = ssub.s32 %s21, 1
        // Predicated region
        $region13: #{tpu_custom_call.1} parent=11 // pred_check
          %p203 = pneg %p120
        $region14: #{tpu_custom_call.1} parent=11 // pred_check_branch
          %205 = sbr.rel (%p203) target = $region16
        $region15: #{tpu_custom_call.1} parent=11 // pred_region
          %s207 = ssub.s32 512, 512
          %208 = vsyncadd [#allocation6], %s207
          %s209 = sshll.u32 [#allocation7], 4
          %s210 = int_to_ptr.vmem [resolvable:$true] %s209
          %215 = dma.hbm_to_vmem [thread:$0]  %s3, 512, %s210, [#allocation6], 128, 128, 8
        $region16: #{tpu_custom_call.1} parent=11 // pred_fallthru
          _
        // Predicated region
        $region17: #{tpu_custom_call.1} parent=11 // pred_check
          %p216 = pneg %p141
        $region18: #{tpu_custom_call.1} parent=11 // pred_check_branch
          %218 = sbr.rel (%p216) target = $region20
        $region19: #{tpu_custom_call.1} parent=11 // pred_region
          _
        $region20: #{tpu_custom_call.1} parent=11 // pred_fallthru
          _
        // Predicated region
        $region21: #{tpu_custom_call.1} parent=11 // pred_check
          %p219 = pneg %p162
        $region22: #{tpu_custom_call.1} parent=11 // pred_check_branch
          %221 = sbr.rel (%p219) target = $region24
        $region23: #{tpu_custom_call.1} parent=11 // pred_region
          _
        $region24: #{tpu_custom_call.1} parent=11 // pred_fallthru
          _
      $region12: #{tpu_custom_call.1} parent=5 // pred_fallthru
        _
      %p222 = scmp.lt.s32.totalorder %s21, 2
      // Predicated region
      $region25: #{tpu_custom_call.1} parent=5 // pred_check
        %p223 = pneg %p222
      $region26: #{tpu_custom_call.1} parent=5 // pred_check_branch
        %225 = sbr.rel (%p223) target = $region28
      $region27: #{tpu_custom_call.1} parent=5 // pred_region
        // Predicated region
        $region29: #{tpu_custom_call.1} parent=27 // pred_check
          %p226 = pneg %p41
        $region30: #{tpu_custom_call.1} parent=27 // pred_check_branch
          %228 = sbr.rel (%p226) target = $region32
        $region31: #{tpu_custom_call.1} parent=27 // pred_region
          %s229 = sand.u32 %s31, 1
          %s230 = scalar_lea.sflag [#allocation3], %s229
          %s231 = sand.u32 %s31, 1
          %s232 = smul.addr %s231, 128
          %s233 = scalar_lea.vmem [#allocation2], %s232
          %s234 = smul.u32 8, %s21
          %s236 = ssub.s32 2048, 2048
          %237 = vsyncadd %s230, %s236
          %s238 = smul.addr %s234, 2
          %s239 = smul.addr %s238, 128
          %s240 = scalar_lea.hbm %s0, %s239
          %s241 = sshll.u32 %s233, 4
          %s242 = int_to_ptr.vmem [resolvable:$true] %s241
          %247 = dma.hbm_to_vmem [thread:$0]  %s240, 2048, %s242, %s230, 128, 128, 8
        $region32: #{tpu_custom_call.1} parent=27 // pred_fallthru
          _
        // Predicated region
        $region33: #{tpu_custom_call.1} parent=27 // pred_check
          %p248 = pneg %p67
        $region34: #{tpu_custom_call.1} parent=27 // pred_check_branch
          %250 = sbr.rel (%p248) target = $region36
        $region35: #{tpu_custom_call.1} parent=27 // pred_region
          %s251 = sand.u32 %s21, 1
          %s252 = scalar_lea.sflag [#allocation6], %s251
          %s253 = sand.u32 %s57, 1
          %s254 = smul.addr %s253, 128
          %s255 = scalar_lea.vmem [#allocation5], %s254
          %s256 = smul.u32 8, %s21
          %s258 = ssub.s32 2048, 2048
          %259 = vsyncadd %s252, %s258
          %s260 = smul.addr %s256, 2
          %s261 = smul.addr %s260, 128
          %s262 = scalar_lea.hbm %s1, %s261
          %s263 = sshll.u32 %s255, 4
          %s264 = int_to_ptr.vmem [resolvable:$true] %s263
          %269 = dma.hbm_to_vmem [thread:$0]  %s262, 2048, %s264, %s252, 128, 128, 8
        $region36: #{tpu_custom_call.1} parent=27 // pred_fallthru
          _
        // Predicated region
        $region37: #{tpu_custom_call.1} parent=27 // pred_check
          %p270 = pneg %p93
        $region38: #{tpu_custom_call.1} parent=27 // pred_check_branch
          %272 = sbr.rel (%p270) target = $region40
        $region39: #{tpu_custom_call.1} parent=27 // pred_region
          %p273 = scmp.lt.s32.totalorder %s21, 1
          %s274 = scalar_select %p273, %s21, 1
          %s275 = smul.addr %s274, 8
          %s276 = scalar_lea.vmem %s2, %s275
        $region40: #{tpu_custom_call.1} parent=27 // pred_fallthru
          _
      $region28: #{tpu_custom_call.1} parent=5 // pred_fallthru
        _
      %p277 = scmp.le.s32.totalorder 1, %s21
      %p278 = scmp.lt.s32.totalorder %s21, 3
      %p279 = pnand %p277, %p278
      %p280 = pneg %p279
      // Predicated region
      $region41: #{tpu_custom_call.1} parent=5 // pred_check
        _
      $region42: #{tpu_custom_call.1} parent=5 // pred_check_branch
        %282 = sbr.rel (%p279) target = $region44
      $region43: #{tpu_custom_call.1} parent=5 // pred_region
        %s283 = ssub.s32 %s21, 1
        %s284 = sand.u32 %s34, 1
        %s285 = scalar_lea.sflag [#allocation3], %s284
        %s286 = sand.u32 %s34, 1
        %s287 = smul.addr %s286, 128
        %s288 = scalar_lea.vmem [#allocation2], %s287
        // Predicated region
        $region45: #{tpu_custom_call.1} parent=43 // pred_check
          %p289 = pneg %p47
        $region46: #{tpu_custom_call.1} parent=43 // pred_check_branch
          %291 = sbr.rel (%p289) target = $region48
        $region47: #{tpu_custom_call.1} parent=43 // pred_region
          %292 = dma.done %s285, 2048
        $region48: #{tpu_custom_call.1} parent=43 // pred_fallthru
          _
        %s293 = sand.u32 %s26, 1
        %s294 = scalar_lea.sflag [#allocation6], %s293
        %s295 = sand.u32 %s60, 1
        %s296 = smul.addr %s295, 128
        %s297 = scalar_lea.vmem [#allocation5], %s296
        // Predicated region
        $region49: #{tpu_custom_call.1} parent=43 // pred_check
          %p298 = pneg %p73
        $region50: #{tpu_custom_call.1} parent=43 // pred_check_branch
          %300 = sbr.rel (%p298) target = $region52
        $region51: #{tpu_custom_call.1} parent=43 // pred_region
          %301 = dma.done %s294, 2048
        $region52: #{tpu_custom_call.1} parent=43 // pred_fallthru
          _
        // Predicated region
        $region53: #{tpu_custom_call.1} parent=43 // pred_check
          %p302 = pneg %p120
        $region54: #{tpu_custom_call.1} parent=43 // pred_check_branch
          %304 = sbr.rel (%p302) target = $region56
        $region55: #{tpu_custom_call.1} parent=43 // pred_region
          %305 = dma.done [#allocation6], 512
        $region56: #{tpu_custom_call.1} parent=43 // pred_fallthru
          _
        %s306 = sand.u32 %s34, 1
        %s307 = scalar_lea.sflag [#allocation3], %s306
        %s308 = sand.u32 %s34, 1
        %s309 = smul.addr %s308, 128
        %s310 = scalar_lea.vmem [#allocation2], %s309
        %p311 = pneg %p47
        %p312 = pneg %p44
        %s313 = sand.u32 %s26, 1
        %s314 = scalar_lea.sflag [#allocation6], %s313
        %s315 = sand.u32 %s60, 1
        %s316 = smul.addr %s315, 128
        %s317 = scalar_lea.vmem [#allocation5], %s316
        %p318 = pneg %p73
        %p319 = pneg %p70
        %p320 = scmp.lt.s32.totalorder %s26, 1
        %s321 = scalar_select %p320, %s26, 1
        %s322 = smul.addr %s321, 8
        %s323 = scalar_lea.vmem %s2, %s322
        %p324 = pneg %p99
        %p325 = pneg %p96
        %p326 = pneg %p120
        %p327 = pneg %p117
        %p328 = pneg %p141
        %p329 = pneg %p138
        %p330 = pneg %p162
        %p331 = pneg %p159
        %p332 = pneg %p188
        %p333 = pneg %p185
        %s334 = sand.u32 %s175, 1
        %s335 = scalar_lea.sflag [#allocation4], %s334
        %s336 = sand.u32 %s175, 1
        %s337 = smul.addr %s336, 8
        %s338 = scalar_lea.vmem [#allocation8], %s337
        %s339 = smul.u32 8, %s26
        %s340 = smul.u32 8, %s26
        %p341 = scmp.lt.s32.totalorder %s26, 1
        %s342 = scalar_select %p341, %s26, 1
        %s343 = smul.addr %s342, 8
        %s344 = scalar_lea.vmem %s2, %s343
        %v345 = vld [vmem:[#allocation7] sm:$0xff]
        %v346 = vld [vmem:[#allocation7 + $0x8] sm:$0xff]
        %v347 = vld [vmem:[#allocation7 + $0x10] sm:$0xff]
        %v348 = vld [vmem:[#allocation7 + $0x18] sm:$0xff]
        %v349 = vld [vmem:[%s4] sm:$0x1]
        %v350 = vld [vmem:[%s5] sm:$0x1]
        %v351 = vlaneseq
        %v352 = vand.u32 %v351, 127
        %v353 = vld [vmem:[%s288] sm:$0xff]
        %v354 = vld [vmem:[%s288 + $0x8] sm:$0xff]
        %v355 = vld [vmem:[%s288 + $0x10] sm:$0xff]
        %v356 = vld [vmem:[%s288 + $0x18] sm:$0xff]
        %v357 = vld [vmem:[%s288 + $0x20] sm:$0xff]
        %v358 = vld [vmem:[%s288 + $0x28] sm:$0xff]
        %v359 = vld [vmem:[%s288 + $0x30] sm:$0xff]
        %v360 = vld [vmem:[%s288 + $0x38] sm:$0xff]
        %v361 = vld [vmem:[%s288 + $0x40] sm:$0xff]
        %v362 = vld [vmem:[%s288 + $0x48] sm:$0xff]
        %v363 = vld [vmem:[%s288 + $0x50] sm:$0xff]
        %v364 = vld [vmem:[%s288 + $0x58] sm:$0xff]
        %v365 = vld [vmem:[%s288 + $0x60] sm:$0xff]
        %v366 = vld [vmem:[%s288 + $0x68] sm:$0xff]
        %v367 = vld [vmem:[%s288 + $0x70] sm:$0xff]
        %v368 = vld [vmem:[%s288 + $0x78] sm:$0xff]
        %v369 = vld [vmem:[%s297] sm:$0xff]
        %v370 = vld [vmem:[%s297 + $0x8] sm:$0xff]
        %v371 = vld [vmem:[%s297 + $0x10] sm:$0xff]
        %v372 = vld [vmem:[%s297 + $0x18] sm:$0xff]
        %v373 = vld [vmem:[%s297 + $0x20] sm:$0xff]
        %v374 = vld [vmem:[%s297 + $0x28] sm:$0xff]
        %v375 = vld [vmem:[%s297 + $0x30] sm:$0xff]
        %v376 = vld [vmem:[%s297 + $0x38] sm:$0xff]
        %v377 = vld [vmem:[%s297 + $0x40] sm:$0xff]
        %v378 = vld [vmem:[%s297 + $0x48] sm:$0xff]
        %v379 = vld [vmem:[%s297 + $0x50] sm:$0xff]
        %v380 = vld [vmem:[%s297 + $0x58] sm:$0xff]
        %v381 = vld [vmem:[%s297 + $0x60] sm:$0xff]
        %v382 = vld [vmem:[%s297 + $0x68] sm:$0xff]
        %v383 = vld [vmem:[%s297 + $0x70] sm:$0xff]
        %v384 = vld [vmem:[%s297 + $0x78] sm:$0xff]
        %v385 = vmul.f32 %v353, %v353
        %v386 = vmul.f32 %v354, %v354
        %v387 = vmul.f32 %v355, %v355
        %v388 = vmul.f32 %v356, %v356
        %v389 = vmul.f32 %v357, %v357
        %v390 = vmul.f32 %v358, %v358
        %v391 = vmul.f32 %v359, %v359
        %v392 = vmul.f32 %v360, %v360
        %v393 = vmul.f32 %v361, %v361
        %v394 = vmul.f32 %v362, %v362
        %v395 = vmul.f32 %v363, %v363
        %v396 = vmul.f32 %v364, %v364
        %v397 = vmul.f32 %v365, %v365
        %v398 = vmul.f32 %v366, %v366
        %v399 = vmul.f32 %v367, %v367
        %v400 = vmul.f32 %v368, %v368
        %vm401 = vcmask 261120
        %v402 = vsel %vm401, %v385, 0.0
        %403 = vadd.xlane.f32.xlu0 %v402
        %v404 = vpop.xlane.xlu0 %403
        %v405 = vsel %vm401, %v386, 0.0
        %406 = vadd.xlane.f32.xlu0 %v405
        %v407 = vpop.xlane.xlu0 %406
        %v408 = vsel %vm401, %v387, 0.0
        %409 = vadd.xlane.f32.xlu0 %v408
        %v410 = vpop.xlane.xlu0 %409
        %v411 = vsel %vm401, %v388, 0.0
        %412 = vadd.xlane.f32.xlu0 %v411
        %v413 = vpop.xlane.xlu0 %412
        %v414 = vsel %vm401, %v389, 0.0
        %415 = vadd.xlane.f32.xlu0 %v414
        %v416 = vpop.xlane.xlu0 %415
        %v417 = vsel %vm401, %v390, 0.0
        %418 = vadd.xlane.f32.xlu0 %v417
        %v419 = vpop.xlane.xlu0 %418
        %v420 = vsel %vm401, %v391, 0.0
        %421 = vadd.xlane.f32.xlu0 %v420
        %v422 = vpop.xlane.xlu0 %421
        %v423 = vsel %vm401, %v392, 0.0
        %424 = vadd.xlane.f32.xlu0 %v423
        %v425 = vpop.xlane.xlu0 %424
        %v426 = vsel %vm401, %v393, 0.0
        %427 = vadd.xlane.f32.xlu0 %v426
        %v428 = vpop.xlane.xlu0 %427
        %v429 = vsel %vm401, %v394, 0.0
        %430 = vadd.xlane.f32.xlu0 %v429
        %v431 = vpop.xlane.xlu0 %430
        %v432 = vsel %vm401, %v395, 0.0
        %433 = vadd.xlane.f32.xlu0 %v432
        %v434 = vpop.xlane.xlu0 %433
        %v435 = vsel %vm401, %v396, 0.0
        %436 = vadd.xlane.f32.xlu0 %v435
        %v437 = vpop.xlane.xlu0 %436
        %v438 = vsel %vm401, %v397, 0.0
        %439 = vadd.xlane.f32.xlu0 %v438
        %v440 = vpop.xlane.xlu0 %439
        %v441 = vsel %vm401, %v398, 0.0
        %442 = vadd.xlane.f32.xlu0 %v441
        %v443 = vpop.xlane.xlu0 %442
        %v444 = vsel %vm401, %v399, 0.0
        %445 = vadd.xlane.f32.xlu0 %v444
        %v446 = vpop.xlane.xlu0 %445
        %v447 = vsel %vm401, %v400, 0.0
        %448 = vadd.xlane.f32.xlu0 %v447
        %v449 = vpop.xlane.xlu0 %448
        %v450 = vadd.f32 %v404, 1e-24
        %v451 = vadd.f32 %v407, 1e-24
        %v452 = vadd.f32 %v410, 1e-24
        %v453 = vadd.f32 %v413, 1e-24
        %v454 = vadd.f32 %v416, 1e-24
        %v455 = vadd.f32 %v419, 1e-24
        %v456 = vadd.f32 %v422, 1e-24
        %v457 = vadd.f32 %v425, 1e-24
        %v458 = vadd.f32 %v428, 1e-24
        %v459 = vadd.f32 %v431, 1e-24
        %v460 = vadd.f32 %v434, 1e-24
        %v461 = vadd.f32 %v437, 1e-24
        %v462 = vadd.f32 %v440, 1e-24
        %v463 = vadd.f32 %v443, 1e-24
        %v464 = vadd.f32 %v446, 1e-24
        %v465 = vadd.f32 %v449, 1e-24
        %v466 = vrsqrt.pop %v450
        %v467 = vrsqrt.pop %v451
        %v468 = vrsqrt.pop %v452
        %v469 = vrsqrt.pop %v453
        %v470 = vrsqrt.pop %v454
        %v471 = vrsqrt.pop %v455
        %v472 = vrsqrt.pop %v456
        %v473 = vrsqrt.pop %v457
        %v474 = vrsqrt.pop %v458
        %v475 = vrsqrt.pop %v459
        %v476 = vrsqrt.pop %v460
        %v477 = vrsqrt.pop %v461
        %v478 = vrsqrt.pop %v462
        %v479 = vrsqrt.pop %v463
        %v480 = vrsqrt.pop %v464
        %v481 = vrsqrt.pop %v465
        %v482 = vmul.f32 %v353, %v466
        %v483 = vmul.f32 %v354, %v467
        %v484 = vmul.f32 %v355, %v468
        %v485 = vmul.f32 %v356, %v469
        %v486 = vmul.f32 %v357, %v470
        %v487 = vmul.f32 %v358, %v471
        %v488 = vmul.f32 %v359, %v472
        %v489 = vmul.f32 %v360, %v473
        %v490 = vmul.f32 %v361, %v474
        %v491 = vmul.f32 %v362, %v475
        %v492 = vmul.f32 %v363, %v476
        %v493 = vmul.f32 %v364, %v477
        %v494 = vmul.f32 %v365, %v478
        %v495 = vmul.f32 %v366, %v479
        %v496 = vmul.f32 %v367, %v480
        %v497 = vmul.f32 %v368, %v481
        %v498 = vmul.f32 %v369, %v369
        %v499 = vmul.f32 %v370, %v370
        %v500 = vmul.f32 %v371, %v371
        %v501 = vmul.f32 %v372, %v372
        %v502 = vmul.f32 %v373, %v373
        %v503 = vmul.f32 %v374, %v374
        %v504 = vmul.f32 %v375, %v375
        %v505 = vmul.f32 %v376, %v376
        %v506 = vmul.f32 %v377, %v377
        %v507 = vmul.f32 %v378, %v378
        %v508 = vmul.f32 %v379, %v379
        %v509 = vmul.f32 %v380, %v380
        %v510 = vmul.f32 %v381, %v381
        %v511 = vmul.f32 %v382, %v382
        %v512 = vmul.f32 %v383, %v383
        %v513 = vmul.f32 %v384, %v384
        %v514 = vsel %vm401, %v498, 0.0
        %515 = vadd.xlane.f32.xlu0 %v514
        %v516 = vpop.xlane.xlu0 %515
        %v517 = vsel %vm401, %v499, 0.0
        %518 = vadd.xlane.f32.xlu0 %v517
        %v519 = vpop.xlane.xlu0 %518
        %v520 = vsel %vm401, %v500, 0.0
        %521 = vadd.xlane.f32.xlu0 %v520
        %v522 = vpop.xlane.xlu0 %521
        %v523 = vsel %vm401, %v501, 0.0
        %524 = vadd.xlane.f32.xlu0 %v523
        %v525 = vpop.xlane.xlu0 %524
        %v526 = vsel %vm401, %v502, 0.0
        %527 = vadd.xlane.f32.xlu0 %v526
        %v528 = vpop.xlane.xlu0 %527
        %v529 = vsel %vm401, %v503, 0.0
        %530 = vadd.xlane.f32.xlu0 %v529
        %v531 = vpop.xlane.xlu0 %530
        %v532 = vsel %vm401, %v504, 0.0
        %533 = vadd.xlane.f32.xlu0 %v532
        %v534 = vpop.xlane.xlu0 %533
        %v535 = vsel %vm401, %v505, 0.0
        %536 = vadd.xlane.f32.xlu0 %v535
        %v537 = vpop.xlane.xlu0 %536
        %v538 = vsel %vm401, %v506, 0.0
        %539 = vadd.xlane.f32.xlu0 %v538
        %v540 = vpop.xlane.xlu0 %539
        %v541 = vsel %vm401, %v507, 0.0
        %542 = vadd.xlane.f32.xlu0 %v541
        %v543 = vpop.xlane.xlu0 %542
        %v544 = vsel %vm401, %v508, 0.0
        %545 = vadd.xlane.f32.xlu0 %v544
        %v546 = vpop.xlane.xlu0 %545
        %v547 = vsel %vm401, %v509, 0.0
        %548 = vadd.xlane.f32.xlu0 %v547
        %v549 = vpop.xlane.xlu0 %548
        %v550 = vsel %vm401, %v510, 0.0
        %551 = vadd.xlane.f32.xlu0 %v550
        %v552 = vpop.xlane.xlu0 %551
        %v553 = vsel %vm401, %v511, 0.0
        %554 = vadd.xlane.f32.xlu0 %v553
        %v555 = vpop.xlane.xlu0 %554
        %v556 = vsel %vm401, %v512, 0.0
        %557 = vadd.xlane.f32.xlu0 %v556
        %v558 = vpop.xlane.xlu0 %557
        %v559 = vsel %vm401, %v513, 0.0
        %560 = vadd.xlane.f32.xlu0 %v559
        %v561 = vpop.xlane.xlu0 %560
        %v562 = vadd.f32 %v516, 1e-24
        %v563 = vadd.f32 %v519, 1e-24
        %v564 = vadd.f32 %v522, 1e-24
        %v565 = vadd.f32 %v525, 1e-24
        %v566 = vadd.f32 %v528, 1e-24
        %v567 = vadd.f32 %v531, 1e-24
        %v568 = vadd.f32 %v534, 1e-24
        %v569 = vadd.f32 %v537, 1e-24
        %v570 = vadd.f32 %v540, 1e-24
        %v571 = vadd.f32 %v543, 1e-24
        %v572 = vadd.f32 %v546, 1e-24
        %v573 = vadd.f32 %v549, 1e-24
        %v574 = vadd.f32 %v552, 1e-24
        %v575 = vadd.f32 %v555, 1e-24
        %v576 = vadd.f32 %v558, 1e-24
        %v577 = vadd.f32 %v561, 1e-24
        %v578 = vrsqrt.pop %v562
        %v579 = vrsqrt.pop %v563
        %v580 = vrsqrt.pop %v564
        %v581 = vrsqrt.pop %v565
        %v582 = vrsqrt.pop %v566
        %v583 = vrsqrt.pop %v567
        %v584 = vrsqrt.pop %v568
        %v585 = vrsqrt.pop %v569
        %v586 = vrsqrt.pop %v570
        %v587 = vrsqrt.pop %v571
        %v588 = vrsqrt.pop %v572
        %v589 = vrsqrt.pop %v573
        %v590 = vrsqrt.pop %v574
        %v591 = vrsqrt.pop %v575
        %v592 = vrsqrt.pop %v576
        %v593 = vrsqrt.pop %v577
        %v594 = vmul.f32 %v369, %v578
        %v595 = vmul.f32 %v370, %v579
        %v596 = vmul.f32 %v371, %v580
        %v597 = vmul.f32 %v372, %v581
        %v598 = vmul.f32 %v373, %v582
        %v599 = vmul.f32 %v374, %v583
        %v600 = vmul.f32 %v375, %v584
        %v601 = vmul.f32 %v376, %v585
        %v602 = vmul.f32 %v377, %v586
        %v603 = vmul.f32 %v378, %v587
        %v604 = vmul.f32 %v379, %v588
        %v605 = vmul.f32 %v380, %v589
        %v606 = vmul.f32 %v381, %v590
        %v607 = vmul.f32 %v382, %v591
        %v608 = vmul.f32 %v383, %v592
        %v609 = vmul.f32 %v384, %v593
        %v611 = vsel %vm401, %v482, 0
        %v614 = vsel %vm401, %v483, 0
        %v617 = vsel %vm401, %v594, 0
        %v620 = vsel %vm401, %v595, 0
        %622 = vmatprep.subr.mxu0 0.0
        %623 = vmatpush1.xpose.msra.mxu0 %v617
        %624 = vmatprep.subr.mxu0 0.0
        %625 = vmatpush1.xpose.msra.mxu0 %v620
        %626 = vmatprep.subr.mxu0 0.0
        %627 = vmatpush1.xpose.msra.mxu0 0.0
        %628 = vmatprep.subr.mxu0 0.0
        %629 = vmatpush1.xpose.msra.mxu0 0.0
        %630 = vmatprep.subr.mxu0 0.0
        %631 = vmatpush1.xpose.msra.mxu0 0.0
        %632 = vmatprep.subr.mxu0 0.0
        %633 = vmatpush1.xpose.msra.mxu0 0.0
        %634 = vmatprep.subr.mxu0 0.0
        %635 = vmatpush1.xpose.msra.mxu0 0.0
        %636 = vmatprep.subr.mxu0 0.0
        %637 = vmatpush1.xpose.msra.mxu0 0.0
        %638 = vmatprep.subr.mxu0 0.0
        %639 = vmatpush1.xpose.msra.mxu0 0.0
        %640 = vmatprep.subr.mxu0 0.0
        %641 = vmatpush1.xpose.msra.mxu0 0.0
        %642 = vmatprep.subr.mxu0 0.0
        %643 = vmatpush1.xpose.msra.mxu0 0.0
        %644 = vmatprep.subr.mxu0 0.0
        %645 = vmatpush1.xpose.msra.mxu0 0.0
        %646 = vmatprep.subr.mxu0 0.0
        %647 = vmatpush1.xpose.msra.mxu0 0.0
        %648 = vmatprep.subr.mxu0 0.0
        %649 = vmatpush1.xpose.msra.mxu0 0.0
        %650 = vmatprep.subr.mxu0 0.0
        %651 = vmatpush1.xpose.msra.mxu0 0.0
        %652 = vmatprep.subr.mxu0 0.0
        %653 = vmatpush1.xpose.msra.mxu0 0.0
        %654 = vmatprep.subr.mxu0 0.0
        %655 = vmatpush1.xpose.msra.mxu0 0.0
        %656 = vmatprep.subr.mxu0 0.0
        %657 = vmatpush1.xpose.msra.mxu0 0.0
        %658 = vmatprep.subr.mxu0 0.0
        %659 = vmatpush1.xpose.msra.mxu0 0.0
        %660 = vmatprep.subr.mxu0 0.0
        %661 = vmatpush1.xpose.msra.mxu0 0.0
        %662 = vmatprep.subr.mxu0 0.0
        %663 = vmatpush1.xpose.msra.mxu0 0.0
        %664 = vmatprep.subr.mxu0 0.0
        %665 = vmatpush1.xpose.msra.mxu0 0.0
        %666 = vmatprep.subr.mxu0 0.0
        %667 = vmatpush1.xpose.msra.mxu0 0.0
        %668 = vmatprep.subr.mxu0 0.0
        %669 = vmatpush1.xpose.msra.mxu0 0.0
        %670 = vmatprep.subr.mxu0 0.0
        %671 = vmatpush1.xpose.msra.mxu0 0.0
        %672 = vmatprep.subr.mxu0 0.0
        %673 = vmatpush1.xpose.msra.mxu0 0.0
        %674 = vmatprep.subr.mxu0 0.0
        %675 = vmatpush1.xpose.msra.mxu0 0.0
        %676 = vmatprep.subr.mxu0 0.0
        %677 = vmatpush1.xpose.msra.mxu0 0.0
        %678 = vmatprep.subr.mxu0 0.0
        %679 = vmatpush1.xpose.msra.mxu0 0.0
        %680 = vmatprep.subr.mxu0 0.0
        %681 = vmatpush1.xpose.msra.mxu0 0.0
        %682 = vmatprep.subr.mxu0 0.0
        %683 = vmatpush1.xpose.msra.mxu0 0.0
        %684 = vmatprep.subr.mxu0 0.0
        %685 = vmatpush1.xpose.msra.mxu0 0.0
        %686 = vmatprep.mubr.f32.mxu0 0.0
        %687 = vmatmul.mubr.f32.gmra.mrb[0].mxu0 %v611
        %v688 = vpop.f32.mrb[0].mxu0
        %v689 = vadd.f32 0.0, %v688
        %v690 = vpop.f32.mrb[0].mxu0
        %691 = vmatprep.mubr.f32.mxu0 0.0
        %692 = vmatmul.mubr.f32.gmra.mrb[0].mxu0 %v614
        %v693 = vpop.f32.mrb[0].mxu0
        %v694 = vadd.f32 0.0, %v693
        %v695 = vpop.f32.mrb[0].mxu0
        %696 = vdwg.mxu0
        %v698 = vsel %vm401, %v484, 0
        %v701 = vsel %vm401, %v485, 0
        %v704 = vsel %vm401, %v596, 0
        %v707 = vsel %vm401, %v597, 0
        %709 = vmatprep.subr.mxu0 0.0
        %710 = vmatpush1.xpose.msra.mxu0 %v704
        %711 = vmatprep.subr.mxu0 0.0
        %712 = vmatpush1.xpose.msra.mxu0 %v707
        %713 = vmatprep.subr.mxu0 0.0
        %714 = vmatpush1.xpose.msra.mxu0 0.0
        %715 = vmatprep.subr.mxu0 0.0
        %716 = vmatpush1.xpose.msra.mxu0 0.0
        %717 = vmatprep.subr.mxu0 0.0
        %718 = vmatpush1.xpose.msra.mxu0 0.0
        %719 = vmatprep.subr.mxu0 0.0
        %720 = vmatpush1.xpose.msra.mxu0 0.0
        %721 = vmatprep.subr.mxu0 0.0
        %722 = vmatpush1.xpose.msra.mxu0 0.0
        %723 = vmatprep.subr.mxu0 0.0
        %724 = vmatpush1.xpose.msra.mxu0 0.0
        %725 = vmatprep.subr.mxu0 0.0
        %726 = vmatpush1.xpose.msra.mxu0 0.0
        %727 = vmatprep.subr.mxu0 0.0
        %728 = vmatpush1.xpose.msra.mxu0 0.0
        %729 = vmatprep.subr.mxu0 0.0
        %730 = vmatpush1.xpose.msra.mxu0 0.0
        %731 = vmatprep.subr.mxu0 0.0
        %732 = vmatpush1.xpose.msra.mxu0 0.0
        %733 = vmatprep.subr.mxu0 0.0
        %734 = vmatpush1.xpose.msra.mxu0 0.0
        %735 = vmatprep.subr.mxu0 0.0
        %736 = vmatpush1.xpose.msra.mxu0 0.0
        %737 = vmatprep.subr.mxu0 0.0
        %738 = vmatpush1.xpose.msra.mxu0 0.0
        %739 = vmatprep.subr.mxu0 0.0
        %740 = vmatpush1.xpose.msra.mxu0 0.0
        %741 = vmatprep.subr.mxu0 0.0
        %742 = vmatpush1.xpose.msra.mxu0 0.0
        %743 = vmatprep.subr.mxu0 0.0
        %744 = vmatpush1.xpose.msra.mxu0 0.0
        %745 = vmatprep.subr.mxu0 0.0
        %746 = vmatpush1.xpose.msra.mxu0 0.0
        %747 = vmatprep.subr.mxu0 0.0
        %748 = vmatpush1.xpose.msra.mxu0 0.0
        %749 = vmatprep.subr.mxu0 0.0
        %750 = vmatpush1.xpose.msra.mxu0 0.0
        %751 = vmatprep.subr.mxu0 0.0
        %752 = vmatpush1.xpose.msra.mxu0 0.0
        %753 = vmatprep.subr.mxu0 0.0
        %754 = vmatpush1.xpose.msra.mxu0 0.0
        %755 = vmatprep.subr.mxu0 0.0
        %756 = vmatpush1.xpose.msra.mxu0 0.0
        %757 = vmatprep.subr.mxu0 0.0
        %758 = vmatpush1.xpose.msra.mxu0 0.0
        %759 = vmatprep.subr.mxu0 0.0
        %760 = vmatpush1.xpose.msra.mxu0 0.0
        %761 = vmatprep.subr.mxu0 0.0
        %762 = vmatpush1.xpose.msra.mxu0 0.0
        %763 = vmatprep.subr.mxu0 0.0
        %764 = vmatpush1.xpose.msra.mxu0 0.0
        %765 = vmatprep.subr.mxu0 0.0
        %766 = vmatpush1.xpose.msra.mxu0 0.0
        %767 = vmatprep.subr.mxu0 0.0
        %768 = vmatpush1.xpose.msra.mxu0 0.0
        %769 = vmatprep.subr.mxu0 0.0
        %770 = vmatpush1.xpose.msra.mxu0 0.0
        %771 = vmatprep.subr.mxu0 0.0
        %772 = vmatpush1.xpose.msra.mxu0 0.0
        %773 = vmatprep.mubr.f32.mxu0 0.0
        %774 = vmatmul.mubr.f32.gmra.mrb[0].mxu0 %v698
        %v775 = vpop.f32.mrb[0].mxu0
        %v776 = vadd.f32 0.0, %v775
        %v777 = vpop.f32.mrb[0].mxu0
        %778 = vmatprep.mubr.f32.mxu0 0.0
        %779 = vmatmul.mubr.f32.gmra.mrb[0].mxu0 %v701
        %v780 = vpop.f32.mrb[0].mxu0
        %v781 = vadd.f32 0.0, %v780
        %v782 = vpop.f32.mrb[0].mxu0
        %783 = vdwg.mxu0
        %v785 = vsel %vm401, %v486, 0
        %v788 = vsel %vm401, %v487, 0
        %v791 = vsel %vm401, %v598, 0
        %v794 = vsel %vm401, %v599, 0
        %796 = vmatprep.subr.mxu0 0.0
        %797 = vmatpush1.xpose.msra.mxu0 %v791
        %798 = vmatprep.subr.mxu0 0.0
        %799 = vmatpush1.xpose.msra.mxu0 %v794
        %800 = vmatprep.subr.mxu0 0.0
        %801 = vmatpush1.xpose.msra.mxu0 0.0
        %802 = vmatprep.subr.mxu0 0.0
        %803 = vmatpush1.xpose.msra.mxu0 0.0
        %804 = vmatprep.subr.mxu0 0.0
        %805 = vmatpush1.xpose.msra.mxu0 0.0
        %806 = vmatprep.subr.mxu0 0.0
        %807 = vmatpush1.xpose.msra.mxu0 0.0
        %808 = vmatprep.subr.mxu0 0.0
        %809 = vmatpush1.xpose.msra.mxu0 0.0
        %810 = vmatprep.subr.mxu0 0.0
        %811 = vmatpush1.xpose.msra.mxu0 0.0
        %812 = vmatprep.subr.mxu0 0.0
        %813 = vmatpush1.xpose.msra.mxu0 0.0
        %814 = vmatprep.subr.mxu0 0.0
        %815 = vmatpush1.xpose.msra.mxu0 0.0
        %816 = vmatprep.subr.mxu0 0.0
        %817 = vmatpush1.xpose.msra.mxu0 0.0
        %818 = vmatprep.subr.mxu0 0.0
        %819 = vmatpush1.xpose.msra.mxu0 0.0
        %820 = vmatprep.subr.mxu0 0.0
        %821 = vmatpush1.xpose.msra.mxu0 0.0
        %822 = vmatprep.subr.mxu0 0.0
        %823 = vmatpush1.xpose.msra.mxu0 0.0
        %824 = vmatprep.subr.mxu0 0.0
        %825 = vmatpush1.xpose.msra.mxu0 0.0
        %826 = vmatprep.subr.mxu0 0.0
        %827 = vmatpush1.xpose.msra.mxu0 0.0
        %828 = vmatprep.subr.mxu0 0.0
        %829 = vmatpush1.xpose.msra.mxu0 0.0
        %830 = vmatprep.subr.mxu0 0.0
        %831 = vmatpush1.xpose.msra.mxu0 0.0
        %832 = vmatprep.subr.mxu0 0.0
        %833 = vmatpush1.xpose.msra.mxu0 0.0
        %834 = vmatprep.subr.mxu0 0.0
        %835 = vmatpush1.xpose.msra.mxu0 0.0
        %836 = vmatprep.subr.mxu0 0.0
        %837 = vmatpush1.xpose.msra.mxu0 0.0
        %838 = vmatprep.subr.mxu0 0.0
        %839 = vmatpush1.xpose.msra.mxu0 0.0
        %840 = vmatprep.subr.mxu0 0.0
        %841 = vmatpush1.xpose.msra.mxu0 0.0
        %842 = vmatprep.subr.mxu0 0.0
        %843 = vmatpush1.xpose.msra.mxu0 0.0
        %844 = vmatprep.subr.mxu0 0.0
        %845 = vmatpush1.xpose.msra.mxu0 0.0
        %846 = vmatprep.subr.mxu0 0.0
        %847 = vmatpush1.xpose.msra.mxu0 0.0
        %848 = vmatprep.subr.mxu0 0.0
        %849 = vmatpush1.xpose.msra.mxu0 0.0
        %850 = vmatprep.subr.mxu0 0.0
        %851 = vmatpush1.xpose.msra.mxu0 0.0
        %852 = vmatprep.subr.mxu0 0.0
        %853 = vmatpush1.xpose.msra.mxu0 0.0
        %854 = vmatprep.subr.mxu0 0.0
        %855 = vmatpush1.xpose.msra.mxu0 0.0
        %856 = vmatprep.subr.mxu0 0.0
        %857 = vmatpush1.xpose.msra.mxu0 0.0
        %858 = vmatprep.subr.mxu0 0.0
        %859 = vmatpush1.xpose.msra.mxu0 0.0
        %860 = vmatprep.mubr.f32.mxu0 0.0
        %861 = vmatmul.mubr.f32.gmra.mrb[0].mxu0 %v785
        %v862 = vpop.f32.mrb[0].mxu0
        %v863 = vadd.f32 0.0, %v862
        %v864 = vpop.f32.mrb[0].mxu0
        %865 = vmatprep.mubr.f32.mxu0 0.0
        %866 = vmatmul.mubr.f32.gmra.mrb[0].mxu0 %v788
        %v867 = vpop.f32.mrb[0].mxu0
        %v868 = vadd.f32 0.0, %v867
        %v869 = vpop.f32.mrb[0].mxu0
        %870 = vdwg.mxu0
        %v872 = vsel %vm401, %v488, 0
        %v875 = vsel %vm401, %v489, 0
        %v878 = vsel %vm401, %v600, 0
        %v881 = vsel %vm401, %v601, 0
        %883 = vmatprep.subr.mxu0 0.0
        %884 = vmatpush1.xpose.msra.mxu0 %v878
        %885 = vmatprep.subr.mxu0 0.0
        %886 = vmatpush1.xpose.msra.mxu0 %v881
        %887 = vmatprep.subr.mxu0 0.0
        %888 = vmatpush1.xpose.msra.mxu0 0.0
        %889 = vmatprep.subr.mxu0 0.0
        %890 = vmatpush1.xpose.msra.mxu0 0.0
        %891 = vmatprep.subr.mxu0 0.0
        %892 = vmatpush1.xpose.msra.mxu0 0.0
        %893 = vmatprep.subr.mxu0 0.0
        %894 = vmatpush1.xpose.msra.mxu0 0.0
        %895 = vmatprep.subr.mxu0 0.0
        %896 = vmatpush1.xpose.msra.mxu0 0.0
        %897 = vmatprep.subr.mxu0 0.0
        %898 = vmatpush1.xpose.msra.mxu0 0.0
        %899 = vmatprep.subr.mxu0 0.0
        %900 = vmatpush1.xpose.msra.mxu0 0.0
        %901 = vmatprep.subr.mxu0 0.0
        %902 = vmatpush1.xpose.msra.mxu0 0.0
        %903 = vmatprep.subr.mxu0 0.0
        %904 = vmatpush1.xpose.msra.mxu0 0.0
        %905 = vmatprep.subr.mxu0 0.0
        %906 = vmatpush1.xpose.msra.mxu0 0.0
        %907 = vmatprep.subr.mxu0 0.0
        %908 = vmatpush1.xpose.msra.mxu0 0.0
        %909 = vmatprep.subr.mxu0 0.0
        %910 = vmatpush1.xpose.msra.mxu0 0.0
        %911 = vmatprep.subr.mxu0 0.0
        %912 = vmatpush1.xpose.msra.mxu0 0.0
        %913 = vmatprep.subr.mxu0 0.0
        %914 = vmatpush1.xpose.msra.mxu0 0.0
        %915 = vmatprep.subr.mxu0 0.0
        %916 = vmatpush1.xpose.msra.mxu0 0.0
        %917 = vmatprep.subr.mxu0 0.0
        %918 = vmatpush1.xpose.msra.mxu0 0.0
        %919 = vmatprep.subr.mxu0 0.0
        %920 = vmatpush1.xpose.msra.mxu0 0.0
        %921 = vmatprep.subr.mxu0 0.0
        %922 = vmatpush1.xpose.msra.mxu0 0.0
        %923 = vmatprep.subr.mxu0 0.0
        %924 = vmatpush1.xpose.msra.mxu0 0.0
        %925 = vmatprep.subr.mxu0 0.0
        %926 = vmatpush1.xpose.msra.mxu0 0.0
        %927 = vmatprep.subr.mxu0 0.0
        %928 = vmatpush1.xpose.msra.mxu0 0.0
        %929 = vmatprep.subr.mxu0 0.0
        %930 = vmatpush1.xpose.msra.mxu0 0.0
        %931 = vmatprep.subr.mxu0 0.0
        %932 = vmatpush1.xpose.msra.mxu0 0.0
        %933 = vmatprep.subr.mxu0 0.0
        %934 = vmatpush1.xpose.msra.mxu0 0.0
        %935 = vmatprep.subr.mxu0 0.0
        %936 = vmatpush1.xpose.msra.mxu0 0.0
        %937 = vmatprep.subr.mxu0 0.0
        %938 = vmatpush1.xpose.msra.mxu0 0.0
        %939 = vmatprep.subr.mxu0 0.0
        %940 = vmatpush1.xpose.msra.mxu0 0.0
        %941 = vmatprep.subr.mxu0 0.0
        %942 = vmatpush1.xpose.msra.mxu0 0.0
        %943 = vmatprep.subr.mxu0 0.0
        %944 = vmatpush1.xpose.msra.mxu0 0.0
        %945 = vmatprep.subr.mxu0 0.0
        %946 = vmatpush1.xpose.msra.mxu0 0.0
        %947 = vmatprep.mubr.f32.mxu0 0.0
        %948 = vmatmul.mubr.f32.gmra.mrb[0].mxu0 %v872
        %v949 = vpop.f32.mrb[0].mxu0
        %v950 = vadd.f32 0.0, %v949
        %v951 = vpop.f32.mrb[0].mxu0
        %952 = vmatprep.mubr.f32.mxu0 0.0
        %953 = vmatmul.mubr.f32.gmra.mrb[0].mxu0 %v875
        %v954 = vpop.f32.mrb[0].mxu0
        %v955 = vadd.f32 0.0, %v954
        %v956 = vpop.f32.mrb[0].mxu0
        %957 = vdwg.mxu0
        %v959 = vsel %vm401, %v490, 0
        %v962 = vsel %vm401, %v491, 0
        %v965 = vsel %vm401, %v602, 0
        %v968 = vsel %vm401, %v603, 0
        %970 = vmatprep.subr.mxu0 0.0
        %971 = vmatpush1.xpose.msra.mxu0 %v965
        %972 = vmatprep.subr.mxu0 0.0
        %973 = vmatpush1.xpose.msra.mxu0 %v968
        %974 = vmatprep.subr.mxu0 0.0
        %975 = vmatpush1.xpose.msra.mxu0 0.0
        %976 = vmatprep.subr.mxu0 0.0
        %977 = vmatpush1.xpose.msra.mxu0 0.0
        %978 = vmatprep.subr.mxu0 0.0
        %979 = vmatpush1.xpose.msra.mxu0 0.0
        %980 = vmatprep.subr.mxu0 0.0
        %981 = vmatpush1.xpose.msra.mxu0 0.0
        %982 = vmatprep.subr.mxu0 0.0
        %983 = vmatpush1.xpose.msra.mxu0 0.0
        %984 = vmatprep.subr.mxu0 0.0
        %985 = vmatpush1.xpose.msra.mxu0 0.0
        %986 = vmatprep.subr.mxu0 0.0
        %987 = vmatpush1.xpose.msra.mxu0 0.0
        %988 = vmatprep.subr.mxu0 0.0
        %989 = vmatpush1.xpose.msra.mxu0 0.0
        %990 = vmatprep.subr.mxu0 0.0
        %991 = vmatpush1.xpose.msra.mxu0 0.0
        %992 = vmatprep.subr.mxu0 0.0
        %993 = vmatpush1.xpose.msra.mxu0 0.0
        %994 = vmatprep.subr.mxu0 0.0
        %995 = vmatpush1.xpose.msra.mxu0 0.0
        %996 = vmatprep.subr.mxu0 0.0
        %997 = vmatpush1.xpose.msra.mxu0 0.0
        %998 = vmatprep.subr.mxu0 0.0
        %999 = vmatpush1.xpose.msra.mxu0 0.0
        %1000 = vmatprep.subr.mxu0 0.0
        %1001 = vmatpush1.xpose.msra.mxu0 0.0
        %1002 = vmatprep.subr.mxu0 0.0
        %1003 = vmatpush1.xpose.msra.mxu0 0.0
        %1004 = vmatprep.subr.mxu0 0.0
        %1005 = vmatpush1.xpose.msra.mxu0 0.0
        %1006 = vmatprep.subr.mxu0 0.0
        %1007 = vmatpush1.xpose.msra.mxu0 0.0
        %1008 = vmatprep.subr.mxu0 0.0
        %1009 = vmatpush1.xpose.msra.mxu0 0.0
        %1010 = vmatprep.subr.mxu0 0.0
        %1011 = vmatpush1.xpose.msra.mxu0 0.0
        %1012 = vmatprep.subr.mxu0 0.0
        %1013 = vmatpush1.xpose.msra.mxu0 0.0
        %1014 = vmatprep.subr.mxu0 0.0
        %1015 = vmatpush1.xpose.msra.mxu0 0.0
        %1016 = vmatprep.subr.mxu0 0.0
        %1017 = vmatpush1.xpose.msra.mxu0 0.0
        %1018 = vmatprep.subr.mxu0 0.0
        %1019 = vmatpush1.xpose.msra.mxu0 0.0
        %1020 = vmatprep.subr.mxu0 0.0
        %1021 = vmatpush1.xpose.msra.mxu0 0.0
        %1022 = vmatprep.subr.mxu0 0.0
        %1023 = vmatpush1.xpose.msra.mxu0 0.0
        %1024 = vmatprep.subr.mxu0 0.0
        %1025 = vmatpush1.xpose.msra.mxu0 0.0
        %1026 = vmatprep.subr.mxu0 0.0
        %1027 = vmatpush1.xpose.msra.mxu0 0.0
        %1028 = vmatprep.subr.mxu0 0.0
        %1029 = vmatpush1.xpose.msra.mxu0 0.0
        %1030 = vmatprep.subr.mxu0 0.0
        %1031 = vmatpush1.xpose.msra.mxu0 0.0
        %1032 = vmatprep.subr.mxu0 0.0
        %1033 = vmatpush1.xpose.msra.mxu0 0.0
        %1034 = vmatprep.mubr.f32.mxu0 0.0
        %1035 = vmatmul.mubr.f32.gmra.mrb[0].mxu0 %v959
        %v1036 = vpop.f32.mrb[0].mxu0
        %v1037 = vadd.f32 0.0, %v1036
        %v1038 = vpop.f32.mrb[0].mxu0
        %1039 = vmatprep.mubr.f32.mxu0 0.0
        %1040 = vmatmul.mubr.f32.gmra.mrb[0].mxu0 %v962
        %v1041 = vpop.f32.mrb[0].mxu0
        %v1042 = vadd.f32 0.0, %v1041
        %v1043 = vpop.f32.mrb[0].mxu0
        %1044 = vdwg.mxu0
        %v1046 = vsel %vm401, %v492, 0
        %v1049 = vsel %vm401, %v493, 0
        %v1052 = vsel %vm401, %v604, 0
        %v1055 = vsel %vm401, %v605, 0
        %1057 = vmatprep.subr.mxu0 0.0
        %1058 = vmatpush1.xpose.msra.mxu0 %v1052
        %1059 = vmatprep.subr.mxu0 0.0
        %1060 = vmatpush1.xpose.msra.mxu0 %v1055
        %1061 = vmatprep.subr.mxu0 0.0
        %1062 = vmatpush1.xpose.msra.mxu0 0.0
        %1063 = vmatprep.subr.mxu0 0.0
        %1064 = vmatpush1.xpose.msra.mxu0 0.0
        %1065 = vmatprep.subr.mxu0 0.0
        %1066 = vmatpush1.xpose.msra.mxu0 0.0
        %1067 = vmatprep.subr.mxu0 0.0
        %1068 = vmatpush1.xpose.msra.mxu0 0.0
        %1069 = vmatprep.subr.mxu0 0.0
        %1070 = vmatpush1.xpose.msra.mxu0 0.0
        %1071 = vmatprep.subr.mxu0 0.0
        %1072 = vmatpush1.xpose.msra.mxu0 0.0
        %1073 = vmatprep.subr.mxu0 0.0
        %1074 = vmatpush1.xpose.msra.mxu0 0.0
        %1075 = vmatprep.subr.mxu0 0.0
        %1076 = vmatpush1.xpose.msra.mxu0 0.0
        %1077 = vmatprep.subr.mxu0 0.0
        %1078 = vmatpush1.xpose.msra.mxu0 0.0
        %1079 = vmatprep.subr.mxu0 0.0
        %1080 = vmatpush1.xpose.msra.mxu0 0.0
        %1081 = vmatprep.subr.mxu0 0.0
        %1082 = vmatpush1.xpose.msra.mxu0 0.0
        %1083 = vmatprep.subr.mxu0 0.0
        %1084 = vmatpush1.xpose.msra.mxu0 0.0
        %1085 = vmatprep.subr.mxu0 0.0
        %1086 = vmatpush1.xpose.msra.mxu0 0.0
        %1087 = vmatprep.subr.mxu0 0.0
        %1088 = vmatpush1.xpose.msra.mxu0 0.0
        %1089 = vmatprep.subr.mxu0 0.0
        %1090 = vmatpush1.xpose.msra.mxu0 0.0
        %1091 = vmatprep.subr.mxu0 0.0
        %1092 = vmatpush1.xpose.msra.mxu0 0.0
        %1093 = vmatprep.subr.mxu0 0.0
        %1094 = vmatpush1.xpose.msra.mxu0 0.0
        %1095 = vmatprep.subr.mxu0 0.0
        %1096 = vmatpush1.xpose.msra.mxu0 0.0
        %1097 = vmatprep.subr.mxu0 0.0
        %1098 = vmatpush1.xpose.msra.mxu0 0.0
        %1099 = vmatprep.subr.mxu0 0.0
        %1100 = vmatpush1.xpose.msra.mxu0 0.0
        %1101 = vmatprep.subr.mxu0 0.0
        %1102 = vmatpush1.xpose.msra.mxu0 0.0
        %1103 = vmatprep.subr.mxu0 0.0
        %1104 = vmatpush1.xpose.msra.mxu0 0.0
        %1105 = vmatprep.subr.mxu0 0.0
        %1106 = vmatpush1.xpose.msra.mxu0 0.0
        %1107 = vmatprep.subr.mxu0 0.0
        %1108 = vmatpush1.xpose.msra.mxu0 0.0
        %1109 = vmatprep.subr.mxu0 0.0
        %1110 = vmatpush1.xpose.msra.mxu0 0.0
        %1111 = vmatprep.subr.mxu0 0.0
        %1112 = vmatpush1.xpose.msra.mxu0 0.0
        %1113 = vmatprep.subr.mxu0 0.0
        %1114 = vmatpush1.xpose.msra.mxu0 0.0
        %1115 = vmatprep.subr.mxu0 0.0
        %1116 = vmatpush1.xpose.msra.mxu0 0.0
        %1117 = vmatprep.subr.mxu0 0.0
        %1118 = vmatpush1.xpose.msra.mxu0 0.0
        %1119 = vmatprep.subr.mxu0 0.0
        %1120 = vmatpush1.xpose.msra.mxu0 0.0
        %1121 = vmatprep.mubr.f32.mxu0 0.0
        %1122 = vmatmul.mubr.f32.gmra.mrb[0].mxu0 %v1046
        %v1123 = vpop.f32.mrb[0].mxu0
        %v1124 = vadd.f32 0.0, %v1123
        %v1125 = vpop.f32.mrb[0].mxu0
        %1126 = vmatprep.mubr.f32.mxu0 0.0
        %1127 = vmatmul.mubr.f32.gmra.mrb[0].mxu0 %v1049
        %v1128 = vpop.f32.mrb[0].mxu0
        %v1129 = vadd.f32 0.0, %v1128
        %v1130 = vpop.f32.mrb[0].mxu0
        %1131 = vdwg.mxu0
        %v1133 = vsel %vm401, %v494, 0
        %v1136 = vsel %vm401, %v495, 0
        %v1139 = vsel %vm401, %v606, 0
        %v1142 = vsel %vm401, %v607, 0
        %1144 = vmatprep.subr.mxu0 0.0
        %1145 = vmatpush1.xpose.msra.mxu0 %v1139
        %1146 = vmatprep.subr.mxu0 0.0
        %1147 = vmatpush1.xpose.msra.mxu0 %v1142
        %1148 = vmatprep.subr.mxu0 0.0
        %1149 = vmatpush1.xpose.msra.mxu0 0.0
        %1150 = vmatprep.subr.mxu0 0.0
        %1151 = vmatpush1.xpose.msra.mxu0 0.0
        %1152 = vmatprep.subr.mxu0 0.0
        %1153 = vmatpush1.xpose.msra.mxu0 0.0
        %1154 = vmatprep.subr.mxu0 0.0
        %1155 = vmatpush1.xpose.msra.mxu0 0.0
        %1156 = vmatprep.subr.mxu0 0.0
        %1157 = vmatpush1.xpose.msra.mxu0 0.0
        %1158 = vmatprep.subr.mxu0 0.0
        %1159 = vmatpush1.xpose.msra.mxu0 0.0
        %1160 = vmatprep.subr.mxu0 0.0
        %1161 = vmatpush1.xpose.msra.mxu0 0.0
        %1162 = vmatprep.subr.mxu0 0.0
        %1163 = vmatpush1.xpose.msra.mxu0 0.0
        %1164 = vmatprep.subr.mxu0 0.0
        %1165 = vmatpush1.xpose.msra.mxu0 0.0
        %1166 = vmatprep.subr.mxu0 0.0
        %1167 = vmatpush1.xpose.msra.mxu0 0.0
        %1168 = vmatprep.subr.mxu0 0.0
        %1169 = vmatpush1.xpose.msra.mxu0 0.0
        %1170 = vmatprep.subr.mxu0 0.0
        %1171 = vmatpush1.xpose.msra.mxu0 0.0
        %1172 = vmatprep.subr.mxu0 0.0
        %1173 = vmatpush1.xpose.msra.mxu0 0.0
        %1174 = vmatprep.subr.mxu0 0.0
        %1175 = vmatpush1.xpose.msra.mxu0 0.0
        %1176 = vmatprep.subr.mxu0 0.0
        %1177 = vmatpush1.xpose.msra.mxu0 0.0
        %1178 = vmatprep.subr.mxu0 0.0
        %1179 = vmatpush1.xpose.msra.mxu0 0.0
        %1180 = vmatprep.subr.mxu0 0.0
        %1181 = vmatpush1.xpose.msra.mxu0 0.0
        %1182 = vmatprep.subr.mxu0 0.0
        %1183 = vmatpush1.xpose.msra.mxu0 0.0
        %1184 = vmatprep.subr.mxu0 0.0
        %1185 = vmatpush1.xpose.msra.mxu0 0.0
        %1186 = vmatprep.subr.mxu0 0.0
        %1187 = vmatpush1.xpose.msra.mxu0 0.0
        %1188 = vmatprep.subr.mxu0 0.0
        %1189 = vmatpush1.xpose.msra.mxu0 0.0
        %1190 = vmatprep.subr.mxu0 0.0
        %1191 = vmatpush1.xpose.msra.mxu0 0.0
        %1192 = vmatprep.subr.mxu0 0.0
        %1193 = vmatpush1.xpose.msra.mxu0 0.0
        %1194 = vmatprep.subr.mxu0 0.0
        %1195 = vmatpush1.xpose.msra.mxu0 0.0
        %1196 = vmatprep.subr.mxu0 0.0
        %1197 = vmatpush1.xpose.msra.mxu0 0.0
        %1198 = vmatprep.subr.mxu0 0.0
        %1199 = vmatpush1.xpose.msra.mxu0 0.0
        %1200 = vmatprep.subr.mxu0 0.0
        %1201 = vmatpush1.xpose.msra.mxu0 0.0
        %1202 = vmatprep.subr.mxu0 0.0
        %1203 = vmatpush1.xpose.msra.mxu0 0.0
        %1204 = vmatprep.subr.mxu0 0.0
        %1205 = vmatpush1.xpose.msra.mxu0 0.0
        %1206 = vmatprep.subr.mxu0 0.0
        %1207 = vmatpush1.xpose.msra.mxu0 0.0
        %1208 = vmatprep.mubr.f32.mxu0 0.0
        %1209 = vmatmul.mubr.f32.gmra.mrb[0].mxu0 %v1133
        %v1210 = vpop.f32.mrb[0].mxu0
        %v1211 = vadd.f32 0.0, %v1210
        %v1212 = vpop.f32.mrb[0].mxu0
        %1213 = vmatprep.mubr.f32.mxu0 0.0
        %1214 = vmatmul.mubr.f32.gmra.mrb[0].mxu0 %v1136
        %v1215 = vpop.f32.mrb[0].mxu0
        %v1216 = vadd.f32 0.0, %v1215
        %v1217 = vpop.f32.mrb[0].mxu0
        %1218 = vdwg.mxu0
        %v1220 = vsel %vm401, %v496, 0
        %v1223 = vsel %vm401, %v497, 0
        %v1226 = vsel %vm401, %v608, 0
        %v1229 = vsel %vm401, %v609, 0
        %1231 = vmatprep.subr.mxu0 0.0
        %1232 = vmatpush1.xpose.msra.mxu0 %v1226
        %1233 = vmatprep.subr.mxu0 0.0
        %1234 = vmatpush1.xpose.msra.mxu0 %v1229
        %1235 = vmatprep.subr.mxu0 0.0
        %1236 = vmatpush1.xpose.msra.mxu0 0.0
        %1237 = vmatprep.subr.mxu0 0.0
        %1238 = vmatpush1.xpose.msra.mxu0 0.0
        %1239 = vmatprep.subr.mxu0 0.0
        %1240 = vmatpush1.xpose.msra.mxu0 0.0
        %1241 = vmatprep.subr.mxu0 0.0
        %1242 = vmatpush1.xpose.msra.mxu0 0.0
        %1243 = vmatprep.subr.mxu0 0.0
        %1244 = vmatpush1.xpose.msra.mxu0 0.0
        %1245 = vmatprep.subr.mxu0 0.0
        %1246 = vmatpush1.xpose.msra.mxu0 0.0
        %1247 = vmatprep.subr.mxu0 0.0
        %1248 = vmatpush1.xpose.msra.mxu0 0.0
        %1249 = vmatprep.subr.mxu0 0.0
        %1250 = vmatpush1.xpose.msra.mxu0 0.0
        %1251 = vmatprep.subr.mxu0 0.0
        %1252 = vmatpush1.xpose.msra.mxu0 0.0
        %1253 = vmatprep.subr.mxu0 0.0
        %1254 = vmatpush1.xpose.msra.mxu0 0.0
        %1255 = vmatprep.subr.mxu0 0.0
        %1256 = vmatpush1.xpose.msra.mxu0 0.0
        %1257 = vmatprep.subr.mxu0 0.0
        %1258 = vmatpush1.xpose.msra.mxu0 0.0
        %1259 = vmatprep.subr.mxu0 0.0
        %1260 = vmatpush1.xpose.msra.mxu0 0.0
        %1261 = vmatprep.subr.mxu0 0.0
        %1262 = vmatpush1.xpose.msra.mxu0 0.0
        %1263 = vmatprep.subr.mxu0 0.0
        %1264 = vmatpush1.xpose.msra.mxu0 0.0
        %1265 = vmatprep.subr.mxu0 0.0
        %1266 = vmatpush1.xpose.msra.mxu0 0.0
        %1267 = vmatprep.subr.mxu0 0.0
        %1268 = vmatpush1.xpose.msra.mxu0 0.0
        %1269 = vmatprep.subr.mxu0 0.0
        %1270 = vmatpush1.xpose.msra.mxu0 0.0
        %1271 = vmatprep.subr.mxu0 0.0
        %1272 = vmatpush1.xpose.msra.mxu0 0.0
        %1273 = vmatprep.subr.mxu0 0.0
        %1274 = vmatpush1.xpose.msra.mxu0 0.0
        %1275 = vmatprep.subr.mxu0 0.0
        %1276 = vmatpush1.xpose.msra.mxu0 0.0
        %1277 = vmatprep.subr.mxu0 0.0
        %1278 = vmatpush1.xpose.msra.mxu0 0.0
        %1279 = vmatprep.subr.mxu0 0.0
        %1280 = vmatpush1.xpose.msra.mxu0 0.0
        %1281 = vmatprep.subr.mxu0 0.0
        %1282 = vmatpush1.xpose.msra.mxu0 0.0
        %1283 = vmatprep.subr.mxu0 0.0
        %1284 = vmatpush1.xpose.msra.mxu0 0.0
        %1285 = vmatprep.subr.mxu0 0.0
        %1286 = vmatpush1.xpose.msra.mxu0 0.0
        %1287 = vmatprep.subr.mxu0 0.0
        %1288 = vmatpush1.xpose.msra.mxu0 0.0
        %1289 = vmatprep.subr.mxu0 0.0
        %1290 = vmatpush1.xpose.msra.mxu0 0.0
        %1291 = vmatprep.subr.mxu0 0.0
        %1292 = vmatpush1.xpose.msra.mxu0 0.0
        %1293 = vmatprep.subr.mxu0 0.0
        %1294 = vmatpush1.xpose.msra.mxu0 0.0
        %1295 = vmatprep.mubr.f32.mxu0 0.0
        %1296 = vmatmul.mubr.f32.gmra.mrb[0].mxu0 %v1220
        %v1297 = vpop.f32.mrb[0].mxu0
        %v1298 = vadd.f32 0.0, %v1297
        %v1299 = vpop.f32.mrb[0].mxu0
        %1300 = vmatprep.mubr.f32.mxu0 0.0
        %1301 = vmatmul.mubr.f32.gmra.mrb[0].mxu0 %v1223
        %v1302 = vpop.f32.mrb[0].mxu0
        %v1303 = vadd.f32 0.0, %v1302
        %v1304 = vpop.f32.mrb[0].mxu0
        %1305 = vdwg.mxu0
        %vm1306 = vcmask 130048
        %v1307 = vsel %vm1306, %v689, -inf
        %1308 = vmax.xlane.f32.xlu0 %v1307
        %v1309 = vpop.xlane.xlu0 %1308
        %v1310 = vsel %vm1306, %v694, -inf
        %1311 = vmax.xlane.f32.xlu0 %v1310
        %v1312 = vpop.xlane.xlu0 %1311
        %v1313 = vsel %vm1306, %v776, -inf
        %1314 = vmax.xlane.f32.xlu0 %v1313
        %v1315 = vpop.xlane.xlu0 %1314
        %v1316 = vsel %vm1306, %v781, -inf
        %1317 = vmax.xlane.f32.xlu0 %v1316
        %v1318 = vpop.xlane.xlu0 %1317
        %v1319 = vsel %vm1306, %v863, -inf
        %1320 = vmax.xlane.f32.xlu0 %v1319
        %v1321 = vpop.xlane.xlu0 %1320
        %v1322 = vsel %vm1306, %v868, -inf
        %1323 = vmax.xlane.f32.xlu0 %v1322
        %v1324 = vpop.xlane.xlu0 %1323
        %v1325 = vsel %vm1306, %v950, -inf
        %1326 = vmax.xlane.f32.xlu0 %v1325
        %v1327 = vpop.xlane.xlu0 %1326
        %v1328 = vsel %vm1306, %v955, -inf
        %1329 = vmax.xlane.f32.xlu0 %v1328
        %v1330 = vpop.xlane.xlu0 %1329
        %v1331 = vsel %vm1306, %v1037, -inf
        %1332 = vmax.xlane.f32.xlu0 %v1331
        %v1333 = vpop.xlane.xlu0 %1332
        %v1334 = vsel %vm1306, %v1042, -inf
        %1335 = vmax.xlane.f32.xlu0 %v1334
        %v1336 = vpop.xlane.xlu0 %1335
        %v1337 = vsel %vm1306, %v1124, -inf
        %1338 = vmax.xlane.f32.xlu0 %v1337
        %v1339 = vpop.xlane.xlu0 %1338
        %v1340 = vsel %vm1306, %v1129, -inf
        %1341 = vmax.xlane.f32.xlu0 %v1340
        %v1342 = vpop.xlane.xlu0 %1341
        %v1343 = vsel %vm1306, %v1211, -inf
        %1344 = vmax.xlane.f32.xlu0 %v1343
        %v1345 = vpop.xlane.xlu0 %1344
        %v1346 = vsel %vm1306, %v1216, -inf
        %1347 = vmax.xlane.f32.xlu0 %v1346
        %v1348 = vpop.xlane.xlu0 %1347
        %v1349 = vsel %vm1306, %v1298, -inf
        %1350 = vmax.xlane.f32.xlu0 %v1349
        %v1351 = vpop.xlane.xlu0 %1350
        %v1352 = vsel %vm1306, %v1303, -inf
        %1353 = vmax.xlane.f32.xlu0 %v1352
        %v1354 = vpop.xlane.xlu0 %1353
        %v1355 = vadd.f32 %v1309, 0.0
        %v1356 = vadd.f32 %v1312, 0.0
        %v1357 = vadd.f32 %v1315, 0.0
        %v1358 = vadd.f32 %v1318, 0.0
        %v1359 = vadd.f32 %v1321, 0.0
        %v1360 = vadd.f32 %v1324, 0.0
        %v1361 = vadd.f32 %v1327, 0.0
        %v1362 = vadd.f32 %v1330, 0.0
        %v1363 = vadd.f32 %v1333, 0.0
        %v1364 = vadd.f32 %v1336, 0.0
        %v1365 = vadd.f32 %v1339, 0.0
        %v1366 = vadd.f32 %v1342, 0.0
        %v1367 = vadd.f32 %v1345, 0.0
        %v1368 = vadd.f32 %v1348, 0.0
        %v1369 = vadd.f32 %v1351, 0.0
        %v1370 = vadd.f32 %v1354, 0.0
        %vm1371 = vcmp.eq.f32.partialorder %v689, %v1309
        %vm1372 = vcmp.eq.f32.partialorder %v694, %v1312
        %vm1373 = vcmp.eq.f32.partialorder %v776, %v1315
        %vm1374 = vcmp.eq.f32.partialorder %v781, %v1318
        %vm1375 = vcmp.eq.f32.partialorder %v863, %v1321
        %vm1376 = vcmp.eq.f32.partialorder %v868, %v1324
        %vm1377 = vcmp.eq.f32.partialorder %v950, %v1327
        %vm1378 = vcmp.eq.f32.partialorder %v955, %v1330
        %vm1379 = vcmp.eq.f32.partialorder %v1037, %v1333
        %vm1380 = vcmp.eq.f32.partialorder %v1042, %v1336
        %vm1381 = vcmp.eq.f32.partialorder %v1124, %v1339
        %vm1382 = vcmp.eq.f32.partialorder %v1129, %v1342
        %vm1383 = vcmp.eq.f32.partialorder %v1211, %v1345
        %vm1384 = vcmp.eq.f32.partialorder %v1216, %v1348
        %vm1385 = vcmp.eq.f32.partialorder %v1298, %v1351
        %vm1386 = vcmp.eq.f32.partialorder %v1303, %v1354
        %v1387 = vsel %vm1371, %v352, 16
        %v1388 = vsel %vm1372, %v352, 16
        %v1389 = vsel %vm1373, %v352, 16
        %v1390 = vsel %vm1374, %v352, 16
        %v1391 = vsel %vm1375, %v352, 16
        %v1392 = vsel %vm1376, %v352, 16
        %v1393 = vsel %vm1377, %v352, 16
        %v1394 = vsel %vm1378, %v352, 16
        %v1395 = vsel %vm1379, %v352, 16
        %v1396 = vsel %vm1380, %v352, 16
        %v1397 = vsel %vm1381, %v352, 16
        %v1398 = vsel %vm1382, %v352, 16
        %v1399 = vsel %vm1383, %v352, 16
        %v1400 = vsel %vm1384, %v352, 16
        %v1401 = vsel %vm1385, %v352, 16
        %v1402 = vsel %vm1386, %v352, 16
        %v1403 = vsel %vm1306, %v1387, 2147483647
        %v1404 = vand.u32 %v1403, 65535
        %v1405 = vshra.s32 %v1403, 16
        %v1406 = vcvt.s32.f32 %v1404
        %v1407 = vcvt.s32.f32 %v1405
        %1408 = vmin.xlane.f32.xlu0 %v1407
        %v1409 = vpop.xlane.xlu0 %1408
        %vm1410 = vcmp.eq.f32.partialorder %v1407, %v1409
        %v1411 = vsel %vm1410, %v1406, inf
        %1412 = vmin.xlane.f32.xlu0 %v1411
        %v1413 = vpop.xlane.xlu0 %1412
        %v1414 = vcvt.f32.s32 %v1413
        %v1415 = vcvt.f32.s32 %v1409
        %v1416 = vshll.u32 %v1415, 16
        %v1417 = vadd.s32 %v1416, %v1414
        %v1418 = vsel %vm1306, %v1388, 2147483647
        %v1419 = vand.u32 %v1418, 65535
        %v1420 = vshra.s32 %v1418, 16
        %v1421 = vcvt.s32.f32 %v1419
        %v1422 = vcvt.s32.f32 %v1420
        %1423 = vmin.xlane.f32.xlu0 %v1422
        %v1424 = vpop.xlane.xlu0 %1423
        %vm1425 = vcmp.eq.f32.partialorder %v1422, %v1424
        %v1426 = vsel %vm1425, %v1421, inf
        %1427 = vmin.xlane.f32.xlu0 %v1426
        %v1428 = vpop.xlane.xlu0 %1427
        %v1429 = vcvt.f32.s32 %v1428
        %v1430 = vcvt.f32.s32 %v1424
        %v1431 = vshll.u32 %v1430, 16
        %v1432 = vadd.s32 %v1431, %v1429
        %v1433 = vsel %vm1306, %v1389, 2147483647
        %v1434 = vand.u32 %v1433, 65535
        %v1435 = vshra.s32 %v1433, 16
        %v1436 = vcvt.s32.f32 %v1434
        %v1437 = vcvt.s32.f32 %v1435
        %1438 = vmin.xlane.f32.xlu0 %v1437
        %v1439 = vpop.xlane.xlu0 %1438
        %vm1440 = vcmp.eq.f32.partialorder %v1437, %v1439
        %v1441 = vsel %vm1440, %v1436, inf
        %1442 = vmin.xlane.f32.xlu0 %v1441
        %v1443 = vpop.xlane.xlu0 %1442
        %v1444 = vcvt.f32.s32 %v1443
        %v1445 = vcvt.f32.s32 %v1439
        %v1446 = vshll.u32 %v1445, 16
        %v1447 = vadd.s32 %v1446, %v1444
        %v1448 = vsel %vm1306, %v1390, 2147483647
        %v1449 = vand.u32 %v1448, 65535
        %v1450 = vshra.s32 %v1448, 16
        %v1451 = vcvt.s32.f32 %v1449
        %v1452 = vcvt.s32.f32 %v1450
        %1453 = vmin.xlane.f32.xlu0 %v1452
        %v1454 = vpop.xlane.xlu0 %1453
        %vm1455 = vcmp.eq.f32.partialorder %v1452, %v1454
        %v1456 = vsel %vm1455, %v1451, inf
        %1457 = vmin.xlane.f32.xlu0 %v1456
        %v1458 = vpop.xlane.xlu0 %1457
        %v1459 = vcvt.f32.s32 %v1458
        %v1460 = vcvt.f32.s32 %v1454
        %v1461 = vshll.u32 %v1460, 16
        %v1462 = vadd.s32 %v1461, %v1459
        %v1463 = vsel %vm1306, %v1391, 2147483647
        %v1464 = vand.u32 %v1463, 65535
        %v1465 = vshra.s32 %v1463, 16
        %v1466 = vcvt.s32.f32 %v1464
        %v1467 = vcvt.s32.f32 %v1465
        %1468 = vmin.xlane.f32.xlu0 %v1467
        %v1469 = vpop.xlane.xlu0 %1468
        %vm1470 = vcmp.eq.f32.partialorder %v1467, %v1469
        %v1471 = vsel %vm1470, %v1466, inf
        %1472 = vmin.xlane.f32.xlu0 %v1471
        %v1473 = vpop.xlane.xlu0 %1472
        %v1474 = vcvt.f32.s32 %v1473
        %v1475 = vcvt.f32.s32 %v1469
        %v1476 = vshll.u32 %v1475, 16
        %v1477 = vadd.s32 %v1476, %v1474
        %v1478 = vsel %vm1306, %v1392, 2147483647
        %v1479 = vand.u32 %v1478, 65535
        %v1480 = vshra.s32 %v1478, 16
        %v1481 = vcvt.s32.f32 %v1479
        %v1482 = vcvt.s32.f32 %v1480
        %1483 = vmin.xlane.f32.xlu0 %v1482
        %v1484 = vpop.xlane.xlu0 %1483
        %vm1485 = vcmp.eq.f32.partialorder %v1482, %v1484
        %v1486 = vsel %vm1485, %v1481, inf
        %1487 = vmin.xlane.f32.xlu0 %v1486
        %v1488 = vpop.xlane.xlu0 %1487
        %v1489 = vcvt.f32.s32 %v1488
        %v1490 = vcvt.f32.s32 %v1484
        %v1491 = vshll.u32 %v1490, 16
        %v1492 = vadd.s32 %v1491, %v1489
        %v1493 = vsel %vm1306, %v1393, 2147483647
        %v1494 = vand.u32 %v1493, 65535
        %v1495 = vshra.s32 %v1493, 16
        %v1496 = vcvt.s32.f32 %v1494
        %v1497 = vcvt.s32.f32 %v1495
        %1498 = vmin.xlane.f32.xlu0 %v1497
        %v1499 = vpop.xlane.xlu0 %1498
        %vm1500 = vcmp.eq.f32.partialorder %v1497, %v1499
        %v1501 = vsel %vm1500, %v1496, inf
        %1502 = vmin.xlane.f32.xlu0 %v1501
        %v1503 = vpop.xlane.xlu0 %1502
        %v1504 = vcvt.f32.s32 %v1503
        %v1505 = vcvt.f32.s32 %v1499
        %v1506 = vshll.u32 %v1505, 16
        %v1507 = vadd.s32 %v1506, %v1504
        %v1508 = vsel %vm1306, %v1394, 2147483647
        %v1509 = vand.u32 %v1508, 65535
        %v1510 = vshra.s32 %v1508, 16
        %v1511 = vcvt.s32.f32 %v1509
        %v1512 = vcvt.s32.f32 %v1510
        %1513 = vmin.xlane.f32.xlu0 %v1512
        %v1514 = vpop.xlane.xlu0 %1513
        %vm1515 = vcmp.eq.f32.partialorder %v1512, %v1514
        %v1516 = vsel %vm1515, %v1511, inf
        %1517 = vmin.xlane.f32.xlu0 %v1516
        %v1518 = vpop.xlane.xlu0 %1517
        %v1519 = vcvt.f32.s32 %v1518
        %v1520 = vcvt.f32.s32 %v1514
        %v1521 = vshll.u32 %v1520, 16
        %v1522 = vadd.s32 %v1521, %v1519
        %v1523 = vsel %vm1306, %v1395, 2147483647
        %v1524 = vand.u32 %v1523, 65535
        %v1525 = vshra.s32 %v1523, 16
        %v1526 = vcvt.s32.f32 %v1524
        %v1527 = vcvt.s32.f32 %v1525
        %1528 = vmin.xlane.f32.xlu0 %v1527
        %v1529 = vpop.xlane.xlu0 %1528
        %vm1530 = vcmp.eq.f32.partialorder %v1527, %v1529
        %v1531 = vsel %vm1530, %v1526, inf
        %1532 = vmin.xlane.f32.xlu0 %v1531
        %v1533 = vpop.xlane.xlu0 %1532
        %v1534 = vcvt.f32.s32 %v1533
        %v1535 = vcvt.f32.s32 %v1529
        %v1536 = vshll.u32 %v1535, 16
        %v1537 = vadd.s32 %v1536, %v1534
        %v1538 = vsel %vm1306, %v1396, 2147483647
        %v1539 = vand.u32 %v1538, 65535
        %v1540 = vshra.s32 %v1538, 16
        %v1541 = vcvt.s32.f32 %v1539
        %v1542 = vcvt.s32.f32 %v1540
        %1543 = vmin.xlane.f32.xlu0 %v1542
        %v1544 = vpop.xlane.xlu0 %1543
        %vm1545 = vcmp.eq.f32.partialorder %v1542, %v1544
        %v1546 = vsel %vm1545, %v1541, inf
        %1547 = vmin.xlane.f32.xlu0 %v1546
        %v1548 = vpop.xlane.xlu0 %1547
        %v1549 = vcvt.f32.s32 %v1548
        %v1550 = vcvt.f32.s32 %v1544
        %v1551 = vshll.u32 %v1550, 16
        %v1552 = vadd.s32 %v1551, %v1549
        %v1553 = vsel %vm1306, %v1397, 2147483647
        %v1554 = vand.u32 %v1553, 65535
        %v1555 = vshra.s32 %v1553, 16
        %v1556 = vcvt.s32.f32 %v1554
        %v1557 = vcvt.s32.f32 %v1555
        %1558 = vmin.xlane.f32.xlu0 %v1557
        %v1559 = vpop.xlane.xlu0 %1558
        %vm1560 = vcmp.eq.f32.partialorder %v1557, %v1559
        %v1561 = vsel %vm1560, %v1556, inf
        %1562 = vmin.xlane.f32.xlu0 %v1561
        %v1563 = vpop.xlane.xlu0 %1562
        %v1564 = vcvt.f32.s32 %v1563
        %v1565 = vcvt.f32.s32 %v1559
        %v1566 = vshll.u32 %v1565, 16
        %v1567 = vadd.s32 %v1566, %v1564
        %v1568 = vsel %vm1306, %v1398, 2147483647
        %v1569 = vand.u32 %v1568, 65535
        %v1570 = vshra.s32 %v1568, 16
        %v1571 = vcvt.s32.f32 %v1569
        %v1572 = vcvt.s32.f32 %v1570
        %1573 = vmin.xlane.f32.xlu0 %v1572
        %v1574 = vpop.xlane.xlu0 %1573
        %vm1575 = vcmp.eq.f32.partialorder %v1572, %v1574
        %v1576 = vsel %vm1575, %v1571, inf
        %1577 = vmin.xlane.f32.xlu0 %v1576
        %v1578 = vpop.xlane.xlu0 %1577
        %v1579 = vcvt.f32.s32 %v1578
        %v1580 = vcvt.f32.s32 %v1574
        %v1581 = vshll.u32 %v1580, 16
        %v1582 = vadd.s32 %v1581, %v1579
        %v1583 = vsel %vm1306, %v1399, 2147483647
        %v1584 = vand.u32 %v1583, 65535
        %v1585 = vshra.s32 %v1583, 16
        %v1586 = vcvt.s32.f32 %v1584
        %v1587 = vcvt.s32.f32 %v1585
        %1588 = vmin.xlane.f32.xlu0 %v1587
        %v1589 = vpop.xlane.xlu0 %1588
        %vm1590 = vcmp.eq.f32.partialorder %v1587, %v1589
        %v1591 = vsel %vm1590, %v1586, inf
        %1592 = vmin.xlane.f32.xlu0 %v1591
        %v1593 = vpop.xlane.xlu0 %1592
        %v1594 = vcvt.f32.s32 %v1593
        %v1595 = vcvt.f32.s32 %v1589
        %v1596 = vshll.u32 %v1595, 16
        %v1597 = vadd.s32 %v1596, %v1594
        %v1598 = vsel %vm1306, %v1400, 2147483647
        %v1599 = vand.u32 %v1598, 65535
        %v1600 = vshra.s32 %v1598, 16
        %v1601 = vcvt.s32.f32 %v1599
        %v1602 = vcvt.s32.f32 %v1600
        %1603 = vmin.xlane.f32.xlu0 %v1602
        %v1604 = vpop.xlane.xlu0 %1603
        %vm1605 = vcmp.eq.f32.partialorder %v1602, %v1604
        %v1606 = vsel %vm1605, %v1601, inf
        %1607 = vmin.xlane.f32.xlu0 %v1606
        %v1608 = vpop.xlane.xlu0 %1607
        %v1609 = vcvt.f32.s32 %v1608
        %v1610 = vcvt.f32.s32 %v1604
        %v1611 = vshll.u32 %v1610, 16
        %v1612 = vadd.s32 %v1611, %v1609
        %v1613 = vsel %vm1306, %v1401, 2147483647
        %v1614 = vand.u32 %v1613, 65535
        %v1615 = vshra.s32 %v1613, 16
        %v1616 = vcvt.s32.f32 %v1614
        %v1617 = vcvt.s32.f32 %v1615
        %1618 = vmin.xlane.f32.xlu0 %v1617
        %v1619 = vpop.xlane.xlu0 %1618
        %vm1620 = vcmp.eq.f32.partialorder %v1617, %v1619
        %v1621 = vsel %vm1620, %v1616, inf
        %1622 = vmin.xlane.f32.xlu0 %v1621
        %v1623 = vpop.xlane.xlu0 %1622
        %v1624 = vcvt.f32.s32 %v1623
        %v1625 = vcvt.f32.s32 %v1619
        %v1626 = vshll.u32 %v1625, 16
        %v1627 = vadd.s32 %v1626, %v1624
        %v1628 = vsel %vm1306, %v1402, 2147483647
        %v1629 = vand.u32 %v1628, 65535
        %v1630 = vshra.s32 %v1628, 16
        %v1631 = vcvt.s32.f32 %v1629
        %v1632 = vcvt.s32.f32 %v1630
        %1633 = vmin.xlane.f32.xlu0 %v1632
        %v1634 = vpop.xlane.xlu0 %1633
        %vm1635 = vcmp.eq.f32.partialorder %v1632, %v1634
        %v1636 = vsel %vm1635, %v1631, inf
        %1637 = vmin.xlane.f32.xlu0 %v1636
        %v1638 = vpop.xlane.xlu0 %1637
        %v1639 = vcvt.f32.s32 %v1638
        %v1640 = vcvt.f32.s32 %v1634
        %v1641 = vshll.u32 %v1640, 16
        %v1642 = vadd.s32 %v1641, %v1639
        %vm1643 = vcmp.eq.s32.totalorder %v352, %v1417
        %vm1644 = vcmp.eq.s32.totalorder %v352, %v1432
        %vm1645 = vcmp.eq.s32.totalorder %v352, %v1447
        %vm1646 = vcmp.eq.s32.totalorder %v352, %v1462
        %vm1647 = vcmp.eq.s32.totalorder %v352, %v1477
        %vm1648 = vcmp.eq.s32.totalorder %v352, %v1492
        %vm1649 = vcmp.eq.s32.totalorder %v352, %v1507
        %vm1650 = vcmp.eq.s32.totalorder %v352, %v1522
        %vm1651 = vcmp.eq.s32.totalorder %v352, %v1537
        %vm1652 = vcmp.eq.s32.totalorder %v352, %v1552
        %vm1653 = vcmp.eq.s32.totalorder %v352, %v1567
        %vm1654 = vcmp.eq.s32.totalorder %v352, %v1582
        %vm1655 = vcmp.eq.s32.totalorder %v352, %v1597
        %vm1656 = vcmp.eq.s32.totalorder %v352, %v1612
        %vm1657 = vcmp.eq.s32.totalorder %v352, %v1627
        %vm1658 = vcmp.eq.s32.totalorder %v352, %v1642
        %v1659 = vsel %vm1643, -inf, %v689
        %v1660 = vsel %vm1644, -inf, %v694
        %v1661 = vsel %vm1645, -inf, %v776
        %v1662 = vsel %vm1646, -inf, %v781
        %v1663 = vsel %vm1647, -inf, %v863
        %v1664 = vsel %vm1648, -inf, %v868
        %v1665 = vsel %vm1649, -inf, %v950
        %v1666 = vsel %vm1650, -inf, %v955
        %v1667 = vsel %vm1651, -inf, %v1037
        %v1668 = vsel %vm1652, -inf, %v1042
        %v1669 = vsel %vm1653, -inf, %v1124
        %v1670 = vsel %vm1654, -inf, %v1129
        %v1671 = vsel %vm1655, -inf, %v1211
        %v1672 = vsel %vm1656, -inf, %v1216
        %v1673 = vsel %vm1657, -inf, %v1298
        %v1674 = vsel %vm1658, -inf, %v1303
        %v1675 = vsel %vm1306, %v689, inf
        %1676 = vmin.xlane.f32.xlu0 %v1675
        %v1677 = vpop.xlane.xlu0 %1676
        %v1678 = vsel %vm1306, %v694, inf
        %1679 = vmin.xlane.f32.xlu0 %v1678
        %v1680 = vpop.xlane.xlu0 %1679
        %v1681 = vsel %vm1306, %v776, inf
        %1682 = vmin.xlane.f32.xlu0 %v1681
        %v1683 = vpop.xlane.xlu0 %1682
        %v1684 = vsel %vm1306, %v781, inf
        %1685 = vmin.xlane.f32.xlu0 %v1684
        %v1686 = vpop.xlane.xlu0 %1685
        %v1687 = vsel %vm1306, %v863, inf
        %1688 = vmin.xlane.f32.xlu0 %v1687
        %v1689 = vpop.xlane.xlu0 %1688
        %v1690 = vsel %vm1306, %v868, inf
        %1691 = vmin.xlane.f32.xlu0 %v1690
        %v1692 = vpop.xlane.xlu0 %1691
        %v1693 = vsel %vm1306, %v950, inf
        %1694 = vmin.xlane.f32.xlu0 %v1693
        %v1695 = vpop.xlane.xlu0 %1694
        %v1696 = vsel %vm1306, %v955, inf
        %1697 = vmin.xlane.f32.xlu0 %v1696
        %v1698 = vpop.xlane.xlu0 %1697
        %v1699 = vsel %vm1306, %v1037, inf
        %1700 = vmin.xlane.f32.xlu0 %v1699
        %v1701 = vpop.xlane.xlu0 %1700
        %v1702 = vsel %vm1306, %v1042, inf
        %1703 = vmin.xlane.f32.xlu0 %v1702
        %v1704 = vpop.xlane.xlu0 %1703
        %v1705 = vsel %vm1306, %v1124, inf
        %1706 = vmin.xlane.f32.xlu0 %v1705
        %v1707 = vpop.xlane.xlu0 %1706
        %v1708 = vsel %vm1306, %v1129, inf
        %1709 = vmin.xlane.f32.xlu0 %v1708
        %v1710 = vpop.xlane.xlu0 %1709
        %v1711 = vsel %vm1306, %v1211, inf
        %1712 = vmin.xlane.f32.xlu0 %v1711
        %v1713 = vpop.xlane.xlu0 %1712
        %v1714 = vsel %vm1306, %v1216, inf
        %1715 = vmin.xlane.f32.xlu0 %v1714
        %v1716 = vpop.xlane.xlu0 %1715
        %v1717 = vsel %vm1306, %v1298, inf
        %1718 = vmin.xlane.f32.xlu0 %v1717
        %v1719 = vpop.xlane.xlu0 %1718
        %v1720 = vsel %vm1306, %v1303, inf
        %1721 = vmin.xlane.f32.xlu0 %v1720
        %v1722 = vpop.xlane.xlu0 %1721
        %v1723 = vsub.f32 0.0, %v1677
        %v1724 = vsub.f32 0.0, %v1680
        %v1725 = vsub.f32 0.0, %v1683
        %v1726 = vsub.f32 0.0, %v1686
        %v1727 = vsub.f32 0.0, %v1689
        %v1728 = vsub.f32 0.0, %v1692
        %v1729 = vsub.f32 0.0, %v1695
        %v1730 = vsub.f32 0.0, %v1698
        %v1731 = vsub.f32 0.0, %v1701
        %v1732 = vsub.f32 0.0, %v1704
        %v1733 = vsub.f32 0.0, %v1707
        %v1734 = vsub.f32 0.0, %v1710
        %v1735 = vsub.f32 0.0, %v1713
        %v1736 = vsub.f32 0.0, %v1716
        %v1737 = vsub.f32 0.0, %v1719
        %v1738 = vsub.f32 0.0, %v1722
        %vm1739 = vcmp.eq.f32.partialorder %v689, %v1677
        %vm1740 = vcmp.eq.f32.partialorder %v694, %v1680
        %vm1741 = vcmp.eq.f32.partialorder %v776, %v1683
        %vm1742 = vcmp.eq.f32.partialorder %v781, %v1686
        %vm1743 = vcmp.eq.f32.partialorder %v863, %v1689
        %vm1744 = vcmp.eq.f32.partialorder %v868, %v1692
        %vm1745 = vcmp.eq.f32.partialorder %v950, %v1695
        %vm1746 = vcmp.eq.f32.partialorder %v955, %v1698
        %vm1747 = vcmp.eq.f32.partialorder %v1037, %v1701
        %vm1748 = vcmp.eq.f32.partialorder %v1042, %v1704
        %vm1749 = vcmp.eq.f32.partialorder %v1124, %v1707
        %vm1750 = vcmp.eq.f32.partialorder %v1129, %v1710
        %vm1751 = vcmp.eq.f32.partialorder %v1211, %v1713
        %vm1752 = vcmp.eq.f32.partialorder %v1216, %v1716
        %vm1753 = vcmp.eq.f32.partialorder %v1298, %v1719
        %vm1754 = vcmp.eq.f32.partialorder %v1303, %v1722
        %v1755 = vsel %vm1739, %v352, 16
        %v1756 = vsel %vm1740, %v352, 16
        %v1757 = vsel %vm1741, %v352, 16
        %v1758 = vsel %vm1742, %v352, 16
        %v1759 = vsel %vm1743, %v352, 16
        %v1760 = vsel %vm1744, %v352, 16
        %v1761 = vsel %vm1745, %v352, 16
        %v1762 = vsel %vm1746, %v352, 16
        %v1763 = vsel %vm1747, %v352, 16
        %v1764 = vsel %vm1748, %v352, 16
        %v1765 = vsel %vm1749, %v352, 16
        %v1766 = vsel %vm1750, %v352, 16
        %v1767 = vsel %vm1751, %v352, 16
        %v1768 = vsel %vm1752, %v352, 16
        %v1769 = vsel %vm1753, %v352, 16
        %v1770 = vsel %vm1754, %v352, 16
        %v1771 = vsel %vm1306, %v1755, 2147483647
        %v1772 = vand.u32 %v1771, 65535
        %v1773 = vshra.s32 %v1771, 16
        %v1774 = vcvt.s32.f32 %v1772
        %v1775 = vcvt.s32.f32 %v1773
        %1776 = vmin.xlane.f32.xlu0 %v1775
        %v1777 = vpop.xlane.xlu0 %1776
        %vm1778 = vcmp.eq.f32.partialorder %v1775, %v1777
        %v1779 = vsel %vm1778, %v1774, inf
        %1780 = vmin.xlane.f32.xlu0 %v1779
        %v1781 = vpop.xlane.xlu0 %1780
        %v1782 = vcvt.f32.s32 %v1781
        %v1783 = vcvt.f32.s32 %v1777
        %v1784 = vshll.u32 %v1783, 16
        %v1785 = vadd.s32 %v1784, %v1782
        %v1786 = vsel %vm1306, %v1756, 2147483647
        %v1787 = vand.u32 %v1786, 65535
        %v1788 = vshra.s32 %v1786, 16
        %v1789 = vcvt.s32.f32 %v1787
        %v1790 = vcvt.s32.f32 %v1788
        %1791 = vmin.xlane.f32.xlu0 %v1790
        %v1792 = vpop.xlane.xlu0 %1791
        %vm1793 = vcmp.eq.f32.partialorder %v1790, %v1792
        %v1794 = vsel %vm1793, %v1789, inf
        %1795 = vmin.xlane.f32.xlu0 %v1794
        %v1796 = vpop.xlane.xlu0 %1795
        %v1797 = vcvt.f32.s32 %v1796
        %v1798 = vcvt.f32.s32 %v1792
        %v1799 = vshll.u32 %v1798, 16
        %v1800 = vadd.s32 %v1799, %v1797
        %v1801 = vsel %vm1306, %v1757, 2147483647
        %v1802 = vand.u32 %v1801, 65535
        %v1803 = vshra.s32 %v1801, 16
        %v1804 = vcvt.s32.f32 %v1802
        %v1805 = vcvt.s32.f32 %v1803
        %1806 = vmin.xlane.f32.xlu0 %v1805
        %v1807 = vpop.xlane.xlu0 %1806
        %vm1808 = vcmp.eq.f32.partialorder %v1805, %v1807
        %v1809 = vsel %vm1808, %v1804, inf
        %1810 = vmin.xlane.f32.xlu0 %v1809
        %v1811 = vpop.xlane.xlu0 %1810
        %v1812 = vcvt.f32.s32 %v1811
        %v1813 = vcvt.f32.s32 %v1807
        %v1814 = vshll.u32 %v1813, 16
        %v1815 = vadd.s32 %v1814, %v1812
        %v1816 = vsel %vm1306, %v1758, 2147483647
        %v1817 = vand.u32 %v1816, 65535
        %v1818 = vshra.s32 %v1816, 16
        %v1819 = vcvt.s32.f32 %v1817
        %v1820 = vcvt.s32.f32 %v1818
        %1821 = vmin.xlane.f32.xlu0 %v1820
        %v1822 = vpop.xlane.xlu0 %1821
        %vm1823 = vcmp.eq.f32.partialorder %v1820, %v1822
        %v1824 = vsel %vm1823, %v1819, inf
        %1825 = vmin.xlane.f32.xlu0 %v1824
        %v1826 = vpop.xlane.xlu0 %1825
        %v1827 = vcvt.f32.s32 %v1826
        %v1828 = vcvt.f32.s32 %v1822
        %v1829 = vshll.u32 %v1828, 16
        %v1830 = vadd.s32 %v1829, %v1827
        %v1831 = vsel %vm1306, %v1759, 2147483647
        %v1832 = vand.u32 %v1831, 65535
        %v1833 = vshra.s32 %v1831, 16
        %v1834 = vcvt.s32.f32 %v1832
        %v1835 = vcvt.s32.f32 %v1833
        %1836 = vmin.xlane.f32.xlu0 %v1835
        %v1837 = vpop.xlane.xlu0 %1836
        %vm1838 = vcmp.eq.f32.partialorder %v1835, %v1837
        %v1839 = vsel %vm1838, %v1834, inf
        %1840 = vmin.xlane.f32.xlu0 %v1839
        %v1841 = vpop.xlane.xlu0 %1840
        %v1842 = vcvt.f32.s32 %v1841
        %v1843 = vcvt.f32.s32 %v1837
        %v1844 = vshll.u32 %v1843, 16
        %v1845 = vadd.s32 %v1844, %v1842
        %v1846 = vsel %vm1306, %v1760, 2147483647
        %v1847 = vand.u32 %v1846, 65535
        %v1848 = vshra.s32 %v1846, 16
        %v1849 = vcvt.s32.f32 %v1847
        %v1850 = vcvt.s32.f32 %v1848
        %1851 = vmin.xlane.f32.xlu0 %v1850
        %v1852 = vpop.xlane.xlu0 %1851
        %vm1853 = vcmp.eq.f32.partialorder %v1850, %v1852
        %v1854 = vsel %vm1853, %v1849, inf
        %1855 = vmin.xlane.f32.xlu0 %v1854
        %v1856 = vpop.xlane.xlu0 %1855
        %v1857 = vcvt.f32.s32 %v1856
        %v1858 = vcvt.f32.s32 %v1852
        %v1859 = vshll.u32 %v1858, 16
        %v1860 = vadd.s32 %v1859, %v1857
        %v1861 = vsel %vm1306, %v1761, 2147483647
        %v1862 = vand.u32 %v1861, 65535
        %v1863 = vshra.s32 %v1861, 16
        %v1864 = vcvt.s32.f32 %v1862
        %v1865 = vcvt.s32.f32 %v1863
        %1866 = vmin.xlane.f32.xlu0 %v1865
        %v1867 = vpop.xlane.xlu0 %1866
        %vm1868 = vcmp.eq.f32.partialorder %v1865, %v1867
        %v1869 = vsel %vm1868, %v1864, inf
        %1870 = vmin.xlane.f32.xlu0 %v1869
        %v1871 = vpop.xlane.xlu0 %1870
        %v1872 = vcvt.f32.s32 %v1871
        %v1873 = vcvt.f32.s32 %v1867
        %v1874 = vshll.u32 %v1873, 16
        %v1875 = vadd.s32 %v1874, %v1872
        %v1876 = vsel %vm1306, %v1762, 2147483647
        %v1877 = vand.u32 %v1876, 65535
        %v1878 = vshra.s32 %v1876, 16
        %v1879 = vcvt.s32.f32 %v1877
        %v1880 = vcvt.s32.f32 %v1878
        %1881 = vmin.xlane.f32.xlu0 %v1880
        %v1882 = vpop.xlane.xlu0 %1881
        %vm1883 = vcmp.eq.f32.partialorder %v1880, %v1882
        %v1884 = vsel %vm1883, %v1879, inf
        %1885 = vmin.xlane.f32.xlu0 %v1884
        %v1886 = vpop.xlane.xlu0 %1885
        %v1887 = vcvt.f32.s32 %v1886
        %v1888 = vcvt.f32.s32 %v1882
        %v1889 = vshll.u32 %v1888, 16
        %v1890 = vadd.s32 %v1889, %v1887
        %v1891 = vsel %vm1306, %v1763, 2147483647
        %v1892 = vand.u32 %v1891, 65535
        %v1893 = vshra.s32 %v1891, 16
        %v1894 = vcvt.s32.f32 %v1892
        %v1895 = vcvt.s32.f32 %v1893
        %1896 = vmin.xlane.f32.xlu0 %v1895
        %v1897 = vpop.xlane.xlu0 %1896
        %vm1898 = vcmp.eq.f32.partialorder %v1895, %v1897
        %v1899 = vsel %vm1898, %v1894, inf
        %1900 = vmin.xlane.f32.xlu0 %v1899
        %v1901 = vpop.xlane.xlu0 %1900
        %v1902 = vcvt.f32.s32 %v1901
        %v1903 = vcvt.f32.s32 %v1897
        %v1904 = vshll.u32 %v1903, 16
        %v1905 = vadd.s32 %v1904, %v1902
        %v1906 = vsel %vm1306, %v1764, 2147483647
        %v1907 = vand.u32 %v1906, 65535
        %v1908 = vshra.s32 %v1906, 16
        %v1909 = vcvt.s32.f32 %v1907
        %v1910 = vcvt.s32.f32 %v1908
        %1911 = vmin.xlane.f32.xlu0 %v1910
        %v1912 = vpop.xlane.xlu0 %1911
        %vm1913 = vcmp.eq.f32.partialorder %v1910, %v1912
        %v1914 = vsel %vm1913, %v1909, inf
        %1915 = vmin.xlane.f32.xlu0 %v1914
        %v1916 = vpop.xlane.xlu0 %1915
        %v1917 = vcvt.f32.s32 %v1916
        %v1918 = vcvt.f32.s32 %v1912
        %v1919 = vshll.u32 %v1918, 16
        %v1920 = vadd.s32 %v1919, %v1917
        %v1921 = vsel %vm1306, %v1765, 2147483647
        %v1922 = vand.u32 %v1921, 65535
        %v1923 = vshra.s32 %v1921, 16
        %v1924 = vcvt.s32.f32 %v1922
        %v1925 = vcvt.s32.f32 %v1923
        %1926 = vmin.xlane.f32.xlu0 %v1925
        %v1927 = vpop.xlane.xlu0 %1926
        %vm1928 = vcmp.eq.f32.partialorder %v1925, %v1927
        %v1929 = vsel %vm1928, %v1924, inf
        %1930 = vmin.xlane.f32.xlu0 %v1929
        %v1931 = vpop.xlane.xlu0 %1930
        %v1932 = vcvt.f32.s32 %v1931
        %v1933 = vcvt.f32.s32 %v1927
        %v1934 = vshll.u32 %v1933, 16
        %v1935 = vadd.s32 %v1934, %v1932
        %v1936 = vsel %vm1306, %v1766, 2147483647
        %v1937 = vand.u32 %v1936, 65535
        %v1938 = vshra.s32 %v1936, 16
        %v1939 = vcvt.s32.f32 %v1937
        %v1940 = vcvt.s32.f32 %v1938
        %1941 = vmin.xlane.f32.xlu0 %v1940
        %v1942 = vpop.xlane.xlu0 %1941
        %vm1943 = vcmp.eq.f32.partialorder %v1940, %v1942
        %v1944 = vsel %vm1943, %v1939, inf
        %1945 = vmin.xlane.f32.xlu0 %v1944
        %v1946 = vpop.xlane.xlu0 %1945
        %v1947 = vcvt.f32.s32 %v1946
        %v1948 = vcvt.f32.s32 %v1942
        %v1949 = vshll.u32 %v1948, 16
        %v1950 = vadd.s32 %v1949, %v1947
        %v1951 = vsel %vm1306, %v1767, 2147483647
        %v1952 = vand.u32 %v1951, 65535
        %v1953 = vshra.s32 %v1951, 16
        %v1954 = vcvt.s32.f32 %v1952
        %v1955 = vcvt.s32.f32 %v1953
        %1956 = vmin.xlane.f32.xlu0 %v1955
        %v1957 = vpop.xlane.xlu0 %1956
        %vm1958 = vcmp.eq.f32.partialorder %v1955, %v1957
        %v1959 = vsel %vm1958, %v1954, inf
        %1960 = vmin.xlane.f32.xlu0 %v1959
        %v1961 = vpop.xlane.xlu0 %1960
        %v1962 = vcvt.f32.s32 %v1961
        %v1963 = vcvt.f32.s32 %v1957
        %v1964 = vshll.u32 %v1963, 16
        %v1965 = vadd.s32 %v1964, %v1962
        %v1966 = vsel %vm1306, %v1768, 2147483647
        %v1967 = vand.u32 %v1966, 65535
        %v1968 = vshra.s32 %v1966, 16
        %v1969 = vcvt.s32.f32 %v1967
        %v1970 = vcvt.s32.f32 %v1968
        %1971 = vmin.xlane.f32.xlu0 %v1970
        %v1972 = vpop.xlane.xlu0 %1971
        %vm1973 = vcmp.eq.f32.partialorder %v1970, %v1972
        %v1974 = vsel %vm1973, %v1969, inf
        %1975 = vmin.xlane.f32.xlu0 %v1974
        %v1976 = vpop.xlane.xlu0 %1975
        %v1977 = vcvt.f32.s32 %v1976
        %v1978 = vcvt.f32.s32 %v1972
        %v1979 = vshll.u32 %v1978, 16
        %v1980 = vadd.s32 %v1979, %v1977
        %v1981 = vsel %vm1306, %v1769, 2147483647
        %v1982 = vand.u32 %v1981, 65535
        %v1983 = vshra.s32 %v1981, 16
        %v1984 = vcvt.s32.f32 %v1982
        %v1985 = vcvt.s32.f32 %v1983
        %1986 = vmin.xlane.f32.xlu0 %v1985
        %v1987 = vpop.xlane.xlu0 %1986
        %vm1988 = vcmp.eq.f32.partialorder %v1985, %v1987
        %v1989 = vsel %vm1988, %v1984, inf
        %1990 = vmin.xlane.f32.xlu0 %v1989
        %v1991 = vpop.xlane.xlu0 %1990
        %v1992 = vcvt.f32.s32 %v1991
        %v1993 = vcvt.f32.s32 %v1987
        %v1994 = vshll.u32 %v1993, 16
        %v1995 = vadd.s32 %v1994, %v1992
        %v1996 = vsel %vm1306, %v1770, 2147483647
        %v1997 = vand.u32 %v1996, 65535
        %v1998 = vshra.s32 %v1996, 16
        %v1999 = vcvt.s32.f32 %v1997
        %v2000 = vcvt.s32.f32 %v1998
        %2001 = vmin.xlane.f32.xlu0 %v2000
        %v2002 = vpop.xlane.xlu0 %2001
        %vm2003 = vcmp.eq.f32.partialorder %v2000, %v2002
        %v2004 = vsel %vm2003, %v1999, inf
        %2005 = vmin.xlane.f32.xlu0 %v2004
        %v2006 = vpop.xlane.xlu0 %2005
        %v2007 = vcvt.f32.s32 %v2006
        %v2008 = vcvt.f32.s32 %v2002
        %v2009 = vshll.u32 %v2008, 16
        %v2010 = vadd.s32 %v2009, %v2007
        %vm2011 = vcmp.eq.s32.totalorder %v352, %v1785
        %vm2012 = vcmp.eq.s32.totalorder %v352, %v1800
        %vm2013 = vcmp.eq.s32.totalorder %v352, %v1815
        %vm2014 = vcmp.eq.s32.totalorder %v352, %v1830
        %vm2015 = vcmp.eq.s32.totalorder %v352, %v1845
        %vm2016 = vcmp.eq.s32.totalorder %v352, %v1860
        %vm2017 = vcmp.eq.s32.totalorder %v352, %v1875
        %vm2018 = vcmp.eq.s32.totalorder %v352, %v1890
        %vm2019 = vcmp.eq.s32.totalorder %v352, %v1905
        %vm2020 = vcmp.eq.s32.totalorder %v352, %v1920
        %vm2021 = vcmp.eq.s32.totalorder %v352, %v1935
        %vm2022 = vcmp.eq.s32.totalorder %v352, %v1950
        %vm2023 = vcmp.eq.s32.totalorder %v352, %v1965
        %vm2024 = vcmp.eq.s32.totalorder %v352, %v1980
        %vm2025 = vcmp.eq.s32.totalorder %v352, %v1995
        %vm2026 = vcmp.eq.s32.totalorder %v352, %v2010
        %v2027 = vsel %vm2011, inf, %v689
        %v2028 = vsel %vm2012, inf, %v694
        %v2029 = vsel %vm2013, inf, %v776
        %v2030 = vsel %vm2014, inf, %v781
        %v2031 = vsel %vm2015, inf, %v863
        %v2032 = vsel %vm2016, inf, %v868
        %v2033 = vsel %vm2017, inf, %v950
        %v2034 = vsel %vm2018, inf, %v955
        %v2035 = vsel %vm2019, inf, %v1037
        %v2036 = vsel %vm2020, inf, %v1042
        %v2037 = vsel %vm2021, inf, %v1124
        %v2038 = vsel %vm2022, inf, %v1129
        %v2039 = vsel %vm2023, inf, %v1211
        %v2040 = vsel %vm2024, inf, %v1216
        %v2041 = vsel %vm2025, inf, %v1298
        %v2042 = vsel %vm2026, inf, %v1303
        %v2043 = vsel %vm1306, %v1659, -inf
        %2044 = vmax.xlane.f32.xlu0 %v2043
        %v2045 = vpop.xlane.xlu0 %2044
        %v2046 = vsel %vm1306, %v1660, -inf
        %2047 = vmax.xlane.f32.xlu0 %v2046
        %v2048 = vpop.xlane.xlu0 %2047
        %v2049 = vsel %vm1306, %v1661, -inf
        %2050 = vmax.xlane.f32.xlu0 %v2049
        %v2051 = vpop.xlane.xlu0 %2050
        %v2052 = vsel %vm1306, %v1662, -inf
        %2053 = vmax.xlane.f32.xlu0 %v2052
        %v2054 = vpop.xlane.xlu0 %2053
        %v2055 = vsel %vm1306, %v1663, -inf
        %2056 = vmax.xlane.f32.xlu0 %v2055
        %v2057 = vpop.xlane.xlu0 %2056
        %v2058 = vsel %vm1306, %v1664, -inf
        %2059 = vmax.xlane.f32.xlu0 %v2058
        %v2060 = vpop.xlane.xlu0 %2059
        %v2061 = vsel %vm1306, %v1665, -inf
        %2062 = vmax.xlane.f32.xlu0 %v2061
        %v2063 = vpop.xlane.xlu0 %2062
        %v2064 = vsel %vm1306, %v1666, -inf
        %2065 = vmax.xlane.f32.xlu0 %v2064
        %v2066 = vpop.xlane.xlu0 %2065
        %v2067 = vsel %vm1306, %v1667, -inf
        %2068 = vmax.xlane.f32.xlu0 %v2067
        %v2069 = vpop.xlane.xlu0 %2068
        %v2070 = vsel %vm1306, %v1668, -inf
        %2071 = vmax.xlane.f32.xlu0 %v2070
        %v2072 = vpop.xlane.xlu0 %2071
        %v2073 = vsel %vm1306, %v1669, -inf
        %2074 = vmax.xlane.f32.xlu0 %v2073
        %v2075 = vpop.xlane.xlu0 %2074
        %v2076 = vsel %vm1306, %v1670, -inf
        %2077 = vmax.xlane.f32.xlu0 %v2076
        %v2078 = vpop.xlane.xlu0 %2077
        %v2079 = vsel %vm1306, %v1671, -inf
        %2080 = vmax.xlane.f32.xlu0 %v2079
        %v2081 = vpop.xlane.xlu0 %2080
        %v2082 = vsel %vm1306, %v1672, -inf
        %2083 = vmax.xlane.f32.xlu0 %v2082
        %v2084 = vpop.xlane.xlu0 %2083
        %v2085 = vsel %vm1306, %v1673, -inf
        %2086 = vmax.xlane.f32.xlu0 %v2085
        %v2087 = vpop.xlane.xlu0 %2086
        %v2088 = vsel %vm1306, %v1674, -inf
        %2089 = vmax.xlane.f32.xlu0 %v2088
        %v2090 = vpop.xlane.xlu0 %2089
        %v2091 = vadd.f32 %v1355, %v2045
        %v2092 = vadd.f32 %v1356, %v2048
        %v2093 = vadd.f32 %v1357, %v2051
        %v2094 = vadd.f32 %v1358, %v2054
        %v2095 = vadd.f32 %v1359, %v2057
        %v2096 = vadd.f32 %v1360, %v2060
        %v2097 = vadd.f32 %v1361, %v2063
        %v2098 = vadd.f32 %v1362, %v2066
        %v2099 = vadd.f32 %v1363, %v2069
        %v2100 = vadd.f32 %v1364, %v2072
        %v2101 = vadd.f32 %v1365, %v2075
        %v2102 = vadd.f32 %v1366, %v2078
        %v2103 = vadd.f32 %v1367, %v2081
        %v2104 = vadd.f32 %v1368, %v2084
        %v2105 = vadd.f32 %v1369, %v2087
        %v2106 = vadd.f32 %v1370, %v2090
        %vm2107 = vcmp.eq.f32.partialorder %v1659, %v2045
        %vm2108 = vcmp.eq.f32.partialorder %v1660, %v2048
        %vm2109 = vcmp.eq.f32.partialorder %v1661, %v2051
        %vm2110 = vcmp.eq.f32.partialorder %v1662, %v2054
        %vm2111 = vcmp.eq.f32.partialorder %v1663, %v2057
        %vm2112 = vcmp.eq.f32.partialorder %v1664, %v2060
        %vm2113 = vcmp.eq.f32.partialorder %v1665, %v2063
        %vm2114 = vcmp.eq.f32.partialorder %v1666, %v2066
        %vm2115 = vcmp.eq.f32.partialorder %v1667, %v2069
        %vm2116 = vcmp.eq.f32.partialorder %v1668, %v2072
        %vm2117 = vcmp.eq.f32.partialorder %v1669, %v2075
        %vm2118 = vcmp.eq.f32.partialorder %v1670, %v2078
        %vm2119 = vcmp.eq.f32.partialorder %v1671, %v2081
        %vm2120 = vcmp.eq.f32.partialorder %v1672, %v2084
        %vm2121 = vcmp.eq.f32.partialorder %v1673, %v2087
        %vm2122 = vcmp.eq.f32.partialorder %v1674, %v2090
        %v2123 = vsel %vm2107, %v352, 16
        %v2124 = vsel %vm2108, %v352, 16
        %v2125 = vsel %vm2109, %v352, 16
        %v2126 = vsel %vm2110, %v352, 16
        %v2127 = vsel %vm2111, %v352, 16
        %v2128 = vsel %vm2112, %v352, 16
        %v2129 = vsel %vm2113, %v352, 16
        %v2130 = vsel %vm2114, %v352, 16
        %v2131 = vsel %vm2115, %v352, 16
        %v2132 = vsel %vm2116, %v352, 16
        %v2133 = vsel %vm2117, %v352, 16
        %v2134 = vsel %vm2118, %v352, 16
        %v2135 = vsel %vm2119, %v352, 16
        %v2136 = vsel %vm2120, %v352, 16
        %v2137 = vsel %vm2121, %v352, 16
        %v2138 = vsel %vm2122, %v352, 16
        %v2139 = vsel %vm1306, %v2123, 2147483647
        %v2140 = vand.u32 %v2139, 65535
        %v2141 = vshra.s32 %v2139, 16
        %v2142 = vcvt.s32.f32 %v2140
        %v2143 = vcvt.s32.f32 %v2141
        %2144 = vmin.xlane.f32.xlu0 %v2143
        %v2145 = vpop.xlane.xlu0 %2144
        %vm2146 = vcmp.eq.f32.partialorder %v2143, %v2145
        %v2147 = vsel %vm2146, %v2142, inf
        %2148 = vmin.xlane.f32.xlu0 %v2147
        %v2149 = vpop.xlane.xlu0 %2148
        %v2150 = vcvt.f32.s32 %v2149
        %v2151 = vcvt.f32.s32 %v2145
        %v2152 = vshll.u32 %v2151, 16
        %v2153 = vadd.s32 %v2152, %v2150
        %v2154 = vsel %vm1306, %v2124, 2147483647
        %v2155 = vand.u32 %v2154, 65535
        %v2156 = vshra.s32 %v2154, 16
        %v2157 = vcvt.s32.f32 %v2155
        %v2158 = vcvt.s32.f32 %v2156
        %2159 = vmin.xlane.f32.xlu0 %v2158
        %v2160 = vpop.xlane.xlu0 %2159
        %vm2161 = vcmp.eq.f32.partialorder %v2158, %v2160
        %v2162 = vsel %vm2161, %v2157, inf
        %2163 = vmin.xlane.f32.xlu0 %v2162
        %v2164 = vpop.xlane.xlu0 %2163
        %v2165 = vcvt.f32.s32 %v2164
        %v2166 = vcvt.f32.s32 %v2160
        %v2167 = vshll.u32 %v2166, 16
        %v2168 = vadd.s32 %v2167, %v2165
        %v2169 = vsel %vm1306, %v2125, 2147483647
        %v2170 = vand.u32 %v2169, 65535
        %v2171 = vshra.s32 %v2169, 16
        %v2172 = vcvt.s32.f32 %v2170
        %v2173 = vcvt.s32.f32 %v2171
        %2174 = vmin.xlane.f32.xlu0 %v2173
        %v2175 = vpop.xlane.xlu0 %2174
        %vm2176 = vcmp.eq.f32.partialorder %v2173, %v2175
        %v2177 = vsel %vm2176, %v2172, inf
        %2178 = vmin.xlane.f32.xlu0 %v2177
        %v2179 = vpop.xlane.xlu0 %2178
        %v2180 = vcvt.f32.s32 %v2179
        %v2181 = vcvt.f32.s32 %v2175
        %v2182 = vshll.u32 %v2181, 16
        %v2183 = vadd.s32 %v2182, %v2180
        %v2184 = vsel %vm1306, %v2126, 2147483647
        %v2185 = vand.u32 %v2184, 65535
        %v2186 = vshra.s32 %v2184, 16
        %v2187 = vcvt.s32.f32 %v2185
        %v2188 = vcvt.s32.f32 %v2186
        %2189 = vmin.xlane.f32.xlu0 %v2188
        %v2190 = vpop.xlane.xlu0 %2189
        %vm2191 = vcmp.eq.f32.partialorder %v2188, %v2190
        %v2192 = vsel %vm2191, %v2187, inf
        %2193 = vmin.xlane.f32.xlu0 %v2192
        %v2194 = vpop.xlane.xlu0 %2193
        %v2195 = vcvt.f32.s32 %v2194
        %v2196 = vcvt.f32.s32 %v2190
        %v2197 = vshll.u32 %v2196, 16
        %v2198 = vadd.s32 %v2197, %v2195
        %v2199 = vsel %vm1306, %v2127, 2147483647
        %v2200 = vand.u32 %v2199, 65535
        %v2201 = vshra.s32 %v2199, 16
        %v2202 = vcvt.s32.f32 %v2200
        %v2203 = vcvt.s32.f32 %v2201
        %2204 = vmin.xlane.f32.xlu0 %v2203
        %v2205 = vpop.xlane.xlu0 %2204
        %vm2206 = vcmp.eq.f32.partialorder %v2203, %v2205
        %v2207 = vsel %vm2206, %v2202, inf
        %2208 = vmin.xlane.f32.xlu0 %v2207
        %v2209 = vpop.xlane.xlu0 %2208
        %v2210 = vcvt.f32.s32 %v2209
        %v2211 = vcvt.f32.s32 %v2205
        %v2212 = vshll.u32 %v2211, 16
        %v2213 = vadd.s32 %v2212, %v2210
        %v2214 = vsel %vm1306, %v2128, 2147483647
        %v2215 = vand.u32 %v2214, 65535
        %v2216 = vshra.s32 %v2214, 16
        %v2217 = vcvt.s32.f32 %v2215
        %v2218 = vcvt.s32.f32 %v2216
        %2219 = vmin.xlane.f32.xlu0 %v2218
        %v2220 = vpop.xlane.xlu0 %2219
        %vm2221 = vcmp.eq.f32.partialorder %v2218, %v2220
        %v2222 = vsel %vm2221, %v2217, inf
        %2223 = vmin.xlane.f32.xlu0 %v2222
        %v2224 = vpop.xlane.xlu0 %2223
        %v2225 = vcvt.f32.s32 %v2224
        %v2226 = vcvt.f32.s32 %v2220
        %v2227 = vshll.u32 %v2226, 16
        %v2228 = vadd.s32 %v2227, %v2225
        %v2229 = vsel %vm1306, %v2129, 2147483647
        %v2230 = vand.u32 %v2229, 65535
        %v2231 = vshra.s32 %v2229, 16
        %v2232 = vcvt.s32.f32 %v2230
        %v2233 = vcvt.s32.f32 %v2231
        %2234 = vmin.xlane.f32.xlu0 %v2233
        %v2235 = vpop.xlane.xlu0 %2234
        %vm2236 = vcmp.eq.f32.partialorder %v2233, %v2235
        %v2237 = vsel %vm2236, %v2232, inf
        %2238 = vmin.xlane.f32.xlu0 %v2237
        %v2239 = vpop.xlane.xlu0 %2238
        %v2240 = vcvt.f32.s32 %v2239
        %v2241 = vcvt.f32.s32 %v2235
        %v2242 = vshll.u32 %v2241, 16
        %v2243 = vadd.s32 %v2242, %v2240
        %v2244 = vsel %vm1306, %v2130, 2147483647
        %v2245 = vand.u32 %v2244, 65535
        %v2246 = vshra.s32 %v2244, 16
        %v2247 = vcvt.s32.f32 %v2245
        %v2248 = vcvt.s32.f32 %v2246
        %2249 = vmin.xlane.f32.xlu0 %v2248
        %v2250 = vpop.xlane.xlu0 %2249
        %vm2251 = vcmp.eq.f32.partialorder %v2248, %v2250
        %v2252 = vsel %vm2251, %v2247, inf
        %2253 = vmin.xlane.f32.xlu0 %v2252
        %v2254 = vpop.xlane.xlu0 %2253
        %v2255 = vcvt.f32.s32 %v2254
        %v2256 = vcvt.f32.s32 %v2250
        %v2257 = vshll.u32 %v2256, 16
        %v2258 = vadd.s32 %v2257, %v2255
        %v2259 = vsel %vm1306, %v2131, 2147483647
        %v2260 = vand.u32 %v2259, 65535
        %v2261 = vshra.s32 %v2259, 16
        %v2262 = vcvt.s32.f32 %v2260
        %v2263 = vcvt.s32.f32 %v2261
        %2264 = vmin.xlane.f32.xlu0 %v2263
        %v2265 = vpop.xlane.xlu0 %2264
        %vm2266 = vcmp.eq.f32.partialorder %v2263, %v2265
        %v2267 = vsel %vm2266, %v2262, inf
        %2268 = vmin.xlane.f32.xlu0 %v2267
        %v2269 = vpop.xlane.xlu0 %2268
        %v2270 = vcvt.f32.s32 %v2269
        %v2271 = vcvt.f32.s32 %v2265
        %v2272 = vshll.u32 %v2271, 16
        %v2273 = vadd.s32 %v2272, %v2270
        %v2274 = vsel %vm1306, %v2132, 2147483647
        %v2275 = vand.u32 %v2274, 65535
        %v2276 = vshra.s32 %v2274, 16
        %v2277 = vcvt.s32.f32 %v2275
        %v2278 = vcvt.s32.f32 %v2276
        %2279 = vmin.xlane.f32.xlu0 %v2278
        %v2280 = vpop.xlane.xlu0 %2279
        %vm2281 = vcmp.eq.f32.partialorder %v2278, %v2280
        %v2282 = vsel %vm2281, %v2277, inf
        %2283 = vmin.xlane.f32.xlu0 %v2282
        %v2284 = vpop.xlane.xlu0 %2283
        %v2285 = vcvt.f32.s32 %v2284
        %v2286 = vcvt.f32.s32 %v2280
        %v2287 = vshll.u32 %v2286, 16
        %v2288 = vadd.s32 %v2287, %v2285
        %v2289 = vsel %vm1306, %v2133, 2147483647
        %v2290 = vand.u32 %v2289, 65535
        %v2291 = vshra.s32 %v2289, 16
        %v2292 = vcvt.s32.f32 %v2290
        %v2293 = vcvt.s32.f32 %v2291
        %2294 = vmin.xlane.f32.xlu0 %v2293
        %v2295 = vpop.xlane.xlu0 %2294
        %vm2296 = vcmp.eq.f32.partialorder %v2293, %v2295
        %v2297 = vsel %vm2296, %v2292, inf
        %2298 = vmin.xlane.f32.xlu0 %v2297
        %v2299 = vpop.xlane.xlu0 %2298
        %v2300 = vcvt.f32.s32 %v2299
        %v2301 = vcvt.f32.s32 %v2295
        %v2302 = vshll.u32 %v2301, 16
        %v2303 = vadd.s32 %v2302, %v2300
        %v2304 = vsel %vm1306, %v2134, 2147483647
        %v2305 = vand.u32 %v2304, 65535
        %v2306 = vshra.s32 %v2304, 16
        %v2307 = vcvt.s32.f32 %v2305
        %v2308 = vcvt.s32.f32 %v2306
        %2309 = vmin.xlane.f32.xlu0 %v2308
        %v2310 = vpop.xlane.xlu0 %2309
        %vm2311 = vcmp.eq.f32.partialorder %v2308, %v2310
        %v2312 = vsel %vm2311, %v2307, inf
        %2313 = vmin.xlane.f32.xlu0 %v2312
        %v2314 = vpop.xlane.xlu0 %2313
        %v2315 = vcvt.f32.s32 %v2314
        %v2316 = vcvt.f32.s32 %v2310
        %v2317 = vshll.u32 %v2316, 16
        %v2318 = vadd.s32 %v2317, %v2315
        %v2319 = vsel %vm1306, %v2135, 2147483647
        %v2320 = vand.u32 %v2319, 65535
        %v2321 = vshra.s32 %v2319, 16
        %v2322 = vcvt.s32.f32 %v2320
        %v2323 = vcvt.s32.f32 %v2321
        %2324 = vmin.xlane.f32.xlu0 %v2323
        %v2325 = vpop.xlane.xlu0 %2324
        %vm2326 = vcmp.eq.f32.partialorder %v2323, %v2325
        %v2327 = vsel %vm2326, %v2322, inf
        %2328 = vmin.xlane.f32.xlu0 %v2327
        %v2329 = vpop.xlane.xlu0 %2328
        %v2330 = vcvt.f32.s32 %v2329
        %v2331 = vcvt.f32.s32 %v2325
        %v2332 = vshll.u32 %v2331, 16
        %v2333 = vadd.s32 %v2332, %v2330
        %v2334 = vsel %vm1306, %v2136, 2147483647
        %v2335 = vand.u32 %v2334, 65535
        %v2336 = vshra.s32 %v2334, 16
        %v2337 = vcvt.s32.f32 %v2335
        %v2338 = vcvt.s32.f32 %v2336
        %2339 = vmin.xlane.f32.xlu0 %v2338
        %v2340 = vpop.xlane.xlu0 %2339
        %vm2341 = vcmp.eq.f32.partialorder %v2338, %v2340
        %v2342 = vsel %vm2341, %v2337, inf
        %2343 = vmin.xlane.f32.xlu0 %v2342
        %v2344 = vpop.xlane.xlu0 %2343
        %v2345 = vcvt.f32.s32 %v2344
        %v2346 = vcvt.f32.s32 %v2340
        %v2347 = vshll.u32 %v2346, 16
        %v2348 = vadd.s32 %v2347, %v2345
        %v2349 = vsel %vm1306, %v2137, 2147483647
        %v2350 = vand.u32 %v2349, 65535
        %v2351 = vshra.s32 %v2349, 16
        %v2352 = vcvt.s32.f32 %v2350
        %v2353 = vcvt.s32.f32 %v2351
        %2354 = vmin.xlane.f32.xlu0 %v2353
        %v2355 = vpop.xlane.xlu0 %2354
        %vm2356 = vcmp.eq.f32.partialorder %v2353, %v2355
        %v2357 = vsel %vm2356, %v2352, inf
        %2358 = vmin.xlane.f32.xlu0 %v2357
        %v2359 = vpop.xlane.xlu0 %2358
        %v2360 = vcvt.f32.s32 %v2359
        %v2361 = vcvt.f32.s32 %v2355
        %v2362 = vshll.u32 %v2361, 16
        %v2363 = vadd.s32 %v2362, %v2360
        %v2364 = vsel %vm1306, %v2138, 2147483647
        %v2365 = vand.u32 %v2364, 65535
        %v2366 = vshra.s32 %v2364, 16
        %v2367 = vcvt.s32.f32 %v2365
        %v2368 = vcvt.s32.f32 %v2366
        %2369 = vmin.xlane.f32.xlu0 %v2368
        %v2370 = vpop.xlane.xlu0 %2369
        %vm2371 = vcmp.eq.f32.partialorder %v2368, %v2370
        %v2372 = vsel %vm2371, %v2367, inf
        %2373 = vmin.xlane.f32.xlu0 %v2372
        %v2374 = vpop.xlane.xlu0 %2373
        %v2375 = vcvt.f32.s32 %v2374
        %v2376 = vcvt.f32.s32 %v2370
        %v2377 = vshll.u32 %v2376, 16
        %v2378 = vadd.s32 %v2377, %v2375
        %vm2379 = vcmp.eq.s32.totalorder %v352, %v2153
        %vm2380 = vcmp.eq.s32.totalorder %v352, %v2168
        %vm2381 = vcmp.eq.s32.totalorder %v352, %v2183
        %vm2382 = vcmp.eq.s32.totalorder %v352, %v2198
        %vm2383 = vcmp.eq.s32.totalorder %v352, %v2213
        %vm2384 = vcmp.eq.s32.totalorder %v352, %v2228
        %vm2385 = vcmp.eq.s32.totalorder %v352, %v2243
        %vm2386 = vcmp.eq.s32.totalorder %v352, %v2258
        %vm2387 = vcmp.eq.s32.totalorder %v352, %v2273
        %vm2388 = vcmp.eq.s32.totalorder %v352, %v2288
        %vm2389 = vcmp.eq.s32.totalorder %v352, %v2303
        %vm2390 = vcmp.eq.s32.totalorder %v352, %v2318
        %vm2391 = vcmp.eq.s32.totalorder %v352, %v2333
        %vm2392 = vcmp.eq.s32.totalorder %v352, %v2348
        %vm2393 = vcmp.eq.s32.totalorder %v352, %v2363
        %vm2394 = vcmp.eq.s32.totalorder %v352, %v2378
        %v2395 = vsel %vm2379, -inf, %v1659
        %v2396 = vsel %vm2380, -inf, %v1660
        %v2397 = vsel %vm2381, -inf, %v1661
        %v2398 = vsel %vm2382, -inf, %v1662
        %v2399 = vsel %vm2383, -inf, %v1663
        %v2400 = vsel %vm2384, -inf, %v1664
        %v2401 = vsel %vm2385, -inf, %v1665
        %v2402 = vsel %vm2386, -inf, %v1666
        %v2403 = vsel %vm2387, -inf, %v1667
        %v2404 = vsel %vm2388, -inf, %v1668
        %v2405 = vsel %vm2389, -inf, %v1669
        %v2406 = vsel %vm2390, -inf, %v1670
        %v2407 = vsel %vm2391, -inf, %v1671
        %v2408 = vsel %vm2392, -inf, %v1672
        %v2409 = vsel %vm2393, -inf, %v1673
        %v2410 = vsel %vm2394, -inf, %v1674
        %v2411 = vsel %vm1306, %v2027, inf
        %2412 = vmin.xlane.f32.xlu0 %v2411
        %v2413 = vpop.xlane.xlu0 %2412
        %v2414 = vsel %vm1306, %v2028, inf
        %2415 = vmin.xlane.f32.xlu0 %v2414
        %v2416 = vpop.xlane.xlu0 %2415
        %v2417 = vsel %vm1306, %v2029, inf
        %2418 = vmin.xlane.f32.xlu0 %v2417
        %v2419 = vpop.xlane.xlu0 %2418
        %v2420 = vsel %vm1306, %v2030, inf
        %2421 = vmin.xlane.f32.xlu0 %v2420
        %v2422 = vpop.xlane.xlu0 %2421
        %v2423 = vsel %vm1306, %v2031, inf
        %2424 = vmin.xlane.f32.xlu0 %v2423
        %v2425 = vpop.xlane.xlu0 %2424
        %v2426 = vsel %vm1306, %v2032, inf
        %2427 = vmin.xlane.f32.xlu0 %v2426
        %v2428 = vpop.xlane.xlu0 %2427
        %v2429 = vsel %vm1306, %v2033, inf
        %2430 = vmin.xlane.f32.xlu0 %v2429
        %v2431 = vpop.xlane.xlu0 %2430
        %v2432 = vsel %vm1306, %v2034, inf
        %2433 = vmin.xlane.f32.xlu0 %v2432
        %v2434 = vpop.xlane.xlu0 %2433
        %v2435 = vsel %vm1306, %v2035, inf
        %2436 = vmin.xlane.f32.xlu0 %v2435
        %v2437 = vpop.xlane.xlu0 %2436
        %v2438 = vsel %vm1306, %v2036, inf
        %2439 = vmin.xlane.f32.xlu0 %v2438
        %v2440 = vpop.xlane.xlu0 %2439
        %v2441 = vsel %vm1306, %v2037, inf
        %2442 = vmin.xlane.f32.xlu0 %v2441
        %v2443 = vpop.xlane.xlu0 %2442
        %v2444 = vsel %vm1306, %v2038, inf
        %2445 = vmin.xlane.f32.xlu0 %v2444
        %v2446 = vpop.xlane.xlu0 %2445
        %v2447 = vsel %vm1306, %v2039, inf
        %2448 = vmin.xlane.f32.xlu0 %v2447
        %v2449 = vpop.xlane.xlu0 %2448
        %v2450 = vsel %vm1306, %v2040, inf
        %2451 = vmin.xlane.f32.xlu0 %v2450
        %v2452 = vpop.xlane.xlu0 %2451
        %v2453 = vsel %vm1306, %v2041, inf
        %2454 = vmin.xlane.f32.xlu0 %v2453
        %v2455 = vpop.xlane.xlu0 %2454
        %v2456 = vsel %vm1306, %v2042, inf
        %2457 = vmin.xlane.f32.xlu0 %v2456
        %v2458 = vpop.xlane.xlu0 %2457
        %v2459 = vsub.f32 %v1723, %v2413
        %v2460 = vsub.f32 %v1724, %v2416
        %v2461 = vsub.f32 %v1725, %v2419
        %v2462 = vsub.f32 %v1726, %v2422
        %v2463 = vsub.f32 %v1727, %v2425
        %v2464 = vsub.f32 %v1728, %v2428
        %v2465 = vsub.f32 %v1729, %v2431
        %v2466 = vsub.f32 %v1730, %v2434
        %v2467 = vsub.f32 %v1731, %v2437
        %v2468 = vsub.f32 %v1732, %v2440
        %v2469 = vsub.f32 %v1733, %v2443
        %v2470 = vsub.f32 %v1734, %v2446
        %v2471 = vsub.f32 %v1735, %v2449
        %v2472 = vsub.f32 %v1736, %v2452
        %v2473 = vsub.f32 %v1737, %v2455
        %v2474 = vsub.f32 %v1738, %v2458
        %vm2475 = vcmp.eq.f32.partialorder %v2027, %v2413
        %vm2476 = vcmp.eq.f32.partialorder %v2028, %v2416
        %vm2477 = vcmp.eq.f32.partialorder %v2029, %v2419
        %vm2478 = vcmp.eq.f32.partialorder %v2030, %v2422
        %vm2479 = vcmp.eq.f32.partialorder %v2031, %v2425
        %vm2480 = vcmp.eq.f32.partialorder %v2032, %v2428
        %vm2481 = vcmp.eq.f32.partialorder %v2033, %v2431
        %vm2482 = vcmp.eq.f32.partialorder %v2034, %v2434
        %vm2483 = vcmp.eq.f32.partialorder %v2035, %v2437
        %vm2484 = vcmp.eq.f32.partialorder %v2036, %v2440
        %vm2485 = vcmp.eq.f32.partialorder %v2037, %v2443
        %vm2486 = vcmp.eq.f32.partialorder %v2038, %v2446
        %vm2487 = vcmp.eq.f32.partialorder %v2039, %v2449
        %vm2488 = vcmp.eq.f32.partialorder %v2040, %v2452
        %vm2489 = vcmp.eq.f32.partialorder %v2041, %v2455
        %vm2490 = vcmp.eq.f32.partialorder %v2042, %v2458
        %v2491 = vsel %vm2475, %v352, 16
        %v2492 = vsel %vm2476, %v352, 16
        %v2493 = vsel %vm2477, %v352, 16
        %v2494 = vsel %vm2478, %v352, 16
        %v2495 = vsel %vm2479, %v352, 16
        %v2496 = vsel %vm2480, %v352, 16
        %v2497 = vsel %vm2481, %v352, 16
        %v2498 = vsel %vm2482, %v352, 16
        %v2499 = vsel %vm2483, %v352, 16
        %v2500 = vsel %vm2484, %v352, 16
        %v2501 = vsel %vm2485, %v352, 16
        %v2502 = vsel %vm2486, %v352, 16
        %v2503 = vsel %vm2487, %v352, 16
        %v2504 = vsel %vm2488, %v352, 16
        %v2505 = vsel %vm2489, %v352, 16
        %v2506 = vsel %vm2490, %v352, 16
        %v2507 = vsel %vm1306, %v2491, 2147483647
        %v2508 = vand.u32 %v2507, 65535
        %v2509 = vshra.s32 %v2507, 16
        %v2510 = vcvt.s32.f32 %v2508
        %v2511 = vcvt.s32.f32 %v2509
        %2512 = vmin.xlane.f32.xlu0 %v2511
        %v2513 = vpop.xlane.xlu0 %2512
        %vm2514 = vcmp.eq.f32.partialorder %v2511, %v2513
        %v2515 = vsel %vm2514, %v2510, inf
        %2516 = vmin.xlane.f32.xlu0 %v2515
        %v2517 = vpop.xlane.xlu0 %2516
        %v2518 = vcvt.f32.s32 %v2517
        %v2519 = vcvt.f32.s32 %v2513
        %v2520 = vshll.u32 %v2519, 16
        %v2521 = vadd.s32 %v2520, %v2518
        %v2522 = vsel %vm1306, %v2492, 2147483647
        %v2523 = vand.u32 %v2522, 65535
        %v2524 = vshra.s32 %v2522, 16
        %v2525 = vcvt.s32.f32 %v2523
        %v2526 = vcvt.s32.f32 %v2524
        %2527 = vmin.xlane.f32.xlu0 %v2526
        %v2528 = vpop.xlane.xlu0 %2527
        %vm2529 = vcmp.eq.f32.partialorder %v2526, %v2528
        %v2530 = vsel %vm2529, %v2525, inf
        %2531 = vmin.xlane.f32.xlu0 %v2530
        %v2532 = vpop.xlane.xlu0 %2531
        %v2533 = vcvt.f32.s32 %v2532
        %v2534 = vcvt.f32.s32 %v2528
        %v2535 = vshll.u32 %v2534, 16
        %v2536 = vadd.s32 %v2535, %v2533
        %v2537 = vsel %vm1306, %v2493, 2147483647
        %v2538 = vand.u32 %v2537, 65535
        %v2539 = vshra.s32 %v2537, 16
        %v2540 = vcvt.s32.f32 %v2538
        %v2541 = vcvt.s32.f32 %v2539
        %2542 = vmin.xlane.f32.xlu0 %v2541
        %v2543 = vpop.xlane.xlu0 %2542
        %vm2544 = vcmp.eq.f32.partialorder %v2541, %v2543
        %v2545 = vsel %vm2544, %v2540, inf
        %2546 = vmin.xlane.f32.xlu0 %v2545
        %v2547 = vpop.xlane.xlu0 %2546
        %v2548 = vcvt.f32.s32 %v2547
        %v2549 = vcvt.f32.s32 %v2543
        %v2550 = vshll.u32 %v2549, 16
        %v2551 = vadd.s32 %v2550, %v2548
        %v2552 = vsel %vm1306, %v2494, 2147483647
        %v2553 = vand.u32 %v2552, 65535
        %v2554 = vshra.s32 %v2552, 16
        %v2555 = vcvt.s32.f32 %v2553
        %v2556 = vcvt.s32.f32 %v2554
        %2557 = vmin.xlane.f32.xlu0 %v2556
        %v2558 = vpop.xlane.xlu0 %2557
        %vm2559 = vcmp.eq.f32.partialorder %v2556, %v2558
        %v2560 = vsel %vm2559, %v2555, inf
        %2561 = vmin.xlane.f32.xlu0 %v2560
        %v2562 = vpop.xlane.xlu0 %2561
        %v2563 = vcvt.f32.s32 %v2562
        %v2564 = vcvt.f32.s32 %v2558
        %v2565 = vshll.u32 %v2564, 16
        %v2566 = vadd.s32 %v2565, %v2563
        %v2567 = vsel %vm1306, %v2495, 2147483647
        %v2568 = vand.u32 %v2567, 65535
        %v2569 = vshra.s32 %v2567, 16
        %v2570 = vcvt.s32.f32 %v2568
        %v2571 = vcvt.s32.f32 %v2569
        %2572 = vmin.xlane.f32.xlu0 %v2571
        %v2573 = vpop.xlane.xlu0 %2572
        %vm2574 = vcmp.eq.f32.partialorder %v2571, %v2573
        %v2575 = vsel %vm2574, %v2570, inf
        %2576 = vmin.xlane.f32.xlu0 %v2575
        %v2577 = vpop.xlane.xlu0 %2576
        %v2578 = vcvt.f32.s32 %v2577
        %v2579 = vcvt.f32.s32 %v2573
        %v2580 = vshll.u32 %v2579, 16
        %v2581 = vadd.s32 %v2580, %v2578
        %v2582 = vsel %vm1306, %v2496, 2147483647
        %v2583 = vand.u32 %v2582, 65535
        %v2584 = vshra.s32 %v2582, 16
        %v2585 = vcvt.s32.f32 %v2583
        %v2586 = vcvt.s32.f32 %v2584
        %2587 = vmin.xlane.f32.xlu0 %v2586
        %v2588 = vpop.xlane.xlu0 %2587
        %vm2589 = vcmp.eq.f32.partialorder %v2586, %v2588
        %v2590 = vsel %vm2589, %v2585, inf
        %2591 = vmin.xlane.f32.xlu0 %v2590
        %v2592 = vpop.xlane.xlu0 %2591
        %v2593 = vcvt.f32.s32 %v2592
        %v2594 = vcvt.f32.s32 %v2588
        %v2595 = vshll.u32 %v2594, 16
        %v2596 = vadd.s32 %v2595, %v2593
        %v2597 = vsel %vm1306, %v2497, 2147483647
        %v2598 = vand.u32 %v2597, 65535
        %v2599 = vshra.s32 %v2597, 16
        %v2600 = vcvt.s32.f32 %v2598
        %v2601 = vcvt.s32.f32 %v2599
        %2602 = vmin.xlane.f32.xlu0 %v2601
        %v2603 = vpop.xlane.xlu0 %2602
        %vm2604 = vcmp.eq.f32.partialorder %v2601, %v2603
        %v2605 = vsel %vm2604, %v2600, inf
        %2606 = vmin.xlane.f32.xlu0 %v2605
        %v2607 = vpop.xlane.xlu0 %2606
        %v2608 = vcvt.f32.s32 %v2607
        %v2609 = vcvt.f32.s32 %v2603
        %v2610 = vshll.u32 %v2609, 16
        %v2611 = vadd.s32 %v2610, %v2608
        %v2612 = vsel %vm1306, %v2498, 2147483647
        %v2613 = vand.u32 %v2612, 65535
        %v2614 = vshra.s32 %v2612, 16
        %v2615 = vcvt.s32.f32 %v2613
        %v2616 = vcvt.s32.f32 %v2614
        %2617 = vmin.xlane.f32.xlu0 %v2616
        %v2618 = vpop.xlane.xlu0 %2617
        %vm2619 = vcmp.eq.f32.partialorder %v2616, %v2618
        %v2620 = vsel %vm2619, %v2615, inf
        %2621 = vmin.xlane.f32.xlu0 %v2620
        %v2622 = vpop.xlane.xlu0 %2621
        %v2623 = vcvt.f32.s32 %v2622
        %v2624 = vcvt.f32.s32 %v2618
        %v2625 = vshll.u32 %v2624, 16
        %v2626 = vadd.s32 %v2625, %v2623
        %v2627 = vsel %vm1306, %v2499, 2147483647
        %v2628 = vand.u32 %v2627, 65535
        %v2629 = vshra.s32 %v2627, 16
        %v2630 = vcvt.s32.f32 %v2628
        %v2631 = vcvt.s32.f32 %v2629
        %2632 = vmin.xlane.f32.xlu0 %v2631
        %v2633 = vpop.xlane.xlu0 %2632
        %vm2634 = vcmp.eq.f32.partialorder %v2631, %v2633
        %v2635 = vsel %vm2634, %v2630, inf
        %2636 = vmin.xlane.f32.xlu0 %v2635
        %v2637 = vpop.xlane.xlu0 %2636
        %v2638 = vcvt.f32.s32 %v2637
        %v2639 = vcvt.f32.s32 %v2633
        %v2640 = vshll.u32 %v2639, 16
        %v2641 = vadd.s32 %v2640, %v2638
        %v2642 = vsel %vm1306, %v2500, 2147483647
        %v2643 = vand.u32 %v2642, 65535
        %v2644 = vshra.s32 %v2642, 16
        %v2645 = vcvt.s32.f32 %v2643
        %v2646 = vcvt.s32.f32 %v2644
        %2647 = vmin.xlane.f32.xlu0 %v2646
        %v2648 = vpop.xlane.xlu0 %2647
        %vm2649 = vcmp.eq.f32.partialorder %v2646, %v2648
        %v2650 = vsel %vm2649, %v2645, inf
        %2651 = vmin.xlane.f32.xlu0 %v2650
        %v2652 = vpop.xlane.xlu0 %2651
        %v2653 = vcvt.f32.s32 %v2652
        %v2654 = vcvt.f32.s32 %v2648
        %v2655 = vshll.u32 %v2654, 16
        %v2656 = vadd.s32 %v2655, %v2653
        %v2657 = vsel %vm1306, %v2501, 2147483647
        %v2658 = vand.u32 %v2657, 65535
        %v2659 = vshra.s32 %v2657, 16
        %v2660 = vcvt.s32.f32 %v2658
        %v2661 = vcvt.s32.f32 %v2659
        %2662 = vmin.xlane.f32.xlu0 %v2661
        %v2663 = vpop.xlane.xlu0 %2662
        %vm2664 = vcmp.eq.f32.partialorder %v2661, %v2663
        %v2665 = vsel %vm2664, %v2660, inf
        %2666 = vmin.xlane.f32.xlu0 %v2665
        %v2667 = vpop.xlane.xlu0 %2666
        %v2668 = vcvt.f32.s32 %v2667
        %v2669 = vcvt.f32.s32 %v2663
        %v2670 = vshll.u32 %v2669, 16
        %v2671 = vadd.s32 %v2670, %v2668
        %v2672 = vsel %vm1306, %v2502, 2147483647
        %v2673 = vand.u32 %v2672, 65535
        %v2674 = vshra.s32 %v2672, 16
        %v2675 = vcvt.s32.f32 %v2673
        %v2676 = vcvt.s32.f32 %v2674
        %2677 = vmin.xlane.f32.xlu0 %v2676
        %v2678 = vpop.xlane.xlu0 %2677
        %vm2679 = vcmp.eq.f32.partialorder %v2676, %v2678
        %v2680 = vsel %vm2679, %v2675, inf
        %2681 = vmin.xlane.f32.xlu0 %v2680
        %v2682 = vpop.xlane.xlu0 %2681
        %v2683 = vcvt.f32.s32 %v2682
        %v2684 = vcvt.f32.s32 %v2678
        %v2685 = vshll.u32 %v2684, 16
        %v2686 = vadd.s32 %v2685, %v2683
        %v2687 = vsel %vm1306, %v2503, 2147483647
        %v2688 = vand.u32 %v2687, 65535
        %v2689 = vshra.s32 %v2687, 16
        %v2690 = vcvt.s32.f32 %v2688
        %v2691 = vcvt.s32.f32 %v2689
        %2692 = vmin.xlane.f32.xlu0 %v2691
        %v2693 = vpop.xlane.xlu0 %2692
        %vm2694 = vcmp.eq.f32.partialorder %v2691, %v2693
        %v2695 = vsel %vm2694, %v2690, inf
        %2696 = vmin.xlane.f32.xlu0 %v2695
        %v2697 = vpop.xlane.xlu0 %2696
        %v2698 = vcvt.f32.s32 %v2697
        %v2699 = vcvt.f32.s32 %v2693
        %v2700 = vshll.u32 %v2699, 16
        %v2701 = vadd.s32 %v2700, %v2698
        %v2702 = vsel %vm1306, %v2504, 2147483647
        %v2703 = vand.u32 %v2702, 65535
        %v2704 = vshra.s32 %v2702, 16
        %v2705 = vcvt.s32.f32 %v2703
        %v2706 = vcvt.s32.f32 %v2704
        %2707 = vmin.xlane.f32.xlu0 %v2706
        %v2708 = vpop.xlane.xlu0 %2707
        %vm2709 = vcmp.eq.f32.partialorder %v2706, %v2708
        %v2710 = vsel %vm2709, %v2705, inf
        %2711 = vmin.xlane.f32.xlu0 %v2710
        %v2712 = vpop.xlane.xlu0 %2711
        %v2713 = vcvt.f32.s32 %v2712
        %v2714 = vcvt.f32.s32 %v2708
        %v2715 = vshll.u32 %v2714, 16
        %v2716 = vadd.s32 %v2715, %v2713
        %v2717 = vsel %vm1306, %v2505, 2147483647
        %v2718 = vand.u32 %v2717, 65535
        %v2719 = vshra.s32 %v2717, 16
        %v2720 = vcvt.s32.f32 %v2718
        %v2721 = vcvt.s32.f32 %v2719
        %2722 = vmin.xlane.f32.xlu0 %v2721
        %v2723 = vpop.xlane.xlu0 %2722
        %vm2724 = vcmp.eq.f32.partialorder %v2721, %v2723
        %v2725 = vsel %vm2724, %v2720, inf
        %2726 = vmin.xlane.f32.xlu0 %v2725
        %v2727 = vpop.xlane.xlu0 %2726
        %v2728 = vcvt.f32.s32 %v2727
        %v2729 = vcvt.f32.s32 %v2723
        %v2730 = vshll.u32 %v2729, 16
        %v2731 = vadd.s32 %v2730, %v2728
        %v2732 = vsel %vm1306, %v2506, 2147483647
        %v2733 = vand.u32 %v2732, 65535
        %v2734 = vshra.s32 %v2732, 16
        %v2735 = vcvt.s32.f32 %v2733
        %v2736 = vcvt.s32.f32 %v2734
        %2737 = vmin.xlane.f32.xlu0 %v2736
        %v2738 = vpop.xlane.xlu0 %2737
        %vm2739 = vcmp.eq.f32.partialorder %v2736, %v2738
        %v2740 = vsel %vm2739, %v2735, inf
        %2741 = vmin.xlane.f32.xlu0 %v2740
        %v2742 = vpop.xlane.xlu0 %2741
        %v2743 = vcvt.f32.s32 %v2742
        %v2744 = vcvt.f32.s32 %v2738
        %v2745 = vshll.u32 %v2744, 16
        %v2746 = vadd.s32 %v2745, %v2743
        %vm2747 = vcmp.eq.s32.totalorder %v352, %v2521
        %vm2748 = vcmp.eq.s32.totalorder %v352, %v2536
        %vm2749 = vcmp.eq.s32.totalorder %v352, %v2551
        %vm2750 = vcmp.eq.s32.totalorder %v352, %v2566
        %vm2751 = vcmp.eq.s32.totalorder %v352, %v2581
        %vm2752 = vcmp.eq.s32.totalorder %v352, %v2596
        %vm2753 = vcmp.eq.s32.totalorder %v352, %v2611
        %vm2754 = vcmp.eq.s32.totalorder %v352, %v2626
        %vm2755 = vcmp.eq.s32.totalorder %v352, %v2641
        %vm2756 = vcmp.eq.s32.totalorder %v352, %v2656
        %vm2757 = vcmp.eq.s32.totalorder %v352, %v2671
        %vm2758 = vcmp.eq.s32.totalorder %v352, %v2686
        %vm2759 = vcmp.eq.s32.totalorder %v352, %v2701
        %vm2760 = vcmp.eq.s32.totalorder %v352, %v2716
        %vm2761 = vcmp.eq.s32.totalorder %v352, %v2731
        %vm2762 = vcmp.eq.s32.totalorder %v352, %v2746
        %v2763 = vsel %vm2747, inf, %v2027
        %v2764 = vsel %vm2748, inf, %v2028
        %v2765 = vsel %vm2749, inf, %v2029
        %v2766 = vsel %vm2750, inf, %v2030
        %v2767 = vsel %vm2751, inf, %v2031
        %v2768 = vsel %vm2752, inf, %v2032
        %v2769 = vsel %vm2753, inf, %v2033
        %v2770 = vsel %vm2754, inf, %v2034
        %v2771 = vsel %vm2755, inf, %v2035
        %v2772 = vsel %vm2756, inf, %v2036
        %v2773 = vsel %vm2757, inf, %v2037
        %v2774 = vsel %vm2758, inf, %v2038
        %v2775 = vsel %vm2759, inf, %v2039
        %v2776 = vsel %vm2760, inf, %v2040
        %v2777 = vsel %vm2761, inf, %v2041
        %v2778 = vsel %vm2762, inf, %v2042
        %v2779 = vsel %vm1306, %v2395, -inf
        %2780 = vmax.xlane.f32.xlu0 %v2779
        %v2781 = vpop.xlane.xlu0 %2780
        %v2782 = vsel %vm1306, %v2396, -inf
        %2783 = vmax.xlane.f32.xlu0 %v2782
        %v2784 = vpop.xlane.xlu0 %2783
        %v2785 = vsel %vm1306, %v2397, -inf
        %2786 = vmax.xlane.f32.xlu0 %v2785
        %v2787 = vpop.xlane.xlu0 %2786
        %v2788 = vsel %vm1306, %v2398, -inf
        %2789 = vmax.xlane.f32.xlu0 %v2788
        %v2790 = vpop.xlane.xlu0 %2789
        %v2791 = vsel %vm1306, %v2399, -inf
        %2792 = vmax.xlane.f32.xlu0 %v2791
        %v2793 = vpop.xlane.xlu0 %2792
        %v2794 = vsel %vm1306, %v2400, -inf
        %2795 = vmax.xlane.f32.xlu0 %v2794
        %v2796 = vpop.xlane.xlu0 %2795
        %v2797 = vsel %vm1306, %v2401, -inf
        %2798 = vmax.xlane.f32.xlu0 %v2797
        %v2799 = vpop.xlane.xlu0 %2798
        %v2800 = vsel %vm1306, %v2402, -inf
        %2801 = vmax.xlane.f32.xlu0 %v2800
        %v2802 = vpop.xlane.xlu0 %2801
        %v2803 = vsel %vm1306, %v2403, -inf
        %2804 = vmax.xlane.f32.xlu0 %v2803
        %v2805 = vpop.xlane.xlu0 %2804
        %v2806 = vsel %vm1306, %v2404, -inf
        %2807 = vmax.xlane.f32.xlu0 %v2806
        %v2808 = vpop.xlane.xlu0 %2807
        %v2809 = vsel %vm1306, %v2405, -inf
        %2810 = vmax.xlane.f32.xlu0 %v2809
        %v2811 = vpop.xlane.xlu0 %2810
        %v2812 = vsel %vm1306, %v2406, -inf
        %2813 = vmax.xlane.f32.xlu0 %v2812
        %v2814 = vpop.xlane.xlu0 %2813
        %v2815 = vsel %vm1306, %v2407, -inf
        %2816 = vmax.xlane.f32.xlu0 %v2815
        %v2817 = vpop.xlane.xlu0 %2816
        %v2818 = vsel %vm1306, %v2408, -inf
        %2819 = vmax.xlane.f32.xlu0 %v2818
        %v2820 = vpop.xlane.xlu0 %2819
        %v2821 = vsel %vm1306, %v2409, -inf
        %2822 = vmax.xlane.f32.xlu0 %v2821
        %v2823 = vpop.xlane.xlu0 %2822
        %v2824 = vsel %vm1306, %v2410, -inf
        %2825 = vmax.xlane.f32.xlu0 %v2824
        %v2826 = vpop.xlane.xlu0 %2825
        %v2827 = vadd.f32 %v2091, %v2781
        %v2828 = vadd.f32 %v2092, %v2784
        %v2829 = vadd.f32 %v2093, %v2787
        %v2830 = vadd.f32 %v2094, %v2790
        %v2831 = vadd.f32 %v2095, %v2793
        %v2832 = vadd.f32 %v2096, %v2796
        %v2833 = vadd.f32 %v2097, %v2799
        %v2834 = vadd.f32 %v2098, %v2802
        %v2835 = vadd.f32 %v2099, %v2805
        %v2836 = vadd.f32 %v2100, %v2808
        %v2837 = vadd.f32 %v2101, %v2811
        %v2838 = vadd.f32 %v2102, %v2814
        %v2839 = vadd.f32 %v2103, %v2817
        %v2840 = vadd.f32 %v2104, %v2820
        %v2841 = vadd.f32 %v2105, %v2823
        %v2842 = vadd.f32 %v2106, %v2826
        %vm2843 = vcmp.eq.f32.partialorder %v2395, %v2781
        %vm2844 = vcmp.eq.f32.partialorder %v2396, %v2784
        %vm2845 = vcmp.eq.f32.partialorder %v2397, %v2787
        %vm2846 = vcmp.eq.f32.partialorder %v2398, %v2790
        %vm2847 = vcmp.eq.f32.partialorder %v2399, %v2793
        %vm2848 = vcmp.eq.f32.partialorder %v2400, %v2796
        %vm2849 = vcmp.eq.f32.partialorder %v2401, %v2799
        %vm2850 = vcmp.eq.f32.partialorder %v2402, %v2802
        %vm2851 = vcmp.eq.f32.partialorder %v2403, %v2805
        %vm2852 = vcmp.eq.f32.partialorder %v2404, %v2808
        %vm2853 = vcmp.eq.f32.partialorder %v2405, %v2811
        %vm2854 = vcmp.eq.f32.partialorder %v2406, %v2814
        %vm2855 = vcmp.eq.f32.partialorder %v2407, %v2817
        %vm2856 = vcmp.eq.f32.partialorder %v2408, %v2820
        %vm2857 = vcmp.eq.f32.partialorder %v2409, %v2823
        %vm2858 = vcmp.eq.f32.partialorder %v2410, %v2826
        %v2859 = vsel %vm2843, %v352, 16
        %v2860 = vsel %vm2844, %v352, 16
        %v2861 = vsel %vm2845, %v352, 16
        %v2862 = vsel %vm2846, %v352, 16
        %v2863 = vsel %vm2847, %v352, 16
        %v2864 = vsel %vm2848, %v352, 16
        %v2865 = vsel %vm2849, %v352, 16
        %v2866 = vsel %vm2850, %v352, 16
        %v2867 = vsel %vm2851, %v352, 16
        %v2868 = vsel %vm2852, %v352, 16
        %v2869 = vsel %vm2853, %v352, 16
        %v2870 = vsel %vm2854, %v352, 16
        %v2871 = vsel %vm2855, %v352, 16
        %v2872 = vsel %vm2856, %v352, 16
        %v2873 = vsel %vm2857, %v352, 16
        %v2874 = vsel %vm2858, %v352, 16
        %v2875 = vsel %vm1306, %v2859, 2147483647
        %v2876 = vand.u32 %v2875, 65535
        %v2877 = vshra.s32 %v2875, 16
        %v2878 = vcvt.s32.f32 %v2876
        %v2879 = vcvt.s32.f32 %v2877
        %2880 = vmin.xlane.f32.xlu0 %v2879
        %v2881 = vpop.xlane.xlu0 %2880
        %vm2882 = vcmp.eq.f32.partialorder %v2879, %v2881
        %v2883 = vsel %vm2882, %v2878, inf
        %2884 = vmin.xlane.f32.xlu0 %v2883
        %v2885 = vpop.xlane.xlu0 %2884
        %v2886 = vcvt.f32.s32 %v2885
        %v2887 = vcvt.f32.s32 %v2881
        %v2888 = vshll.u32 %v2887, 16
        %v2889 = vadd.s32 %v2888, %v2886
        %v2890 = vsel %vm1306, %v2860, 2147483647
        %v2891 = vand.u32 %v2890, 65535
        %v2892 = vshra.s32 %v2890, 16
        %v2893 = vcvt.s32.f32 %v2891
        %v2894 = vcvt.s32.f32 %v2892
        %2895 = vmin.xlane.f32.xlu0 %v2894
        %v2896 = vpop.xlane.xlu0 %2895
        %vm2897 = vcmp.eq.f32.partialorder %v2894, %v2896
        %v2898 = vsel %vm2897, %v2893, inf
        %2899 = vmin.xlane.f32.xlu0 %v2898
        %v2900 = vpop.xlane.xlu0 %2899
        %v2901 = vcvt.f32.s32 %v2900
        %v2902 = vcvt.f32.s32 %v2896
        %v2903 = vshll.u32 %v2902, 16
        %v2904 = vadd.s32 %v2903, %v2901
        %v2905 = vsel %vm1306, %v2861, 2147483647
        %v2906 = vand.u32 %v2905, 65535
        %v2907 = vshra.s32 %v2905, 16
        %v2908 = vcvt.s32.f32 %v2906
        %v2909 = vcvt.s32.f32 %v2907
        %2910 = vmin.xlane.f32.xlu0 %v2909
        %v2911 = vpop.xlane.xlu0 %2910
        %vm2912 = vcmp.eq.f32.partialorder %v2909, %v2911
        %v2913 = vsel %vm2912, %v2908, inf
        %2914 = vmin.xlane.f32.xlu0 %v2913
        %v2915 = vpop.xlane.xlu0 %2914
        %v2916 = vcvt.f32.s32 %v2915
        %v2917 = vcvt.f32.s32 %v2911
        %v2918 = vshll.u32 %v2917, 16
        %v2919 = vadd.s32 %v2918, %v2916
        %v2920 = vsel %vm1306, %v2862, 2147483647
        %v2921 = vand.u32 %v2920, 65535
        %v2922 = vshra.s32 %v2920, 16
        %v2923 = vcvt.s32.f32 %v2921
        %v2924 = vcvt.s32.f32 %v2922
        %2925 = vmin.xlane.f32.xlu0 %v2924
        %v2926 = vpop.xlane.xlu0 %2925
        %vm2927 = vcmp.eq.f32.partialorder %v2924, %v2926
        %v2928 = vsel %vm2927, %v2923, inf
        %2929 = vmin.xlane.f32.xlu0 %v2928
        %v2930 = vpop.xlane.xlu0 %2929
        %v2931 = vcvt.f32.s32 %v2930
        %v2932 = vcvt.f32.s32 %v2926
        %v2933 = vshll.u32 %v2932, 16
        %v2934 = vadd.s32 %v2933, %v2931
        %v2935 = vsel %vm1306, %v2863, 2147483647
        %v2936 = vand.u32 %v2935, 65535
        %v2937 = vshra.s32 %v2935, 16
        %v2938 = vcvt.s32.f32 %v2936
        %v2939 = vcvt.s32.f32 %v2937
        %2940 = vmin.xlane.f32.xlu0 %v2939
        %v2941 = vpop.xlane.xlu0 %2940
        %vm2942 = vcmp.eq.f32.partialorder %v2939, %v2941
        %v2943 = vsel %vm2942, %v2938, inf
        %2944 = vmin.xlane.f32.xlu0 %v2943
        %v2945 = vpop.xlane.xlu0 %2944
        %v2946 = vcvt.f32.s32 %v2945
        %v2947 = vcvt.f32.s32 %v2941
        %v2948 = vshll.u32 %v2947, 16
        %v2949 = vadd.s32 %v2948, %v2946
        %v2950 = vsel %vm1306, %v2864, 2147483647
        %v2951 = vand.u32 %v2950, 65535
        %v2952 = vshra.s32 %v2950, 16
        %v2953 = vcvt.s32.f32 %v2951
        %v2954 = vcvt.s32.f32 %v2952
        %2955 = vmin.xlane.f32.xlu0 %v2954
        %v2956 = vpop.xlane.xlu0 %2955
        %vm2957 = vcmp.eq.f32.partialorder %v2954, %v2956
        %v2958 = vsel %vm2957, %v2953, inf
        %2959 = vmin.xlane.f32.xlu0 %v2958
        %v2960 = vpop.xlane.xlu0 %2959
        %v2961 = vcvt.f32.s32 %v2960
        %v2962 = vcvt.f32.s32 %v2956
        %v2963 = vshll.u32 %v2962, 16
        %v2964 = vadd.s32 %v2963, %v2961
        %v2965 = vsel %vm1306, %v2865, 2147483647
        %v2966 = vand.u32 %v2965, 65535
        %v2967 = vshra.s32 %v2965, 16
        %v2968 = vcvt.s32.f32 %v2966
        %v2969 = vcvt.s32.f32 %v2967
        %2970 = vmin.xlane.f32.xlu0 %v2969
        %v2971 = vpop.xlane.xlu0 %2970
        %vm2972 = vcmp.eq.f32.partialorder %v2969, %v2971
        %v2973 = vsel %vm2972, %v2968, inf
        %2974 = vmin.xlane.f32.xlu0 %v2973
        %v2975 = vpop.xlane.xlu0 %2974
        %v2976 = vcvt.f32.s32 %v2975
        %v2977 = vcvt.f32.s32 %v2971
        %v2978 = vshll.u32 %v2977, 16
        %v2979 = vadd.s32 %v2978, %v2976
        %v2980 = vsel %vm1306, %v2866, 2147483647
        %v2981 = vand.u32 %v2980, 65535
        %v2982 = vshra.s32 %v2980, 16
        %v2983 = vcvt.s32.f32 %v2981
        %v2984 = vcvt.s32.f32 %v2982
        %2985 = vmin.xlane.f32.xlu0 %v2984
        %v2986 = vpop.xlane.xlu0 %2985
        %vm2987 = vcmp.eq.f32.partialorder %v2984, %v2986
        %v2988 = vsel %vm2987, %v2983, inf
        %2989 = vmin.xlane.f32.xlu0 %v2988
        %v2990 = vpop.xlane.xlu0 %2989
        %v2991 = vcvt.f32.s32 %v2990
        %v2992 = vcvt.f32.s32 %v2986
        %v2993 = vshll.u32 %v2992, 16
        %v2994 = vadd.s32 %v2993, %v2991
        %v2995 = vsel %vm1306, %v2867, 2147483647
        %v2996 = vand.u32 %v2995, 65535
        %v2997 = vshra.s32 %v2995, 16
        %v2998 = vcvt.s32.f32 %v2996
        %v2999 = vcvt.s32.f32 %v2997
        %3000 = vmin.xlane.f32.xlu0 %v2999
        %v3001 = vpop.xlane.xlu0 %3000
        %vm3002 = vcmp.eq.f32.partialorder %v2999, %v3001
        %v3003 = vsel %vm3002, %v2998, inf
        %3004 = vmin.xlane.f32.xlu0 %v3003
        %v3005 = vpop.xlane.xlu0 %3004
        %v3006 = vcvt.f32.s32 %v3005
        %v3007 = vcvt.f32.s32 %v3001
        %v3008 = vshll.u32 %v3007, 16
        %v3009 = vadd.s32 %v3008, %v3006
        %v3010 = vsel %vm1306, %v2868, 2147483647
        %v3011 = vand.u32 %v3010, 65535
        %v3012 = vshra.s32 %v3010, 16
        %v3013 = vcvt.s32.f32 %v3011
        %v3014 = vcvt.s32.f32 %v3012
        %3015 = vmin.xlane.f32.xlu0 %v3014
        %v3016 = vpop.xlane.xlu0 %3015
        %vm3017 = vcmp.eq.f32.partialorder %v3014, %v3016
        %v3018 = vsel %vm3017, %v3013, inf
        %3019 = vmin.xlane.f32.xlu0 %v3018
        %v3020 = vpop.xlane.xlu0 %3019
        %v3021 = vcvt.f32.s32 %v3020
        %v3022 = vcvt.f32.s32 %v3016
        %v3023 = vshll.u32 %v3022, 16
        %v3024 = vadd.s32 %v3023, %v3021
        %v3025 = vsel %vm1306, %v2869, 2147483647
        %v3026 = vand.u32 %v3025, 65535
        %v3027 = vshra.s32 %v3025, 16
        %v3028 = vcvt.s32.f32 %v3026
        %v3029 = vcvt.s32.f32 %v3027
        %3030 = vmin.xlane.f32.xlu0 %v3029
        %v3031 = vpop.xlane.xlu0 %3030
        %vm3032 = vcmp.eq.f32.partialorder %v3029, %v3031
        %v3033 = vsel %vm3032, %v3028, inf
        %3034 = vmin.xlane.f32.xlu0 %v3033
        %v3035 = vpop.xlane.xlu0 %3034
        %v3036 = vcvt.f32.s32 %v3035
        %v3037 = vcvt.f32.s32 %v3031
        %v3038 = vshll.u32 %v3037, 16
        %v3039 = vadd.s32 %v3038, %v3036
        %v3040 = vsel %vm1306, %v2870, 2147483647
        %v3041 = vand.u32 %v3040, 65535
        %v3042 = vshra.s32 %v3040, 16
        %v3043 = vcvt.s32.f32 %v3041
        %v3044 = vcvt.s32.f32 %v3042
        %3045 = vmin.xlane.f32.xlu0 %v3044
        %v3046 = vpop.xlane.xlu0 %3045
        %vm3047 = vcmp.eq.f32.partialorder %v3044, %v3046
        %v3048 = vsel %vm3047, %v3043, inf
        %3049 = vmin.xlane.f32.xlu0 %v3048
        %v3050 = vpop.xlane.xlu0 %3049
        %v3051 = vcvt.f32.s32 %v3050
        %v3052 = vcvt.f32.s32 %v3046
        %v3053 = vshll.u32 %v3052, 16
        %v3054 = vadd.s32 %v3053, %v3051
        %v3055 = vsel %vm1306, %v2871, 2147483647
        %v3056 = vand.u32 %v3055, 65535
        %v3057 = vshra.s32 %v3055, 16
        %v3058 = vcvt.s32.f32 %v3056
        %v3059 = vcvt.s32.f32 %v3057
        %3060 = vmin.xlane.f32.xlu0 %v3059
        %v3061 = vpop.xlane.xlu0 %3060
        %vm3062 = vcmp.eq.f32.partialorder %v3059, %v3061
        %v3063 = vsel %vm3062, %v3058, inf
        %3064 = vmin.xlane.f32.xlu0 %v3063
        %v3065 = vpop.xlane.xlu0 %3064
        %v3066 = vcvt.f32.s32 %v3065
        %v3067 = vcvt.f32.s32 %v3061
        %v3068 = vshll.u32 %v3067, 16
        %v3069 = vadd.s32 %v3068, %v3066
        %v3070 = vsel %vm1306, %v2872, 2147483647
        %v3071 = vand.u32 %v3070, 65535
        %v3072 = vshra.s32 %v3070, 16
        %v3073 = vcvt.s32.f32 %v3071
        %v3074 = vcvt.s32.f32 %v3072
        %3075 = vmin.xlane.f32.xlu0 %v3074
        %v3076 = vpop.xlane.xlu0 %3075
        %vm3077 = vcmp.eq.f32.partialorder %v3074, %v3076
        %v3078 = vsel %vm3077, %v3073, inf
        %3079 = vmin.xlane.f32.xlu0 %v3078
        %v3080 = vpop.xlane.xlu0 %3079
        %v3081 = vcvt.f32.s32 %v3080
        %v3082 = vcvt.f32.s32 %v3076
        %v3083 = vshll.u32 %v3082, 16
        %v3084 = vadd.s32 %v3083, %v3081
        %v3085 = vsel %vm1306, %v2873, 2147483647
        %v3086 = vand.u32 %v3085, 65535
        %v3087 = vshra.s32 %v3085, 16
        %v3088 = vcvt.s32.f32 %v3086
        %v3089 = vcvt.s32.f32 %v3087
        %3090 = vmin.xlane.f32.xlu0 %v3089
        %v3091 = vpop.xlane.xlu0 %3090
        %vm3092 = vcmp.eq.f32.partialorder %v3089, %v3091
        %v3093 = vsel %vm3092, %v3088, inf
        %3094 = vmin.xlane.f32.xlu0 %v3093
        %v3095 = vpop.xlane.xlu0 %3094
        %v3096 = vcvt.f32.s32 %v3095
        %v3097 = vcvt.f32.s32 %v3091
        %v3098 = vshll.u32 %v3097, 16
        %v3099 = vadd.s32 %v3098, %v3096
        %v3100 = vsel %vm1306, %v2874, 2147483647
        %v3101 = vand.u32 %v3100, 65535
        %v3102 = vshra.s32 %v3100, 16
        %v3103 = vcvt.s32.f32 %v3101
        %v3104 = vcvt.s32.f32 %v3102
        %3105 = vmin.xlane.f32.xlu0 %v3104
        %v3106 = vpop.xlane.xlu0 %3105
        %vm3107 = vcmp.eq.f32.partialorder %v3104, %v3106
        %v3108 = vsel %vm3107, %v3103, inf
        %3109 = vmin.xlane.f32.xlu0 %v3108
        %v3110 = vpop.xlane.xlu0 %3109
        %v3111 = vcvt.f32.s32 %v3110
        %v3112 = vcvt.f32.s32 %v3106
        %v3113 = vshll.u32 %v3112, 16
        %v3114 = vadd.s32 %v3113, %v3111
        %vm3115 = vcmp.eq.s32.totalorder %v352, %v2889
        %vm3116 = vcmp.eq.s32.totalorder %v352, %v2904
        %vm3117 = vcmp.eq.s32.totalorder %v352, %v2919
        %vm3118 = vcmp.eq.s32.totalorder %v352, %v2934
        %vm3119 = vcmp.eq.s32.totalorder %v352, %v2949
        %vm3120 = vcmp.eq.s32.totalorder %v352, %v2964
        %vm3121 = vcmp.eq.s32.totalorder %v352, %v2979
        %vm3122 = vcmp.eq.s32.totalorder %v352, %v2994
        %vm3123 = vcmp.eq.s32.totalorder %v352, %v3009
        %vm3124 = vcmp.eq.s32.totalorder %v352, %v3024
        %vm3125 = vcmp.eq.s32.totalorder %v352, %v3039
        %vm3126 = vcmp.eq.s32.totalorder %v352, %v3054
        %vm3127 = vcmp.eq.s32.totalorder %v352, %v3069
        %vm3128 = vcmp.eq.s32.totalorder %v352, %v3084
        %vm3129 = vcmp.eq.s32.totalorder %v352, %v3099
        %vm3130 = vcmp.eq.s32.totalorder %v352, %v3114
        %v3131 = vsel %vm3115, -inf, %v2395
        %v3132 = vsel %vm3116, -inf, %v2396
        %v3133 = vsel %vm3117, -inf, %v2397
        %v3134 = vsel %vm3118, -inf, %v2398
        %v3135 = vsel %vm3119, -inf, %v2399
        %v3136 = vsel %vm3120, -inf, %v2400
        %v3137 = vsel %vm3121, -inf, %v2401
        %v3138 = vsel %vm3122, -inf, %v2402
        %v3139 = vsel %vm3123, -inf, %v2403
        %v3140 = vsel %vm3124, -inf, %v2404
        %v3141 = vsel %vm3125, -inf, %v2405
        %v3142 = vsel %vm3126, -inf, %v2406
        %v3143 = vsel %vm3127, -inf, %v2407
        %v3144 = vsel %vm3128, -inf, %v2408
        %v3145 = vsel %vm3129, -inf, %v2409
        %v3146 = vsel %vm3130, -inf, %v2410
        %v3147 = vsel %vm1306, %v2763, inf
        %3148 = vmin.xlane.f32.xlu0 %v3147
        %v3149 = vpop.xlane.xlu0 %3148
        %v3150 = vsel %vm1306, %v2764, inf
        %3151 = vmin.xlane.f32.xlu0 %v3150
        %v3152 = vpop.xlane.xlu0 %3151
        %v3153 = vsel %vm1306, %v2765, inf
        %3154 = vmin.xlane.f32.xlu0 %v3153
        %v3155 = vpop.xlane.xlu0 %3154
        %v3156 = vsel %vm1306, %v2766, inf
        %3157 = vmin.xlane.f32.xlu0 %v3156
        %v3158 = vpop.xlane.xlu0 %3157
        %v3159 = vsel %vm1306, %v2767, inf
        %3160 = vmin.xlane.f32.xlu0 %v3159
        %v3161 = vpop.xlane.xlu0 %3160
        %v3162 = vsel %vm1306, %v2768, inf
        %3163 = vmin.xlane.f32.xlu0 %v3162
        %v3164 = vpop.xlane.xlu0 %3163
        %v3165 = vsel %vm1306, %v2769, inf
        %3166 = vmin.xlane.f32.xlu0 %v3165
        %v3167 = vpop.xlane.xlu0 %3166
        %v3168 = vsel %vm1306, %v2770, inf
        %3169 = vmin.xlane.f32.xlu0 %v3168
        %v3170 = vpop.xlane.xlu0 %3169
        %v3171 = vsel %vm1306, %v2771, inf
        %3172 = vmin.xlane.f32.xlu0 %v3171
        %v3173 = vpop.xlane.xlu0 %3172
        %v3174 = vsel %vm1306, %v2772, inf
        %3175 = vmin.xlane.f32.xlu0 %v3174
        %v3176 = vpop.xlane.xlu0 %3175
        %v3177 = vsel %vm1306, %v2773, inf
        %3178 = vmin.xlane.f32.xlu0 %v3177
        %v3179 = vpop.xlane.xlu0 %3178
        %v3180 = vsel %vm1306, %v2774, inf
        %3181 = vmin.xlane.f32.xlu0 %v3180
        %v3182 = vpop.xlane.xlu0 %3181
        %v3183 = vsel %vm1306, %v2775, inf
        %3184 = vmin.xlane.f32.xlu0 %v3183
        %v3185 = vpop.xlane.xlu0 %3184
        %v3186 = vsel %vm1306, %v2776, inf
        %3187 = vmin.xlane.f32.xlu0 %v3186
        %v3188 = vpop.xlane.xlu0 %3187
        %v3189 = vsel %vm1306, %v2777, inf
        %3190 = vmin.xlane.f32.xlu0 %v3189
        %v3191 = vpop.xlane.xlu0 %3190
        %v3192 = vsel %vm1306, %v2778, inf
        %3193 = vmin.xlane.f32.xlu0 %v3192
        %v3194 = vpop.xlane.xlu0 %3193
        %v3195 = vsub.f32 %v2459, %v3149
        %v3196 = vsub.f32 %v2460, %v3152
        %v3197 = vsub.f32 %v2461, %v3155
        %v3198 = vsub.f32 %v2462, %v3158
        %v3199 = vsub.f32 %v2463, %v3161
        %v3200 = vsub.f32 %v2464, %v3164
        %v3201 = vsub.f32 %v2465, %v3167
        %v3202 = vsub.f32 %v2466, %v3170
        %v3203 = vsub.f32 %v2467, %v3173
        %v3204 = vsub.f32 %v2468, %v3176
        %v3205 = vsub.f32 %v2469, %v3179
        %v3206 = vsub.f32 %v2470, %v3182
        %v3207 = vsub.f32 %v2471, %v3185
        %v3208 = vsub.f32 %v2472, %v3188
        %v3209 = vsub.f32 %v2473, %v3191
        %v3210 = vsub.f32 %v2474, %v3194
        %vm3211 = vcmp.eq.f32.partialorder %v2763, %v3149
        %vm3212 = vcmp.eq.f32.partialorder %v2764, %v3152
        %vm3213 = vcmp.eq.f32.partialorder %v2765, %v3155
        %vm3214 = vcmp.eq.f32.partialorder %v2766, %v3158
        %vm3215 = vcmp.eq.f32.partialorder %v2767, %v3161
        %vm3216 = vcmp.eq.f32.partialorder %v2768, %v3164
        %vm3217 = vcmp.eq.f32.partialorder %v2769, %v3167
        %vm3218 = vcmp.eq.f32.partialorder %v2770, %v3170
        %vm3219 = vcmp.eq.f32.partialorder %v2771, %v3173
        %vm3220 = vcmp.eq.f32.partialorder %v2772, %v3176
        %vm3221 = vcmp.eq.f32.partialorder %v2773, %v3179
        %vm3222 = vcmp.eq.f32.partialorder %v2774, %v3182
        %vm3223 = vcmp.eq.f32.partialorder %v2775, %v3185
        %vm3224 = vcmp.eq.f32.partialorder %v2776, %v3188
        %vm3225 = vcmp.eq.f32.partialorder %v2777, %v3191
        %vm3226 = vcmp.eq.f32.partialorder %v2778, %v3194
        %v3227 = vsel %vm3211, %v352, 16
        %v3228 = vsel %vm3212, %v352, 16
        %v3229 = vsel %vm3213, %v352, 16
        %v3230 = vsel %vm3214, %v352, 16
        %v3231 = vsel %vm3215, %v352, 16
        %v3232 = vsel %vm3216, %v352, 16
        %v3233 = vsel %vm3217, %v352, 16
        %v3234 = vsel %vm3218, %v352, 16
        %v3235 = vsel %vm3219, %v352, 16
        %v3236 = vsel %vm3220, %v352, 16
        %v3237 = vsel %vm3221, %v352, 16
        %v3238 = vsel %vm3222, %v352, 16
        %v3239 = vsel %vm3223, %v352, 16
        %v3240 = vsel %vm3224, %v352, 16
        %v3241 = vsel %vm3225, %v352, 16
        %v3242 = vsel %vm3226, %v352, 16
        %v3243 = vsel %vm1306, %v3227, 2147483647
        %v3244 = vand.u32 %v3243, 65535
        %v3245 = vshra.s32 %v3243, 16
        %v3246 = vcvt.s32.f32 %v3244
        %v3247 = vcvt.s32.f32 %v3245
        %3248 = vmin.xlane.f32.xlu0 %v3247
        %v3249 = vpop.xlane.xlu0 %3248
        %vm3250 = vcmp.eq.f32.partialorder %v3247, %v3249
        %v3251 = vsel %vm3250, %v3246, inf
        %3252 = vmin.xlane.f32.xlu0 %v3251
        %v3253 = vpop.xlane.xlu0 %3252
        %v3254 = vcvt.f32.s32 %v3253
        %v3255 = vcvt.f32.s32 %v3249
        %v3256 = vshll.u32 %v3255, 16
        %v3257 = vadd.s32 %v3256, %v3254
        %v3258 = vsel %vm1306, %v3228, 2147483647
        %v3259 = vand.u32 %v3258, 65535
        %v3260 = vshra.s32 %v3258, 16
        %v3261 = vcvt.s32.f32 %v3259
        %v3262 = vcvt.s32.f32 %v3260
        %3263 = vmin.xlane.f32.xlu0 %v3262
        %v3264 = vpop.xlane.xlu0 %3263
        %vm3265 = vcmp.eq.f32.partialorder %v3262, %v3264
        %v3266 = vsel %vm3265, %v3261, inf
        %3267 = vmin.xlane.f32.xlu0 %v3266
        %v3268 = vpop.xlane.xlu0 %3267
        %v3269 = vcvt.f32.s32 %v3268
        %v3270 = vcvt.f32.s32 %v3264
        %v3271 = vshll.u32 %v3270, 16
        %v3272 = vadd.s32 %v3271, %v3269
        %v3273 = vsel %vm1306, %v3229, 2147483647
        %v3274 = vand.u32 %v3273, 65535
        %v3275 = vshra.s32 %v3273, 16
        %v3276 = vcvt.s32.f32 %v3274
        %v3277 = vcvt.s32.f32 %v3275
        %3278 = vmin.xlane.f32.xlu0 %v3277
        %v3279 = vpop.xlane.xlu0 %3278
        %vm3280 = vcmp.eq.f32.partialorder %v3277, %v3279
        %v3281 = vsel %vm3280, %v3276, inf
        %3282 = vmin.xlane.f32.xlu0 %v3281
        %v3283 = vpop.xlane.xlu0 %3282
        %v3284 = vcvt.f32.s32 %v3283
        %v3285 = vcvt.f32.s32 %v3279
        %v3286 = vshll.u32 %v3285, 16
        %v3287 = vadd.s32 %v3286, %v3284
        %v3288 = vsel %vm1306, %v3230, 2147483647
        %v3289 = vand.u32 %v3288, 65535
        %v3290 = vshra.s32 %v3288, 16
        %v3291 = vcvt.s32.f32 %v3289
        %v3292 = vcvt.s32.f32 %v3290
        %3293 = vmin.xlane.f32.xlu0 %v3292
        %v3294 = vpop.xlane.xlu0 %3293
        %vm3295 = vcmp.eq.f32.partialorder %v3292, %v3294
        %v3296 = vsel %vm3295, %v3291, inf
        %3297 = vmin.xlane.f32.xlu0 %v3296
        %v3298 = vpop.xlane.xlu0 %3297
        %v3299 = vcvt.f32.s32 %v3298
        %v3300 = vcvt.f32.s32 %v3294
        %v3301 = vshll.u32 %v3300, 16
        %v3302 = vadd.s32 %v3301, %v3299
        %v3303 = vsel %vm1306, %v3231, 2147483647
        %v3304 = vand.u32 %v3303, 65535
        %v3305 = vshra.s32 %v3303, 16
        %v3306 = vcvt.s32.f32 %v3304
        %v3307 = vcvt.s32.f32 %v3305
        %3308 = vmin.xlane.f32.xlu0 %v3307
        %v3309 = vpop.xlane.xlu0 %3308
        %vm3310 = vcmp.eq.f32.partialorder %v3307, %v3309
        %v3311 = vsel %vm3310, %v3306, inf
        %3312 = vmin.xlane.f32.xlu0 %v3311
        %v3313 = vpop.xlane.xlu0 %3312
        %v3314 = vcvt.f32.s32 %v3313
        %v3315 = vcvt.f32.s32 %v3309
        %v3316 = vshll.u32 %v3315, 16
        %v3317 = vadd.s32 %v3316, %v3314
        %v3318 = vsel %vm1306, %v3232, 2147483647
        %v3319 = vand.u32 %v3318, 65535
        %v3320 = vshra.s32 %v3318, 16
        %v3321 = vcvt.s32.f32 %v3319
        %v3322 = vcvt.s32.f32 %v3320
        %3323 = vmin.xlane.f32.xlu0 %v3322
        %v3324 = vpop.xlane.xlu0 %3323
        %vm3325 = vcmp.eq.f32.partialorder %v3322, %v3324
        %v3326 = vsel %vm3325, %v3321, inf
        %3327 = vmin.xlane.f32.xlu0 %v3326
        %v3328 = vpop.xlane.xlu0 %3327
        %v3329 = vcvt.f32.s32 %v3328
        %v3330 = vcvt.f32.s32 %v3324
        %v3331 = vshll.u32 %v3330, 16
        %v3332 = vadd.s32 %v3331, %v3329
        %v3333 = vsel %vm1306, %v3233, 2147483647
        %v3334 = vand.u32 %v3333, 65535
        %v3335 = vshra.s32 %v3333, 16
        %v3336 = vcvt.s32.f32 %v3334
        %v3337 = vcvt.s32.f32 %v3335
        %3338 = vmin.xlane.f32.xlu0 %v3337
        %v3339 = vpop.xlane.xlu0 %3338
        %vm3340 = vcmp.eq.f32.partialorder %v3337, %v3339
        %v3341 = vsel %vm3340, %v3336, inf
        %3342 = vmin.xlane.f32.xlu0 %v3341
        %v3343 = vpop.xlane.xlu0 %3342
        %v3344 = vcvt.f32.s32 %v3343
        %v3345 = vcvt.f32.s32 %v3339
        %v3346 = vshll.u32 %v3345, 16
        %v3347 = vadd.s32 %v3346, %v3344
        %v3348 = vsel %vm1306, %v3234, 2147483647
        %v3349 = vand.u32 %v3348, 65535
        %v3350 = vshra.s32 %v3348, 16
        %v3351 = vcvt.s32.f32 %v3349
        %v3352 = vcvt.s32.f32 %v3350
        %3353 = vmin.xlane.f32.xlu0 %v3352
        %v3354 = vpop.xlane.xlu0 %3353
        %vm3355 = vcmp.eq.f32.partialorder %v3352, %v3354
        %v3356 = vsel %vm3355, %v3351, inf
        %3357 = vmin.xlane.f32.xlu0 %v3356
        %v3358 = vpop.xlane.xlu0 %3357
        %v3359 = vcvt.f32.s32 %v3358
        %v3360 = vcvt.f32.s32 %v3354
        %v3361 = vshll.u32 %v3360, 16
        %v3362 = vadd.s32 %v3361, %v3359
        %v3363 = vsel %vm1306, %v3235, 2147483647
        %v3364 = vand.u32 %v3363, 65535
        %v3365 = vshra.s32 %v3363, 16
        %v3366 = vcvt.s32.f32 %v3364
        %v3367 = vcvt.s32.f32 %v3365
        %3368 = vmin.xlane.f32.xlu0 %v3367
        %v3369 = vpop.xlane.xlu0 %3368
        %vm3370 = vcmp.eq.f32.partialorder %v3367, %v3369
        %v3371 = vsel %vm3370, %v3366, inf
        %3372 = vmin.xlane.f32.xlu0 %v3371
        %v3373 = vpop.xlane.xlu0 %3372
        %v3374 = vcvt.f32.s32 %v3373
        %v3375 = vcvt.f32.s32 %v3369
        %v3376 = vshll.u32 %v3375, 16
        %v3377 = vadd.s32 %v3376, %v3374
        %v3378 = vsel %vm1306, %v3236, 2147483647
        %v3379 = vand.u32 %v3378, 65535
        %v3380 = vshra.s32 %v3378, 16
        %v3381 = vcvt.s32.f32 %v3379
        %v3382 = vcvt.s32.f32 %v3380
        %3383 = vmin.xlane.f32.xlu0 %v3382
        %v3384 = vpop.xlane.xlu0 %3383
        %vm3385 = vcmp.eq.f32.partialorder %v3382, %v3384
        %v3386 = vsel %vm3385, %v3381, inf
        %3387 = vmin.xlane.f32.xlu0 %v3386
        %v3388 = vpop.xlane.xlu0 %3387
        %v3389 = vcvt.f32.s32 %v3388
        %v3390 = vcvt.f32.s32 %v3384
        %v3391 = vshll.u32 %v3390, 16
        %v3392 = vadd.s32 %v3391, %v3389
        %v3393 = vsel %vm1306, %v3237, 2147483647
        %v3394 = vand.u32 %v3393, 65535
        %v3395 = vshra.s32 %v3393, 16
        %v3396 = vcvt.s32.f32 %v3394
        %v3397 = vcvt.s32.f32 %v3395
        %3398 = vmin.xlane.f32.xlu0 %v3397
        %v3399 = vpop.xlane.xlu0 %3398
        %vm3400 = vcmp.eq.f32.partialorder %v3397, %v3399
        %v3401 = vsel %vm3400, %v3396, inf
        %3402 = vmin.xlane.f32.xlu0 %v3401
        %v3403 = vpop.xlane.xlu0 %3402
        %v3404 = vcvt.f32.s32 %v3403
        %v3405 = vcvt.f32.s32 %v3399
        %v3406 = vshll.u32 %v3405, 16
        %v3407 = vadd.s32 %v3406, %v3404
        %v3408 = vsel %vm1306, %v3238, 2147483647
        %v3409 = vand.u32 %v3408, 65535
        %v3410 = vshra.s32 %v3408, 16
        %v3411 = vcvt.s32.f32 %v3409
        %v3412 = vcvt.s32.f32 %v3410
        %3413 = vmin.xlane.f32.xlu0 %v3412
        %v3414 = vpop.xlane.xlu0 %3413
        %vm3415 = vcmp.eq.f32.partialorder %v3412, %v3414
        %v3416 = vsel %vm3415, %v3411, inf
        %3417 = vmin.xlane.f32.xlu0 %v3416
        %v3418 = vpop.xlane.xlu0 %3417
        %v3419 = vcvt.f32.s32 %v3418
        %v3420 = vcvt.f32.s32 %v3414
        %v3421 = vshll.u32 %v3420, 16
        %v3422 = vadd.s32 %v3421, %v3419
        %v3423 = vsel %vm1306, %v3239, 2147483647
        %v3424 = vand.u32 %v3423, 65535
        %v3425 = vshra.s32 %v3423, 16
        %v3426 = vcvt.s32.f32 %v3424
        %v3427 = vcvt.s32.f32 %v3425
        %3428 = vmin.xlane.f32.xlu0 %v3427
        %v3429 = vpop.xlane.xlu0 %3428
        %vm3430 = vcmp.eq.f32.partialorder %v3427, %v3429
        %v3431 = vsel %vm3430, %v3426, inf
        %3432 = vmin.xlane.f32.xlu0 %v3431
        %v3433 = vpop.xlane.xlu0 %3432
        %v3434 = vcvt.f32.s32 %v3433
        %v3435 = vcvt.f32.s32 %v3429
        %v3436 = vshll.u32 %v3435, 16
        %v3437 = vadd.s32 %v3436, %v3434
        %v3438 = vsel %vm1306, %v3240, 2147483647
        %v3439 = vand.u32 %v3438, 65535
        %v3440 = vshra.s32 %v3438, 16
        %v3441 = vcvt.s32.f32 %v3439
        %v3442 = vcvt.s32.f32 %v3440
        %3443 = vmin.xlane.f32.xlu0 %v3442
        %v3444 = vpop.xlane.xlu0 %3443
        %vm3445 = vcmp.eq.f32.partialorder %v3442, %v3444
        %v3446 = vsel %vm3445, %v3441, inf
        %3447 = vmin.xlane.f32.xlu0 %v3446
        %v3448 = vpop.xlane.xlu0 %3447
        %v3449 = vcvt.f32.s32 %v3448
        %v3450 = vcvt.f32.s32 %v3444
        %v3451 = vshll.u32 %v3450, 16
        %v3452 = vadd.s32 %v3451, %v3449
        %v3453 = vsel %vm1306, %v3241, 2147483647
        %v3454 = vand.u32 %v3453, 65535
        %v3455 = vshra.s32 %v3453, 16
        %v3456 = vcvt.s32.f32 %v3454
        %v3457 = vcvt.s32.f32 %v3455
        %3458 = vmin.xlane.f32.xlu0 %v3457
        %v3459 = vpop.xlane.xlu0 %3458
        %vm3460 = vcmp.eq.f32.partialorder %v3457, %v3459
        %v3461 = vsel %vm3460, %v3456, inf
        %3462 = vmin.xlane.f32.xlu0 %v3461
        %v3463 = vpop.xlane.xlu0 %3462
        %v3464 = vcvt.f32.s32 %v3463
        %v3465 = vcvt.f32.s32 %v3459
        %v3466 = vshll.u32 %v3465, 16
        %v3467 = vadd.s32 %v3466, %v3464
        %v3468 = vsel %vm1306, %v3242, 2147483647
        %v3469 = vand.u32 %v3468, 65535
        %v3470 = vshra.s32 %v3468, 16
        %v3471 = vcvt.s32.f32 %v3469
        %v3472 = vcvt.s32.f32 %v3470
        %3473 = vmin.xlane.f32.xlu0 %v3472
        %v3474 = vpop.xlane.xlu0 %3473
        %vm3475 = vcmp.eq.f32.partialorder %v3472, %v3474
        %v3476 = vsel %vm3475, %v3471, inf
        %3477 = vmin.xlane.f32.xlu0 %v3476
        %v3478 = vpop.xlane.xlu0 %3477
        %v3479 = vcvt.f32.s32 %v3478
        %v3480 = vcvt.f32.s32 %v3474
        %v3481 = vshll.u32 %v3480, 16
        %v3482 = vadd.s32 %v3481, %v3479
        %vm3483 = vcmp.eq.s32.totalorder %v352, %v3257
        %vm3484 = vcmp.eq.s32.totalorder %v352, %v3272
        %vm3485 = vcmp.eq.s32.totalorder %v352, %v3287
        %vm3486 = vcmp.eq.s32.totalorder %v352, %v3302
        %vm3487 = vcmp.eq.s32.totalorder %v352, %v3317
        %vm3488 = vcmp.eq.s32.totalorder %v352, %v3332
        %vm3489 = vcmp.eq.s32.totalorder %v352, %v3347
        %vm3490 = vcmp.eq.s32.totalorder %v352, %v3362
        %vm3491 = vcmp.eq.s32.totalorder %v352, %v3377
        %vm3492 = vcmp.eq.s32.totalorder %v352, %v3392
        %vm3493 = vcmp.eq.s32.totalorder %v352, %v3407
        %vm3494 = vcmp.eq.s32.totalorder %v352, %v3422
        %vm3495 = vcmp.eq.s32.totalorder %v352, %v3437
        %vm3496 = vcmp.eq.s32.totalorder %v352, %v3452
        %vm3497 = vcmp.eq.s32.totalorder %v352, %v3467
        %vm3498 = vcmp.eq.s32.totalorder %v352, %v3482
        %v3499 = vsel %vm3483, inf, %v2763
        %v3500 = vsel %vm3484, inf, %v2764
        %v3501 = vsel %vm3485, inf, %v2765
        %v3502 = vsel %vm3486, inf, %v2766
        %v3503 = vsel %vm3487, inf, %v2767
        %v3504 = vsel %vm3488, inf, %v2768
        %v3505 = vsel %vm3489, inf, %v2769
        %v3506 = vsel %vm3490, inf, %v2770
        %v3507 = vsel %vm3491, inf, %v2771
        %v3508 = vsel %vm3492, inf, %v2772
        %v3509 = vsel %vm3493, inf, %v2773
        %v3510 = vsel %vm3494, inf, %v2774
        %v3511 = vsel %vm3495, inf, %v2775
        %v3512 = vsel %vm3496, inf, %v2776
        %v3513 = vsel %vm3497, inf, %v2777
        %v3514 = vsel %vm3498, inf, %v2778
        %v3515 = vsel %vm1306, %v3131, -inf
        %3516 = vmax.xlane.f32.xlu0 %v3515
        %v3517 = vpop.xlane.xlu0 %3516
        %v3518 = vsel %vm1306, %v3132, -inf
        %3519 = vmax.xlane.f32.xlu0 %v3518
        %v3520 = vpop.xlane.xlu0 %3519
        %v3521 = vsel %vm1306, %v3133, -inf
        %3522 = vmax.xlane.f32.xlu0 %v3521
        %v3523 = vpop.xlane.xlu0 %3522
        %v3524 = vsel %vm1306, %v3134, -inf
        %3525 = vmax.xlane.f32.xlu0 %v3524
        %v3526 = vpop.xlane.xlu0 %3525
        %v3527 = vsel %vm1306, %v3135, -inf
        %3528 = vmax.xlane.f32.xlu0 %v3527
        %v3529 = vpop.xlane.xlu0 %3528
        %v3530 = vsel %vm1306, %v3136, -inf
        %3531 = vmax.xlane.f32.xlu0 %v3530
        %v3532 = vpop.xlane.xlu0 %3531
        %v3533 = vsel %vm1306, %v3137, -inf
        %3534 = vmax.xlane.f32.xlu0 %v3533
        %v3535 = vpop.xlane.xlu0 %3534
        %v3536 = vsel %vm1306, %v3138, -inf
        %3537 = vmax.xlane.f32.xlu0 %v3536
        %v3538 = vpop.xlane.xlu0 %3537
        %v3539 = vsel %vm1306, %v3139, -inf
        %3540 = vmax.xlane.f32.xlu0 %v3539
        %v3541 = vpop.xlane.xlu0 %3540
        %v3542 = vsel %vm1306, %v3140, -inf
        %3543 = vmax.xlane.f32.xlu0 %v3542
        %v3544 = vpop.xlane.xlu0 %3543
        %v3545 = vsel %vm1306, %v3141, -inf
        %3546 = vmax.xlane.f32.xlu0 %v3545
        %v3547 = vpop.xlane.xlu0 %3546
        %v3548 = vsel %vm1306, %v3142, -inf
        %3549 = vmax.xlane.f32.xlu0 %v3548
        %v3550 = vpop.xlane.xlu0 %3549
        %v3551 = vsel %vm1306, %v3143, -inf
        %3552 = vmax.xlane.f32.xlu0 %v3551
        %v3553 = vpop.xlane.xlu0 %3552
        %v3554 = vsel %vm1306, %v3144, -inf
        %3555 = vmax.xlane.f32.xlu0 %v3554
        %v3556 = vpop.xlane.xlu0 %3555
        %v3557 = vsel %vm1306, %v3145, -inf
        %3558 = vmax.xlane.f32.xlu0 %v3557
        %v3559 = vpop.xlane.xlu0 %3558
        %v3560 = vsel %vm1306, %v3146, -inf
        %3561 = vmax.xlane.f32.xlu0 %v3560
        %v3562 = vpop.xlane.xlu0 %3561
        %v3563 = vadd.f32 %v2827, %v3517
        %v3564 = vadd.f32 %v2828, %v3520
        %v3565 = vadd.f32 %v2829, %v3523
        %v3566 = vadd.f32 %v2830, %v3526
        %v3567 = vadd.f32 %v2831, %v3529
        %v3568 = vadd.f32 %v2832, %v3532
        %v3569 = vadd.f32 %v2833, %v3535
        %v3570 = vadd.f32 %v2834, %v3538
        %v3571 = vadd.f32 %v2835, %v3541
        %v3572 = vadd.f32 %v2836, %v3544
        %v3573 = vadd.f32 %v2837, %v3547
        %v3574 = vadd.f32 %v2838, %v3550
        %v3575 = vadd.f32 %v2839, %v3553
        %v3576 = vadd.f32 %v2840, %v3556
        %v3577 = vadd.f32 %v2841, %v3559
        %v3578 = vadd.f32 %v2842, %v3562
        %v3579 = vsel %vm1306, %v3499, inf
        %3580 = vmin.xlane.f32.xlu0 %v3579
        %v3581 = vpop.xlane.xlu0 %3580
        %v3582 = vsel %vm1306, %v3500, inf
        %3583 = vmin.xlane.f32.xlu0 %v3582
        %v3584 = vpop.xlane.xlu0 %3583
        %v3585 = vsel %vm1306, %v3501, inf
        %3586 = vmin.xlane.f32.xlu0 %v3585
        %v3587 = vpop.xlane.xlu0 %3586
        %v3588 = vsel %vm1306, %v3502, inf
        %3589 = vmin.xlane.f32.xlu0 %v3588
        %v3590 = vpop.xlane.xlu0 %3589
        %v3591 = vsel %vm1306, %v3503, inf
        %3592 = vmin.xlane.f32.xlu0 %v3591
        %v3593 = vpop.xlane.xlu0 %3592
        %v3594 = vsel %vm1306, %v3504, inf
        %3595 = vmin.xlane.f32.xlu0 %v3594
        %v3596 = vpop.xlane.xlu0 %3595
        %v3597 = vsel %vm1306, %v3505, inf
        %3598 = vmin.xlane.f32.xlu0 %v3597
        %v3599 = vpop.xlane.xlu0 %3598
        %v3600 = vsel %vm1306, %v3506, inf
        %3601 = vmin.xlane.f32.xlu0 %v3600
        %v3602 = vpop.xlane.xlu0 %3601
        %v3603 = vsel %vm1306, %v3507, inf
        %3604 = vmin.xlane.f32.xlu0 %v3603
        %v3605 = vpop.xlane.xlu0 %3604
        %v3606 = vsel %vm1306, %v3508, inf
        %3607 = vmin.xlane.f32.xlu0 %v3606
        %v3608 = vpop.xlane.xlu0 %3607
        %v3609 = vsel %vm1306, %v3509, inf
        %3610 = vmin.xlane.f32.xlu0 %v3609
        %v3611 = vpop.xlane.xlu0 %3610
        %v3612 = vsel %vm1306, %v3510, inf
        %3613 = vmin.xlane.f32.xlu0 %v3612
        %v3614 = vpop.xlane.xlu0 %3613
        %v3615 = vsel %vm1306, %v3511, inf
        %3616 = vmin.xlane.f32.xlu0 %v3615
        %v3617 = vpop.xlane.xlu0 %3616
        %v3618 = vsel %vm1306, %v3512, inf
        %3619 = vmin.xlane.f32.xlu0 %v3618
        %v3620 = vpop.xlane.xlu0 %3619
        %v3621 = vsel %vm1306, %v3513, inf
        %3622 = vmin.xlane.f32.xlu0 %v3621
        %v3623 = vpop.xlane.xlu0 %3622
        %v3624 = vsel %vm1306, %v3514, inf
        %3625 = vmin.xlane.f32.xlu0 %v3624
        %v3626 = vpop.xlane.xlu0 %3625
        %v3627 = vsub.f32 %v3195, %v3581
        %v3628 = vsub.f32 %v3196, %v3584
        %v3629 = vsub.f32 %v3197, %v3587
        %v3630 = vsub.f32 %v3198, %v3590
        %v3631 = vsub.f32 %v3199, %v3593
        %v3632 = vsub.f32 %v3200, %v3596
        %v3633 = vsub.f32 %v3201, %v3599
        %v3634 = vsub.f32 %v3202, %v3602
        %v3635 = vsub.f32 %v3203, %v3605
        %v3636 = vsub.f32 %v3204, %v3608
        %v3637 = vsub.f32 %v3205, %v3611
        %v3638 = vsub.f32 %v3206, %v3614
        %v3639 = vsub.f32 %v3207, %v3617
        %v3640 = vsub.f32 %v3208, %v3620
        %v3641 = vsub.f32 %v3209, %v3623
        %v3642 = vsub.f32 %v3210, %v3626
        %v3643 = vmul.f32 %v3563, 0.25
        %v3644 = vmul.f32 %v3564, 0.25
        %v3645 = vmul.f32 %v3565, 0.25
        %v3646 = vmul.f32 %v3566, 0.25
        %v3647 = vmul.f32 %v3567, 0.25
        %v3648 = vmul.f32 %v3568, 0.25
        %v3649 = vmul.f32 %v3569, 0.25
        %v3650 = vmul.f32 %v3570, 0.25
        %v3651 = vmul.f32 %v3571, 0.25
        %v3652 = vmul.f32 %v3572, 0.25
        %v3653 = vmul.f32 %v3573, 0.25
        %v3654 = vmul.f32 %v3574, 0.25
        %v3655 = vmul.f32 %v3575, 0.25
        %v3656 = vmul.f32 %v3576, 0.25
        %v3657 = vmul.f32 %v3577, 0.25
        %v3658 = vmul.f32 %v3578, 0.25
        %v3659 = vmul.f32 %v3627, 0.25
        %v3660 = vmul.f32 %v3628, 0.25
        %v3661 = vmul.f32 %v3629, 0.25
        %v3662 = vmul.f32 %v3630, 0.25
        %v3663 = vmul.f32 %v3631, 0.25
        %v3664 = vmul.f32 %v3632, 0.25
        %v3665 = vmul.f32 %v3633, 0.25
        %v3666 = vmul.f32 %v3634, 0.25
        %v3667 = vmul.f32 %v3635, 0.25
        %v3668 = vmul.f32 %v3636, 0.25
        %v3669 = vmul.f32 %v3637, 0.25
        %v3670 = vmul.f32 %v3638, 0.25
        %v3671 = vmul.f32 %v3639, 0.25
        %v3672 = vmul.f32 %v3640, 0.25
        %v3673 = vmul.f32 %v3641, 0.25
        %v3674 = vmul.f32 %v3642, 0.25
        %v3691 = vlaneseq
        %v3692 = vshrl.u32 %v3691, 7
        %v3693 = vsub.s32 %v352, %v3692
        %v3694 = vrot.slane %v3659, %v3693
        %v3695 = vadd.s32 %v352, 4294967288
        %v3696 = vlaneseq
        %v3697 = vshrl.u32 %v3696, 7
        %v3698 = vsub.s32 %v3695, %v3697
        %v3699 = vrot.slane %v3660, %v3698
        %vm3700 = vcmask 130112
        %v3701 = vsel %vm3700, %v3699, %v3694
        %v3702 = vlaneseq
        %v3703 = vshrl.u32 %v3702, 7
        %v3704 = vsub.s32 %v352, %v3703
        %v3705 = vrot.slane %v3661, %v3704
        %v3706 = vlaneseq
        %v3707 = vshrl.u32 %v3706, 7
        %v3708 = vsub.s32 %v3695, %v3707
        %v3709 = vrot.slane %v3662, %v3708
        %v3710 = vsel %vm3700, %v3709, %v3705
        %v3711 = vlaneseq
        %v3712 = vshrl.u32 %v3711, 7
        %v3713 = vsub.s32 %v352, %v3712
        %v3714 = vrot.slane %v3663, %v3713
        %v3715 = vlaneseq
        %v3716 = vshrl.u32 %v3715, 7
        %v3717 = vsub.s32 %v3695, %v3716
        %v3718 = vrot.slane %v3664, %v3717
        %v3719 = vsel %vm3700, %v3718, %v3714
        %v3720 = vlaneseq
        %v3721 = vshrl.u32 %v3720, 7
        %v3722 = vsub.s32 %v352, %v3721
        %v3723 = vrot.slane %v3665, %v3722
        %v3724 = vlaneseq
        %v3725 = vshrl.u32 %v3724, 7
        %v3726 = vsub.s32 %v3695, %v3725
        %v3727 = vrot.slane %v3666, %v3726
        %v3728 = vsel %vm3700, %v3727, %v3723
        %v3729 = vlaneseq
        %v3730 = vshrl.u32 %v3729, 7
        %v3731 = vsub.s32 %v352, %v3730
        %v3732 = vrot.slane %v3667, %v3731
        %v3733 = vlaneseq
        %v3734 = vshrl.u32 %v3733, 7
        %v3735 = vsub.s32 %v3695, %v3734
        %v3736 = vrot.slane %v3668, %v3735
        %v3737 = vsel %vm3700, %v3736, %v3732
        %v3738 = vlaneseq
        %v3739 = vshrl.u32 %v3738, 7
        %v3740 = vsub.s32 %v352, %v3739
        %v3741 = vrot.slane %v3669, %v3740
        %v3742 = vlaneseq
        %v3743 = vshrl.u32 %v3742, 7
        %v3744 = vsub.s32 %v3695, %v3743
        %v3745 = vrot.slane %v3670, %v3744
        %v3746 = vsel %vm3700, %v3745, %v3741
        %v3747 = vlaneseq
        %v3748 = vshrl.u32 %v3747, 7
        %v3749 = vsub.s32 %v352, %v3748
        %v3750 = vrot.slane %v3671, %v3749
        %v3751 = vlaneseq
        %v3752 = vshrl.u32 %v3751, 7
        %v3753 = vsub.s32 %v3695, %v3752
        %v3754 = vrot.slane %v3672, %v3753
        %v3755 = vsel %vm3700, %v3754, %v3750
        %v3756 = vlaneseq
        %v3757 = vshrl.u32 %v3756, 7
        %v3758 = vsub.s32 %v352, %v3757
        %v3759 = vrot.slane %v3673, %v3758
        %v3760 = vlaneseq
        %v3761 = vshrl.u32 %v3760, 7
        %v3762 = vsub.s32 %v3695, %v3761
        %v3763 = vrot.slane %v3674, %v3762
        %v3764 = vsel %vm3700, %v3763, %v3759
        %vm3765 = vcmask 1041409
        %v3766 = vsel %vm3765, %v3710, %v3701
        %vm3767 = vcmask 1042434
        %v3768 = vsel %vm3767, %v3719, %v3766
        %vm3769 = vcmask 1043459
        %v3770 = vsel %vm3769, %v3728, %v3768
        %vm3771 = vcmask 1044484
        %v3772 = vsel %vm3771, %v3737, %v3770
        %vm3773 = vcmask 1045509
        %v3774 = vsel %vm3773, %v3746, %v3772
        %vm3775 = vcmask 1046534
        %v3776 = vsel %vm3775, %v3755, %v3774
        %vm3777 = vcmask 1047559
        %v3778 = vsel %vm3777, %v3764, %v3776
        %v3779 = vsel %vm1306, %v3778, 0
        %3781 = vmatprep.subr.mxu0 0.0
        %3782 = vmatpush1.msra.mxu0 %v347
        %3783 = vmatprep.subr.mxu0 0.0
        %3784 = vmatpush1.msra.mxu0 %v348
        %3785 = vmatprep.subr.mxu0 0.0
        %3786 = vmatpush1.msra.mxu0 0.0
        %3787 = vmatprep.subr.mxu0 0.0
        %3788 = vmatpush1.msra.mxu0 0.0
        %3789 = vmatprep.subr.mxu0 0.0
        %3790 = vmatpush1.msra.mxu0 0.0
        %3791 = vmatprep.subr.mxu0 0.0
        %3792 = vmatpush1.msra.mxu0 0.0
        %3793 = vmatprep.subr.mxu0 0.0
        %3794 = vmatpush1.msra.mxu0 0.0
        %3795 = vmatprep.subr.mxu0 0.0
        %3796 = vmatpush1.msra.mxu0 0.0
        %3797 = vmatprep.subr.mxu0 0.0
        %3798 = vmatpush1.msra.mxu0 0.0
        %3799 = vmatprep.subr.mxu0 0.0
        %3800 = vmatpush1.msra.mxu0 0.0
        %3801 = vmatprep.subr.mxu0 0.0
        %3802 = vmatpush1.msra.mxu0 0.0
        %3803 = vmatprep.subr.mxu0 0.0
        %3804 = vmatpush1.msra.mxu0 0.0
        %3805 = vmatprep.subr.mxu0 0.0
        %3806 = vmatpush1.msra.mxu0 0.0
        %3807 = vmatprep.subr.mxu0 0.0
        %3808 = vmatpush1.msra.mxu0 0.0
        %3809 = vmatprep.subr.mxu0 0.0
        %3810 = vmatpush1.msra.mxu0 0.0
        %3811 = vmatprep.subr.mxu0 0.0
        %3812 = vmatpush1.msra.mxu0 0.0
        %3813 = vmatprep.subr.mxu0 0.0
        %3814 = vmatpush1.msra.mxu0 0.0
        %3815 = vmatprep.subr.mxu0 0.0
        %3816 = vmatpush1.msra.mxu0 0.0
        %3817 = vmatprep.subr.mxu0 0.0
        %3818 = vmatpush1.msra.mxu0 0.0
        %3819 = vmatprep.subr.mxu0 0.0
        %3820 = vmatpush1.msra.mxu0 0.0
        %3821 = vmatprep.subr.mxu0 0.0
        %3822 = vmatpush1.msra.mxu0 0.0
        %3823 = vmatprep.subr.mxu0 0.0
        %3824 = vmatpush1.msra.mxu0 0.0
        %3825 = vmatprep.subr.mxu0 0.0
        %3826 = vmatpush1.msra.mxu0 0.0
        %3827 = vmatprep.subr.mxu0 0.0
        %3828 = vmatpush1.msra.mxu0 0.0
        %3829 = vmatprep.subr.mxu0 0.0
        %3830 = vmatpush1.msra.mxu0 0.0
        %3831 = vmatprep.subr.mxu0 0.0
        %3832 = vmatpush1.msra.mxu0 0.0
        %3833 = vmatprep.subr.mxu0 0.0
        %3834 = vmatpush1.msra.mxu0 0.0
        %3835 = vmatprep.subr.mxu0 0.0
        %3836 = vmatpush1.msra.mxu0 0.0
        %3837 = vmatprep.subr.mxu0 0.0
        %3838 = vmatpush1.msra.mxu0 0.0
        %3839 = vmatprep.subr.mxu0 0.0
        %3840 = vmatpush1.msra.mxu0 0.0
        %3841 = vmatprep.subr.mxu0 0.0
        %3842 = vmatpush1.msra.mxu0 0.0
        %3843 = vmatprep.subr.mxu0 0.0
        %3844 = vmatpush1.msra.mxu0 0.0
        %3845 = vmatprep.mubr.f32.mxu0 0.0
        %3846 = vmatmul.mubr.f32.gmra.mrb[0].mxu0 %v3779
        %v3847 = vpop.f32.mrb[0].mxu0
        %v3848 = vadd.f32 0.0, %v3847
        %v3849 = vpop.f32.mrb[0].mxu0
        %3850 = vdwg.mxu0
        %v3867 = vlaneseq
        %v3868 = vshrl.u32 %v3867, 7
        %v3869 = vsub.s32 %v352, %v3868
        %v3870 = vrot.slane %v3643, %v3869
        %v3871 = vlaneseq
        %v3872 = vshrl.u32 %v3871, 7
        %v3873 = vsub.s32 %v3695, %v3872
        %v3874 = vrot.slane %v3644, %v3873
        %v3875 = vsel %vm3700, %v3874, %v3870
        %v3876 = vlaneseq
        %v3877 = vshrl.u32 %v3876, 7
        %v3878 = vsub.s32 %v352, %v3877
        %v3879 = vrot.slane %v3645, %v3878
        %v3880 = vlaneseq
        %v3881 = vshrl.u32 %v3880, 7
        %v3882 = vsub.s32 %v3695, %v3881
        %v3883 = vrot.slane %v3646, %v3882
        %v3884 = vsel %vm3700, %v3883, %v3879
        %v3885 = vlaneseq
        %v3886 = vshrl.u32 %v3885, 7
        %v3887 = vsub.s32 %v352, %v3886
        %v3888 = vrot.slane %v3647, %v3887
        %v3889 = vlaneseq
        %v3890 = vshrl.u32 %v3889, 7
        %v3891 = vsub.s32 %v3695, %v3890
        %v3892 = vrot.slane %v3648, %v3891
        %v3893 = vsel %vm3700, %v3892, %v3888
        %v3894 = vlaneseq
        %v3895 = vshrl.u32 %v3894, 7
        %v3896 = vsub.s32 %v352, %v3895
        %v3897 = vrot.slane %v3649, %v3896
        %v3898 = vlaneseq
        %v3899 = vshrl.u32 %v3898, 7
        %v3900 = vsub.s32 %v3695, %v3899
        %v3901 = vrot.slane %v3650, %v3900
        %v3902 = vsel %vm3700, %v3901, %v3897
        %v3903 = vlaneseq
        %v3904 = vshrl.u32 %v3903, 7
        %v3905 = vsub.s32 %v352, %v3904
        %v3906 = vrot.slane %v3651, %v3905
        %v3907 = vlaneseq
        %v3908 = vshrl.u32 %v3907, 7
        %v3909 = vsub.s32 %v3695, %v3908
        %v3910 = vrot.slane %v3652, %v3909
        %v3911 = vsel %vm3700, %v3910, %v3906
        %v3912 = vlaneseq
        %v3913 = vshrl.u32 %v3912, 7
        %v3914 = vsub.s32 %v352, %v3913
        %v3915 = vrot.slane %v3653, %v3914
        %v3916 = vlaneseq
        %v3917 = vshrl.u32 %v3916, 7
        %v3918 = vsub.s32 %v3695, %v3917
        %v3919 = vrot.slane %v3654, %v3918
        %v3920 = vsel %vm3700, %v3919, %v3915
        %v3921 = vlaneseq
        %v3922 = vshrl.u32 %v3921, 7
        %v3923 = vsub.s32 %v352, %v3922
        %v3924 = vrot.slane %v3655, %v3923
        %v3925 = vlaneseq
        %v3926 = vshrl.u32 %v3925, 7
        %v3927 = vsub.s32 %v3695, %v3926
        %v3928 = vrot.slane %v3656, %v3927
        %v3929 = vsel %vm3700, %v3928, %v3924
        %v3930 = vlaneseq
        %v3931 = vshrl.u32 %v3930, 7
        %v3932 = vsub.s32 %v352, %v3931
        %v3933 = vrot.slane %v3657, %v3932
        %v3934 = vlaneseq
        %v3935 = vshrl.u32 %v3934, 7
        %v3936 = vsub.s32 %v3695, %v3935
        %v3937 = vrot.slane %v3658, %v3936
        %v3938 = vsel %vm3700, %v3937, %v3933
        %v3939 = vsel %vm3765, %v3884, %v3875
        %v3940 = vsel %vm3767, %v3893, %v3939
        %v3941 = vsel %vm3769, %v3902, %v3940
        %v3942 = vsel %vm3771, %v3911, %v3941
        %v3943 = vsel %vm3773, %v3920, %v3942
        %v3944 = vsel %vm3775, %v3929, %v3943
        %v3945 = vsel %vm3777, %v3938, %v3944
        %v3946 = vsel %vm1306, %v3945, 0
        %3948 = vmatprep.subr.mxu0 0.0
        %3949 = vmatpush1.msra.mxu0 %v345
        %3950 = vmatprep.subr.mxu0 0.0
        %3951 = vmatpush1.msra.mxu0 %v346
        %3952 = vmatprep.subr.mxu0 0.0
        %3953 = vmatpush1.msra.mxu0 0.0
        %3954 = vmatprep.subr.mxu0 0.0
        %3955 = vmatpush1.msra.mxu0 0.0
        %3956 = vmatprep.subr.mxu0 0.0
        %3957 = vmatpush1.msra.mxu0 0.0
        %3958 = vmatprep.subr.mxu0 0.0
        %3959 = vmatpush1.msra.mxu0 0.0
        %3960 = vmatprep.subr.mxu0 0.0
        %3961 = vmatpush1.msra.mxu0 0.0
        %3962 = vmatprep.subr.mxu0 0.0
        %3963 = vmatpush1.msra.mxu0 0.0
        %3964 = vmatprep.subr.mxu0 0.0
        %3965 = vmatpush1.msra.mxu0 0.0
        %3966 = vmatprep.subr.mxu0 0.0
        %3967 = vmatpush1.msra.mxu0 0.0
        %3968 = vmatprep.subr.mxu0 0.0
        %3969 = vmatpush1.msra.mxu0 0.0
        %3970 = vmatprep.subr.mxu0 0.0
        %3971 = vmatpush1.msra.mxu0 0.0
        %3972 = vmatprep.subr.mxu0 0.0
        %3973 = vmatpush1.msra.mxu0 0.0
        %3974 = vmatprep.subr.mxu0 0.0
        %3975 = vmatpush1.msra.mxu0 0.0
        %3976 = vmatprep.subr.mxu0 0.0
        %3977 = vmatpush1.msra.mxu0 0.0
        %3978 = vmatprep.subr.mxu0 0.0
        %3979 = vmatpush1.msra.mxu0 0.0
        %3980 = vmatprep.subr.mxu0 0.0
        %3981 = vmatpush1.msra.mxu0 0.0
        %3982 = vmatprep.subr.mxu0 0.0
        %3983 = vmatpush1.msra.mxu0 0.0
        %3984 = vmatprep.subr.mxu0 0.0
        %3985 = vmatpush1.msra.mxu0 0.0
        %3986 = vmatprep.subr.mxu0 0.0
        %3987 = vmatpush1.msra.mxu0 0.0
        %3988 = vmatprep.subr.mxu0 0.0
        %3989 = vmatpush1.msra.mxu0 0.0
        %3990 = vmatprep.subr.mxu0 0.0
        %3991 = vmatpush1.msra.mxu0 0.0
        %3992 = vmatprep.subr.mxu0 0.0
        %3993 = vmatpush1.msra.mxu0 0.0
        %3994 = vmatprep.subr.mxu0 0.0
        %3995 = vmatpush1.msra.mxu0 0.0
        %3996 = vmatprep.subr.mxu0 0.0
        %3997 = vmatpush1.msra.mxu0 0.0
        %3998 = vmatprep.subr.mxu0 0.0
        %3999 = vmatpush1.msra.mxu0 0.0
        %4000 = vmatprep.subr.mxu0 0.0
        %4001 = vmatpush1.msra.mxu0 0.0
        %4002 = vmatprep.subr.mxu0 0.0
        %4003 = vmatpush1.msra.mxu0 0.0
        %4004 = vmatprep.subr.mxu0 0.0
        %4005 = vmatpush1.msra.mxu0 0.0
        %4006 = vmatprep.subr.mxu0 0.0
        %4007 = vmatpush1.msra.mxu0 0.0
        %4008 = vmatprep.subr.mxu0 0.0
        %4009 = vmatpush1.msra.mxu0 0.0
        %4010 = vmatprep.subr.mxu0 0.0
        %4011 = vmatpush1.msra.mxu0 0.0
        %4012 = vmatprep.mubr.f32.mxu0 0.0
        %4013 = vmatmul.mubr.f32.gmra.mrb[0].mxu0 %v3946
        %v4014 = vpop.f32.mrb[0].mxu0
        %v4015 = vadd.f32 %v3848, %v4014
        %v4016 = vpop.f32.mrb[0].mxu0
        %4017 = vdwg.mxu0
        %v4018 = vld [vmem:[%s344] sm:$0xff]
        %v4020 = vlaneseq
        %v4021 = vshrl.u32 %v4020, 7
        %v4022 = vsub.s32 0, %v4021
        %v4023 = vrot.slane %v349, %v4022
        %v4025 = vadd.f32 %v4015, %v4023
        %v4027 = vlaneseq
        %v4028 = vshrl.u32 %v4027, 7
        %v4029 = vsub.s32 0, %v4028
        %v4030 = vrot.slane %v350, %v4029
        %4033 = vset.pattern.permute.xlu0 0
        %4034 = vperm.xlu0 %4033, %v4018
        %v4035 = vpop.permute.xlu0 %4034
        %v4037 = vmul.f32 %v4030, %v4035
        %v4038 = vadd.f32 %v4025, %v4037
        %4039 = vst [vmem:[%s338] sm:$0xff] %v4038
        %s4040 = sand.u32 %s175, 1
        %s4041 = scalar_lea.sflag [#allocation4], %s4040
        %s4042 = sand.u32 %s175, 1
        %s4043 = smul.addr %s4042, 8
        %s4044 = scalar_lea.vmem [#allocation8], %s4043
        // Predicated region
        $region57: #{tpu_custom_call.1} parent=43 // pred_check
          %p4045 = pneg %p185
        $region58: #{tpu_custom_call.1} parent=43 // pred_check_branch
          %4047 = sbr.rel (%p4045) target = $region60
        $region59: #{tpu_custom_call.1} parent=43 // pred_region
          %s4049 = ssub.s32 128, 128
          %4050 = vsyncadd %s4041, %s4049
          %s4051 = smul.addr %s26, 128
          %s4052 = scalar_lea.hbm %s6, %s4051
          %s4054 = sshll.u32 %s4044, 4
          %s4055 = int_to_ptr.vmem [resolvable:$true] %s4054
          %4057 = dma.vmem_to_hbm [thread:$0]  %s4055, 128, %s4052, %s4041
        $region60: #{tpu_custom_call.1} parent=43 // pred_fallthru
          _
      $region44: #{tpu_custom_call.1} parent=5 // pred_fallthru
        _
      %p4058 = scmp.le.s32.totalorder 2, %s21
      // Predicated region
      $region61: #{tpu_custom_call.1} parent=5 // pred_check
        %p4059 = pneg %p4058
      $region62: #{tpu_custom_call.1} parent=5 // pred_check_branch
        %4061 = sbr.rel (%p4059) target = $region64
      $region63: #{tpu_custom_call.1} parent=5 // pred_region
        %s4062 = ssub.s32 %s21, 2
        // Predicated region
        $region65: #{tpu_custom_call.1} parent=63 // pred_check
          %p4063 = pneg %p191
        $region66: #{tpu_custom_call.1} parent=63 // pred_check_branch
          %4065 = sbr.rel (%p4063) target = $region68
        $region67: #{tpu_custom_call.1} parent=63 // pred_region
          %s4066 = sand.u32 %s176, 1
          %s4067 = scalar_lea.sflag [#allocation4], %s4066
          %s4068 = sand.u32 %s176, 1
          %s4069 = smul.addr %s4068, 8
          %s4070 = scalar_lea.vmem [#allocation8], %s4069
          %4071 = dma.done %s4067, 128
        $region68: #{tpu_custom_call.1} parent=63 // pred_fallthru
          _
      $region64: #{tpu_custom_call.1} parent=5 // pred_fallthru
        _
    $region6: #{tpu_custom_call.1} parent=1 // loop_footer
      %s25 = sadd.s32 1, %s21
    $region7: #{tpu_custom_call.1} parent=1 // loop_footer_branch
      %20 = sbr.rel target = $region3
    $region8: #{tpu_custom_call.1} parent=1 // loop_exit
      _
    %4072 = vsyncpa [#allocation3], 1
    %s4073 = scalar_lea.sflag [#allocation3], 1
    %4074 = vsyncpa %s4073, 1
    %4075 = vsyncpa [#allocation6], 1
    %s4076 = scalar_lea.sflag [#allocation6], 1
    %4077 = vsyncpa %s4076, 1
    %4078 = vsyncpa [#allocation4], 1
    %s4079 = scalar_lea.sflag [#allocation4], 1
    %4080 = vsyncpa %s4079, 1

</llo_original>
